<compile_context>
chip_gen: v7x
topology: tpu7x:2x2x1
jax: 0.10.0
libtpu: 0.0.40
codegen_flags: <defaults>
</compile_context>

<pallas_src>
import numpy as np

import jax
import jax.numpy as jnp
from jax.experimental import pallas as pl
from jax.experimental.pallas import tpu as pltpu

# ---- hyperparameters (small, consistent with the tutorial module) ----
D_MODEL = 32
D_K = 16
D_V = 16
N_HEADS = 4
D_FF = 128
SEQ = 8
BATCH = 2
LN_EPS = 1e-5            # nn.LayerNorm default

HD = N_HEADS * D_K       # 64
SEG = 128                # lane-aligned segment width inside packed slabs

# column offsets inside the packed slabs (all 128-aligned)
C_Q1, C_K1, C_V1, C_K2, C_V2 = 0, 128, 256, 384, 512
ENTRY_COLS = 640         # Q1 | K1 | V1 | K2 | V2  (each 64 used of 128)
C_Q2, C_F1 = 0, 128
MID_COLS = 256           # Q2 (64 used of 128) | FFN1 (128)


# ----------------------------------------------------------------------------
# in-kernel helpers (traced inline)
# ----------------------------------------------------------------------------
def _layer_norm(x, gamma, beta):
    mean = jnp.mean(x, axis=-1, keepdims=True)
    c = x - mean
    var = jnp.mean(c * c, axis=-1, keepdims=True)
    return c * jax.lax.rsqrt(var + LN_EPS) * gamma + beta


def _attention(q2d, k2d, v2d, bias, attn_ref):
    """q2d/k2d/v2d: (B*S, H*D); bias: (B,S,S) additive; attn_ref: (B,H,S,S)."""
    q3 = q2d.reshape(BATCH, SEQ, HD)
    k3 = k2d.reshape(BATCH, SEQ, HD)
    v3 = v2d.reshape(BATCH, SEQ, HD)
    ctx_parts = []
    for h in range(N_HEADS):                 # static unroll, no 4-D transposes
        qh = q3[:, :, h * D_K:(h + 1) * D_K]
        kh = k3[:, :, h * D_K:(h + 1) * D_K]
        vh = v3[:, :, h * D_V:(h + 1) * D_V]
        s = jnp.einsum('bqd,bkd->bqk', qh, kh,
                       preferred_element_type=jnp.float32) + bias
        m = jnp.max(s, axis=-1, keepdims=True)
        e = jnp.exp(s - m)
        p = e * pl.reciprocal(jnp.sum(e, axis=-1, keepdims=True), approx=True)
        attn_ref[:, h, :, :] = p             # natural-shape store, no reshape
        ctx_parts.append(jnp.einsum('bqk,bkd->bqd', p, vh,
                                    preferred_element_type=jnp.float32))
    ctx = jnp.concatenate(ctx_parts, axis=-1)          # (B, S, H*D_V)
    return ctx.reshape(BATCH * SEQ, N_HEADS * D_V)     # leading-dim merge only


# ----------------------------------------------------------------------------
# the fused decoder-layer kernel
# ----------------------------------------------------------------------------
def _decoder_layer_kernel(dec_ref, enc_ref, smask_ref, emask_ref,
                          w_entry_ref, w_mid_ref, w_out_ref, b_ref, vec_ref,
                          out_ref, self_attn_ref, enc_attn_ref):
    x = dec_ref[...]                           # (B*S, D_MODEL)
    enc = enc_ref[...]                         # (B*S, D_MODEL)

    # additive mask bias built in-kernel from int32 masks (nonzero == masked)
    neg = jnp.float32(-1e9)
    self_bias = smask_ref[...].astype(jnp.float32) * neg      # (B, S, S)
    enc_bias = emask_ref[...].astype(jnp.float32) * neg       # (B, S, S)

    # hoisted 1-row parameter vectors (each read once)
    bo1 = vec_ref[0:1, :]
    bo2 = vec_ref[1:2, :]
    bf2 = vec_ref[2:3, :]
    g1 = vec_ref[3:4, :]
    be1 = vec_ref[4:5, :]
    g2 = vec_ref[5:6, :]
    be2 = vec_ref[6:7, :]
    g3 = vec_ref[7:8, :]
    be3 = vec_ref[8:9, :]

    # ---- entry matmul: QKV(self) from x AND K/V(enc-dec) from enc, fused ----
    n = BATCH * SEQ
    stacked = jnp.concatenate([x, enc], axis=0)                # (2n, D_MODEL)
    proj = jnp.dot(stacked, w_entry_ref[...],
                   preferred_element_type=jnp.float32) + b_ref[0:1, :]
    q1 = proj[0:n, C_Q1:C_Q1 + HD]            # 128-aligned lane slices
    k1 = proj[0:n, C_K1:C_K1 + HD]
    v1 = proj[0:n, C_V1:C_V1 + HD]
    k2 = proj[n:2 * n, C_K2:C_K2 + HD]        # precomputed, off y1's critical path
    v2 = proj[n:2 * n, C_V2:C_V2 + HD]

    # ---- masked self-attention + residual + LayerNorm ----
    ctx1 = _attention(q1, k1, v1, self_bias, self_attn_ref)
    o1 = jnp.dot(ctx1, w_out_ref[0:HD, :],
                 preferred_element_type=jnp.float32) + bo1
    y1 = _layer_norm(o1 + x, g1, be1)

    # ---- encoder-decoder attention: only Q depends on y1 ----
    q2 = jnp.dot(y1, w_mid_ref[:, C_Q2:C_Q2 + HD],
                 preferred_element_type=jnp.float32) + b_ref[1:2, C_Q2:C_Q2 + HD]
    ctx2 = _attention(q2, k2, v2, enc_bias, enc_attn_ref)
    o2 = jnp.dot(ctx2, w_out_ref[HD:2 * HD, :],
                 preferred_element_type=jnp.float32) + bo2
    y2 = _layer_norm(o2 + y1, g2, be2)

    # ---- position-wise FFN (kernel_size=1 Conv1d == matmul) ----
    h1 = jnp.maximum(
        jnp.dot(y2, w_mid_ref[:, C_F1:C_F1 + D_FF],
                preferred_element_type=jnp.float32) + b_ref[1:2, C_F1:C_F1 + D_FF],
        0.0)
    o3 = jnp.dot(h1, w_out_ref[2 * HD:2 * HD + D_FF, :],
                 preferred_element_type=jnp.float32) + bf2
    y3 = _layer_norm(o3 + y2, g3, be3)

    out_ref[...] = y3                         # (B*S, D_MODEL), no reshape


# ----------------------------------------------------------------------------
# wrapper
# ----------------------------------------------------------------------------
@jax.jit
def decoder_layer(dec_inputs, enc_outputs, dec_self_attn_mask,
                  dec_enc_attn_mask, packed):
    """Masks are int32 (nonzero == masked); no wrapper-side mask math."""
    w_entry, w_mid, w_out, b_rows, vecs = packed
    B, S, D = dec_inputs.shape

    dec2d = dec_inputs.reshape(B * S, D)
    enc2d = enc_outputs.reshape(B * S, D)

    vmem = pl.BlockSpec(memory_space=pltpu.MemorySpace.VMEM)
    dec_out2d, self_attn, enc_attn = pl.pallas_call(
        _decoder_layer_kernel,
        out_shape=(
            jax.ShapeDtypeStruct((B * S, D), jnp.float32),
            jax.ShapeDtypeStruct((B, N_HEADS, S, S), jnp.float32),
            jax.ShapeDtypeStruct((B, N_HEADS, S, S), jnp.float32),
        ),
        in_specs=[vmem] * 9,
        out_specs=(vmem, vmem, vmem),
    )(dec2d, enc2d, dec_self_attn_mask, dec_enc_attn_mask,
      w_entry, w_mid, w_out, b_rows, vecs)

    return dec_out2d.reshape(B, S, D), self_attn, enc_attn


# ----------------------------------------------------------------------------
# parameters
# ----------------------------------------------------------------------------
def init_params(key):
    """Raw parameters (weights stored (in, out); Conv1d k=1 == Linear)."""
    ks = jax.random.split(key, 20)
    s = 0.1

    def nrm(i, shape):
        return s * jax.random.normal(ks[i], shape, jnp.float32)

    ones = jnp.ones((D_MODEL,), jnp.float32)
    zeros = jnp.zeros((D_MODEL,), jnp.float32)
    return {
        # self attention
        'wq1': nrm(0, (D_MODEL, HD)), 'bq1': nrm(1, (HD,)),
        'wk1': nrm(2, (D_MODEL, HD)), 'bk1': nrm(3, (HD,)),
        'wv1': nrm(4, (D_MODEL, HD)), 'bv1': nrm(5, (HD,)),
        'wo1': nrm(6, (HD, D_MODEL)), 'bo1': nrm(7, (D_MODEL,)),
        'g1': ones, 'be1': zeros,
        # encoder-decoder attention
        'wq2': nrm(8, (D_MODEL, HD)), 'bq2': nrm(9, (HD,)),
        'wk2': nrm(10, (D_MODEL, HD)), 'bk2': nrm(11, (HD,)),
        'wv2': nrm(12, (D_MODEL, HD)), 'bv2': nrm(13, (HD,)),
        'wo2': nrm(14, (HD, D_MODEL)), 'bo2': nrm(15, (D_MODEL,)),
        'g2': ones, 'be2': zeros,
        # FFN
        'wf1': nrm(16, (D_MODEL, D_FF)), 'bf1': nrm(17, (D_FF,)),
        'wf2': nrm(18, (D_FF, D_MODEL)), 'bf2': nrm(19, (D_MODEL,)),
        'g3': ones, 'be3': zeros,
    }


def pack_params(p):
    """Pack into lane-aligned slabs; fold 1/sqrt(d_k) into W_Q / b_Q."""
    scale = jnp.float32(1.0 / np.sqrt(D_K))

    def col_seg(w):  # pad a (D_MODEL, 64) block out to a 128-lane segment
        return jnp.pad(w, ((0, 0), (0, SEG - w.shape[1])))

    # entry slab: Q1 | K1 | V1 | K2 | V2, each segment 128-lane aligned
    w_entry = jnp.concatenate(
        [col_seg(p['wq1'] * scale), col_seg(p['wk1']), col_seg(p['wv1']),
         col_seg(p['wk2']), col_seg(p['wv2'])], axis=1)                # (32, 640)
    # mid slab: Q2 | FFN1
    w_mid = jnp.concatenate([col_seg(p['wq2'] * scale), p['wf1']],
                            axis=1)                                    # (32, 256)
    # output-projection slab (row segments, 8-sublane aligned)
    w_out = jnp.concatenate([p['wo1'], p['wo2'], p['wf2']], axis=0)    # (256, 32)

    b_entry = jnp.zeros((ENTRY_COLS,), jnp.float32)
    b_entry = b_entry.at[C_Q1:C_Q1 + HD].set(p['bq1'] * scale)
    b_entry = b_entry.at[C_K1:C_K1 + HD].set(p['bk1'])
    b_entry = b_entry.at[C_V1:C_V1 + HD].set(p['bv1'])
    b_entry = b_entry.at[C_K2:C_K2 + HD].set(p['bk2'])
    b_entry = b_entry.at[C_V2:C_V2 + HD].set(p['bv2'])

    b_mid = jnp.zeros((ENTRY_COLS,), jnp.float32)
    b_mid = b_mid.at[C_Q2:C_Q2 + HD].set(p['bq2'] * scale)
    b_mid = b_mid.at[C_F1:C_F1 + D_FF].set(p['bf1'])

    b_rows = jnp.stack([b_entry, b_mid], axis=0)                       # (2, 640)

    vecs = jnp.stack([p['bo1'], p['bo2'], p['bf2'],
                      p['g1'], p['be1'], p['g2'], p['be2'],
                      p['g3'], p['be3']], axis=0)                      # (9, 32)
    return w_entry, w_mid, w_out, b_rows, vecs


# ----------------------------------------------------------------------------
# pure-JAX reference (PyTorch-equivalent math) for a correctness check
# ----------------------------------------------------------------------------
def _ln_ref(x, g, b):
    m = jnp.mean(x, axis=-1, keepdims=True)
    v = jnp.mean((x - m) ** 2, axis=-1, keepdims=True)
    return (x - m) / jnp.sqrt(v + LN_EPS) * g + b


def _mha_ref(Q, K, V, mask, wq, bq, wk, bk, wv, bv, wo, bo, g, be):
    B, S, _ = Q.shape
    qs = (Q @ wq + bq).reshape(B, S, N_HEADS, D_K).transpose(0, 2, 1, 3)
    ks = (K @ wk + bk).reshape(B, S, N_HEADS, D_K).transpose(0, 2, 1, 3)
    vs = (V @ wv + bv).reshape(B, S, N_HEADS, D_V).transpose(0, 2, 1, 3)
    scores = jnp.einsum('bhqd,bhkd->bhqk', qs, ks) / np.sqrt(D_K)
    scores = jnp.where(mask[:, None, :, :].astype(bool),
                       jnp.float32(-1e9), scores)
    attn = jax.nn.softmax(scores, axis=-1)
    ctx = jnp.einsum('bhqk,bhkd->bhqd', attn, vs)
    ctx = ctx.transpose(0, 2, 1, 3).reshape(B, S, N_HEADS * D_V)
    return _ln_ref(ctx @ wo + bo + Q, g, be), attn


def decoder_layer_ref(dec, enc, m1, m2, p):
    y1, a1 = _mha_ref(dec, dec, dec, m1, p['wq1'], p['bq1'], p['wk1'], p['bk1'],
                      p['wv1'], p['bv1'], p['wo1'], p['bo1'], p['g1'], p['be1'])
    y2, a2 = _mha_ref(y1, enc, enc, m2, p['wq2'], p['bq2'], p['wk2'], p['bk2'],
                      p['wv2'], p['bv2'], p['wo2'], p['bo2'], p['g2'], p['be2'])
    h = jax.nn.relu(y2 @ p['wf1'] + p['bf1'])
    y3 = _ln_ref(h @ p['wf2'] + p['bf2'] + y2, p['g3'], p['be3'])
    return y3, a1, a2


# ----------------------------------------------------------------------------
if __name__ == "__main__":
    key = jax.random.PRNGKey(0)
    k1, k2, kp = jax.random.split(key, 3)

    dec_inputs = jax.random.normal(k1, (BATCH, SEQ, D_MODEL), jnp.float32)
    enc_outputs = jax.random.normal(k2, (BATCH, SEQ, D_MODEL), jnp.float32)

    # masks as int32 (nonzero == masked), passed straight to the kernel
    causal = jnp.triu(jnp.ones((SEQ, SEQ), jnp.int32), k=1)
    dec_self_attn_mask = jnp.tile(causal[None], (BATCH, 1, 1)).astype(jnp.int32)
    dec_enc_attn_mask = jnp.zeros((BATCH, SEQ, SEQ), jnp.int32).at[:, :, -2:].set(1)

    raw = init_params(kp)
    packed = pack_params(raw)

    dec_out, self_attn, enc_attn = decoder_layer(
        dec_inputs, enc_outputs, dec_self_attn_mask, dec_enc_attn_mask, packed)
    jax.block_until_ready((dec_out, self_attn, enc_attn))

    assert dec_out.shape == (BATCH, SEQ, D_MODEL)
    assert self_attn.shape == (BATCH, N_HEADS, SEQ, SEQ)
    assert enc_attn.shape == (BATCH, N_HEADS, SEQ, SEQ)

    # correctness check against the PyTorch-equivalent reference
    r_out, r_sa, r_ea = decoder_layer_ref(
        dec_inputs, enc_outputs, dec_self_attn_mask, dec_enc_attn_mask, raw)
    assert jnp.allclose(dec_out, r_out, atol=3e-2, rtol=3e-2)
    assert jnp.allclose(self_attn, r_sa, atol=3e-2, rtol=3e-2)
    assert jnp.allclose(enc_attn, r_ea, atol=3e-2, rtol=3e-2)

    print("KERNEL_OK")
</pallas_src>

<mosaic_0001>
module attributes {stable_mosaic.version = 11 : i64} {
  func.func @_decoder_layer_kernel(%arg0: memref<16x32xf32, #tpu.memory_space<vmem>>, %arg1: memref<16x32xf32, #tpu.memory_space<vmem>>, %arg2: memref<2x8x8xi32, #tpu.memory_space<vmem>>, %arg3: memref<2x8x8xi32, #tpu.memory_space<vmem>>, %arg4: memref<32x640xf32, #tpu.memory_space<vmem>>, %arg5: memref<32x256xf32, #tpu.memory_space<vmem>>, %arg6: memref<256x32xf32, #tpu.memory_space<vmem>>, %arg7: memref<2x640xf32, #tpu.memory_space<vmem>>, %arg8: memref<9x32xf32, #tpu.memory_space<vmem>>, %arg9: memref<16x32xf32, #tpu.memory_space<vmem>>, %arg10: memref<2x4x8x8xf32, #tpu.memory_space<vmem>>, %arg11: memref<2x4x8x8xf32, #tpu.memory_space<vmem>>) attributes {dimension_semantics = [], scalar_prefetch = 0 : i64, scratch_operands = 0 : i64, tpu.core_type = #tpu.core_type<tc>} {
    %c0 = arith.constant 0 : index
    %c0_0 = arith.constant 0 : index
    %0 = vector.load %arg0[%c0, %c0_0] : memref<16x32xf32, #tpu.memory_space<vmem>>, vector<16x32xf32>
    %c0_1 = arith.constant 0 : index
    %c0_2 = arith.constant 0 : index
    %1 = vector.load %arg1[%c0_1, %c0_2] : memref<16x32xf32, #tpu.memory_space<vmem>>, vector<16x32xf32>
    %c0_3 = arith.constant 0 : index
    %c0_4 = arith.constant 0 : index
    %c0_5 = arith.constant 0 : index
    %2 = vector.load %arg2[%c0_3, %c0_4, %c0_5] : memref<2x8x8xi32, #tpu.memory_space<vmem>>, vector<2x8x8xi32>
    %3 = arith.sitofp %2 : vector<2x8x8xi32> to vector<2x8x8xf32>
    %cst = arith.constant -1.000000e+09 : f32
    %4 = vector.broadcast %cst : f32 to vector<2x8x8xf32>
    %5 = arith.mulf %3, %4 : vector<2x8x8xf32>
    %c0_6 = arith.constant 0 : index
    %c0_7 = arith.constant 0 : index
    %c0_8 = arith.constant 0 : index
    %6 = vector.load %arg3[%c0_6, %c0_7, %c0_8] : memref<2x8x8xi32, #tpu.memory_space<vmem>>, vector<2x8x8xi32>
    %7 = arith.sitofp %6 : vector<2x8x8xi32> to vector<2x8x8xf32>
    %cst_9 = arith.constant -1.000000e+09 : f32
    %8 = vector.broadcast %cst_9 : f32 to vector<2x8x8xf32>
    %9 = arith.mulf %7, %8 : vector<2x8x8xf32>
    %c0_10 = arith.constant 0 : index
    %c0_11 = arith.constant 0 : index
    %10 = vector.load %arg8[%c0_10, %c0_11] : memref<9x32xf32, #tpu.memory_space<vmem>>, vector<1x32xf32>
    %c1 = arith.constant 1 : index
    %c0_12 = arith.constant 0 : index
    %11 = vector.load %arg8[%c1, %c0_12] : memref<9x32xf32, #tpu.memory_space<vmem>>, vector<1x32xf32>
    %c2 = arith.constant 2 : index
    %c0_13 = arith.constant 0 : index
    %12 = vector.load %arg8[%c2, %c0_13] : memref<9x32xf32, #tpu.memory_space<vmem>>, vector<1x32xf32>
    %c3 = arith.constant 3 : index
    %c0_14 = arith.constant 0 : index
    %13 = vector.load %arg8[%c3, %c0_14] : memref<9x32xf32, #tpu.memory_space<vmem>>, vector<1x32xf32>
    %c4 = arith.constant 4 : index
    %c0_15 = arith.constant 0 : index
    %14 = vector.load %arg8[%c4, %c0_15] : memref<9x32xf32, #tpu.memory_space<vmem>>, vector<1x32xf32>
    %c5 = arith.constant 5 : index
    %c0_16 = arith.constant 0 : index
    %15 = vector.load %arg8[%c5, %c0_16] : memref<9x32xf32, #tpu.memory_space<vmem>>, vector<1x32xf32>
    %c6 = arith.constant 6 : index
    %c0_17 = arith.constant 0 : index
    %16 = vector.load %arg8[%c6, %c0_17] : memref<9x32xf32, #tpu.memory_space<vmem>>, vector<1x32xf32>
    %c7 = arith.constant 7 : index
    %c0_18 = arith.constant 0 : index
    %17 = vector.load %arg8[%c7, %c0_18] : memref<9x32xf32, #tpu.memory_space<vmem>>, vector<1x32xf32>
    %c8 = arith.constant 8 : index
    %c0_19 = arith.constant 0 : index
    %18 = vector.load %arg8[%c8, %c0_19] : memref<9x32xf32, #tpu.memory_space<vmem>>, vector<1x32xf32>
    %19 = tpu.concatenate %0, %1 in 0 : vector<16x32xf32>, vector<16x32xf32> -> vector<32x32xf32>
    %c0_20 = arith.constant 0 : index
    %c0_21 = arith.constant 0 : index
    %20 = vector.load %arg4[%c0_20, %c0_21] : memref<32x640xf32, #tpu.memory_space<vmem>>, vector<32x640xf32>
    %cst_22 = arith.constant dense<0.000000e+00> : vector<32x640xf32>
    %21 = tpu.matmul %19, %20, %cst_22 {dimension_numbers = #tpu.dot_dimension_numbers<[1], [0], [0], [1], [0, 0, 1, 1], [], []>} : vector<32x32xf32>, vector<32x640xf32>, vector<32x640xf32> -> vector<32x640xf32>
    %c0_23 = arith.constant 0 : index
    %c0_24 = arith.constant 0 : index
    %22 = vector.load %arg7[%c0_23, %c0_24] : memref<2x640xf32, #tpu.memory_space<vmem>>, vector<1x640xf32>
    %23 = vector.broadcast %22 : vector<1x640xf32> to vector<32x640xf32>
    %24 = arith.addf %21, %23 : vector<32x640xf32>
    %25 = vector.extract_strided_slice %24 {offsets = [0, 0], sizes = [16, 64], strides = [1, 1]} : vector<32x640xf32> to vector<16x64xf32>
    %26 = vector.extract_strided_slice %24 {offsets = [0, 128], sizes = [16, 64], strides = [1, 1]} : vector<32x640xf32> to vector<16x64xf32>
    %27 = vector.extract_strided_slice %24 {offsets = [0, 256], sizes = [16, 64], strides = [1, 1]} : vector<32x640xf32> to vector<16x64xf32>
    %28 = vector.extract_strided_slice %24 {offsets = [16, 384], sizes = [16, 64], strides = [1, 1]} : vector<32x640xf32> to vector<16x64xf32>
    %29 = vector.extract_strided_slice %24 {offsets = [16, 512], sizes = [16, 64], strides = [1, 1]} : vector<32x640xf32> to vector<16x64xf32>
    %30 = vector.shape_cast %25 : vector<16x64xf32> to vector<2x8x64xf32>
    %31 = vector.shape_cast %26 : vector<16x64xf32> to vector<2x8x64xf32>
    %32 = vector.shape_cast %27 : vector<16x64xf32> to vector<2x8x64xf32>
    %33 = vector.extract_strided_slice %30 {offsets = [0, 0, 0], sizes = [2, 8, 16], strides = [1, 1, 1]} : vector<2x8x64xf32> to vector<2x8x16xf32>
    %34 = vector.extract_strided_slice %31 {offsets = [0, 0, 0], sizes = [2, 8, 16], strides = [1, 1, 1]} : vector<2x8x64xf32> to vector<2x8x16xf32>
    %35 = vector.extract_strided_slice %32 {offsets = [0, 0, 0], sizes = [2, 8, 16], strides = [1, 1, 1]} : vector<2x8x64xf32> to vector<2x8x16xf32>
    "tpu.trace_start"() <{level = 10 : i32, message = "bqd,bkd->bqk"}> : () -> ()
    %cst_25 = arith.constant dense<0.000000e+00> : vector<2x8x8xf32>
    %36 = tpu.matmul %33, %34, %cst_25 {dimension_numbers = #tpu.dot_dimension_numbers<[2], [2], [1], [1], [0, 0, 0, 1, 1, 1], [0], [0]>} : vector<2x8x16xf32>, vector<2x8x16xf32>, vector<2x8x8xf32> -> vector<2x8x8xf32>
    "tpu.trace_stop"() : () -> ()
    %37 = arith.addf %36, %5 : vector<2x8x8xf32>
    %cst_26 = arith.constant dense<0xFF800000> : vector<2x8xf32>
    %38 = vector.multi_reduction <maximumf>, %37, %cst_26 [2] : vector<2x8x8xf32> to vector<2x8xf32>
    %39 = vector.shape_cast %38 : vector<2x8xf32> to vector<2x8x1xf32>
    %40 = vector.broadcast %39 : vector<2x8x1xf32> to vector<2x8x8xf32>
    %41 = arith.subf %37, %40 : vector<2x8x8xf32>
    %42 = math.exp %41 : vector<2x8x8xf32>
    %cst_27 = arith.constant dense<0.000000e+00> : vector<2x8xf32>
    %43 = vector.multi_reduction <add>, %42, %cst_27 [2] : vector<2x8x8xf32> to vector<2x8xf32>
    %44 = vector.shape_cast %43 : vector<2x8xf32> to vector<2x8x1xf32>
    %45 = tpu.reciprocal %44 {approx = true} : vector<2x8x1xf32> -> vector<2x8x1xf32>
    %46 = vector.broadcast %45 : vector<2x8x1xf32> to vector<2x8x8xf32>
    %47 = arith.mulf %42, %46 : vector<2x8x8xf32>
    %c0_28 = arith.constant 0 : index
    %c0_29 = arith.constant 0 : index
    %c0_30 = arith.constant 0 : index
    %c0_31 = arith.constant 0 : index
    %48 = vector.load %arg10[%c0_28, %c0_29, %c0_30, %c0_31] : memref<2x4x8x8xf32, #tpu.memory_space<vmem>>, vector<2x1x8x8xf32>
    %49 = vector.shape_cast %48 : vector<2x1x8x8xf32> to vector<2x8x8xf32>
    %50 = vector.shape_cast %47 : vector<2x8x8xf32> to vector<2x1x8x8xf32>
    tpu.vector_store %arg10[%c0_28, %c0_29, %c0_30, %c0_31], %50 {strides = array<i32>} : memref<2x4x8x8xf32, #tpu.memory_space<vmem>>, vector<2x1x8x8xf32>,
    "tpu.trace_start"() <{level = 10 : i32, message = "bqk,bkd->bqd"}> : () -> ()
    %cst_32 = arith.constant dense<0.000000e+00> : vector<2x8x16xf32>
    %51 = tpu.matmul %47, %35, %cst_32 {dimension_numbers = #tpu.dot_dimension_numbers<[2], [1], [1], [2], [0, 0, 0, 1, 1, 2], [0], [0]>} : vector<2x8x8xf32>, vector<2x8x16xf32>, vector<2x8x16xf32> -> vector<2x8x16xf32>
    "tpu.trace_stop"() : () -> ()
    %52 = vector.extract_strided_slice %30 {offsets = [0, 0, 16], sizes = [2, 8, 16], strides = [1, 1, 1]} : vector<2x8x64xf32> to vector<2x8x16xf32>
    %53 = vector.extract_strided_slice %31 {offsets = [0, 0, 16], sizes = [2, 8, 16], strides = [1, 1, 1]} : vector<2x8x64xf32> to vector<2x8x16xf32>
    %54 = vector.extract_strided_slice %32 {offsets = [0, 0, 16], sizes = [2, 8, 16], strides = [1, 1, 1]} : vector<2x8x64xf32> to vector<2x8x16xf32>
    "tpu.trace_start"() <{level = 10 : i32, message = "bqd,bkd->bqk"}> : () -> ()
    %cst_33 = arith.constant dense<0.000000e+00> : vector<2x8x8xf32>
    %55 = tpu.matmul %52, %53, %cst_33 {dimension_numbers = #tpu.dot_dimension_numbers<[2], [2], [1], [1], [0, 0, 0, 1, 1, 1], [0], [0]>} : vector<2x8x16xf32>, vector<2x8x16xf32>, vector<2x8x8xf32> -> vector<2x8x8xf32>
    "tpu.trace_stop"() : () -> ()
    %56 = arith.addf %55, %5 : vector<2x8x8xf32>
    %cst_34 = arith.constant dense<0xFF800000> : vector<2x8xf32>
    %57 = vector.multi_reduction <maximumf>, %56, %cst_34 [2] : vector<2x8x8xf32> to vector<2x8xf32>
    %58 = vector.shape_cast %57 : vector<2x8xf32> to vector<2x8x1xf32>
    %59 = vector.broadcast %58 : vector<2x8x1xf32> to vector<2x8x8xf32>
    %60 = arith.subf %56, %59 : vector<2x8x8xf32>
    %61 = math.exp %60 : vector<2x8x8xf32>
    %cst_35 = arith.constant dense<0.000000e+00> : vector<2x8xf32>
    %62 = vector.multi_reduction <add>, %61, %cst_35 [2] : vector<2x8x8xf32> to vector<2x8xf32>
    %63 = vector.shape_cast %62 : vector<2x8xf32> to vector<2x8x1xf32>
    %64 = tpu.reciprocal %63 {approx = true} : vector<2x8x1xf32> -> vector<2x8x1xf32>
    %65 = vector.broadcast %64 : vector<2x8x1xf32> to vector<2x8x8xf32>
    %66 = arith.mulf %61, %65 : vector<2x8x8xf32>
    %c0_36 = arith.constant 0 : index
    %c1_37 = arith.constant 1 : index
    %c0_38 = arith.constant 0 : index
    %c0_39 = arith.constant 0 : index
    %67 = vector.load %arg10[%c0_36, %c1_37, %c0_38, %c0_39] : memref<2x4x8x8xf32, #tpu.memory_space<vmem>>, vector<2x1x8x8xf32>
    %68 = vector.shape_cast %67 : vector<2x1x8x8xf32> to vector<2x8x8xf32>
    %69 = vector.shape_cast %66 : vector<2x8x8xf32> to vector<2x1x8x8xf32>
    tpu.vector_store %arg10[%c0_36, %c1_37, %c0_38, %c0_39], %69 {strides = array<i32>} : memref<2x4x8x8xf32, #tpu.memory_space<vmem>>, vector<2x1x8x8xf32>,
    "tpu.trace_start"() <{level = 10 : i32, message = "bqk,bkd->bqd"}> : () -> ()
    %cst_40 = arith.constant dense<0.000000e+00> : vector<2x8x16xf32>
    %70 = tpu.matmul %66, %54, %cst_40 {dimension_numbers = #tpu.dot_dimension_numbers<[2], [1], [1], [2], [0, 0, 0, 1, 1, 2], [0], [0]>} : vector<2x8x8xf32>, vector<2x8x16xf32>, vector<2x8x16xf32> -> vector<2x8x16xf32>
    "tpu.trace_stop"() : () -> ()
    %71 = vector.extract_strided_slice %30 {offsets = [0, 0, 32], sizes = [2, 8, 16], strides = [1, 1, 1]} : vector<2x8x64xf32> to vector<2x8x16xf32>
    %72 = vector.extract_strided_slice %31 {offsets = [0, 0, 32], sizes = [2, 8, 16], strides = [1, 1, 1]} : vector<2x8x64xf32> to vector<2x8x16xf32>
    %73 = vector.extract_strided_slice %32 {offsets = [0, 0, 32], sizes = [2, 8, 16], strides = [1, 1, 1]} : vector<2x8x64xf32> to vector<2x8x16xf32>
    "tpu.trace_start"() <{level = 10 : i32, message = "bqd,bkd->bqk"}> : () -> ()
    %cst_41 = arith.constant dense<0.000000e+00> : vector<2x8x8xf32>
    %74 = tpu.matmul %71, %72, %cst_41 {dimension_numbers = #tpu.dot_dimension_numbers<[2], [2], [1], [1], [0, 0, 0, 1, 1, 1], [0], [0]>} : vector<2x8x16xf32>, vector<2x8x16xf32>, vector<2x8x8xf32> -> vector<2x8x8xf32>
    "tpu.trace_stop"() : () -> ()
    %75 = arith.addf %74, %5 : vector<2x8x8xf32>
    %cst_42 = arith.constant dense<0xFF800000> : vector<2x8xf32>
    %76 = vector.multi_reduction <maximumf>, %75, %cst_42 [2] : vector<2x8x8xf32> to vector<2x8xf32>
    %77 = vector.shape_cast %76 : vector<2x8xf32> to vector<2x8x1xf32>
    %78 = vector.broadcast %77 : vector<2x8x1xf32> to vector<2x8x8xf32>
    %79 = arith.subf %75, %78 : vector<2x8x8xf32>
    %80 = math.exp %79 : vector<2x8x8xf32>
    %cst_43 = arith.constant dense<0.000000e+00> : vector<2x8xf32>
    %81 = vector.multi_reduction <add>, %80, %cst_43 [2] : vector<2x8x8xf32> to vector<2x8xf32>
    %82 = vector.shape_cast %81 : vector<2x8xf32> to vector<2x8x1xf32>
    %83 = tpu.reciprocal %82 {approx = true} : vector<2x8x1xf32> -> vector<2x8x1xf32>
    %84 = vector.broadcast %83 : vector<2x8x1xf32> to vector<2x8x8xf32>
    %85 = arith.mulf %80, %84 : vector<2x8x8xf32>
    %c0_44 = arith.constant 0 : index
    %c2_45 = arith.constant 2 : index
    %c0_46 = arith.constant 0 : index
    %c0_47 = arith.constant 0 : index
    %86 = vector.load %arg10[%c0_44, %c2_45, %c0_46, %c0_47] : memref<2x4x8x8xf32, #tpu.memory_space<vmem>>, vector<2x1x8x8xf32>
    %87 = vector.shape_cast %86 : vector<2x1x8x8xf32> to vector<2x8x8xf32>
    %88 = vector.shape_cast %85 : vector<2x8x8xf32> to vector<2x1x8x8xf32>
    tpu.vector_store %arg10[%c0_44, %c2_45, %c0_46, %c0_47], %88 {strides = array<i32>} : memref<2x4x8x8xf32, #tpu.memory_space<vmem>>, vector<2x1x8x8xf32>,
    "tpu.trace_start"() <{level = 10 : i32, message = "bqk,bkd->bqd"}> : () -> ()
    %cst_48 = arith.constant dense<0.000000e+00> : vector<2x8x16xf32>
    %89 = tpu.matmul %85, %73, %cst_48 {dimension_numbers = #tpu.dot_dimension_numbers<[2], [1], [1], [2], [0, 0, 0, 1, 1, 2], [0], [0]>} : vector<2x8x8xf32>, vector<2x8x16xf32>, vector<2x8x16xf32> -> vector<2x8x16xf32>
    "tpu.trace_stop"() : () -> ()
    %90 = vector.extract_strided_slice %30 {offsets = [0, 0, 48], sizes = [2, 8, 16], strides = [1, 1, 1]} : vector<2x8x64xf32> to vector<2x8x16xf32>
    %91 = vector.extract_strided_slice %31 {offsets = [0, 0, 48], sizes = [2, 8, 16], strides = [1, 1, 1]} : vector<2x8x64xf32> to vector<2x8x16xf32>
    %92 = vector.extract_strided_slice %32 {offsets = [0, 0, 48], sizes = [2, 8, 16], strides = [1, 1, 1]} : vector<2x8x64xf32> to vector<2x8x16xf32>
    "tpu.trace_start"() <{level = 10 : i32, message = "bqd,bkd->bqk"}> : () -> ()
    %cst_49 = arith.constant dense<0.000000e+00> : vector<2x8x8xf32>
    %93 = tpu.matmul %90, %91, %cst_49 {dimension_numbers = #tpu.dot_dimension_numbers<[2], [2], [1], [1], [0, 0, 0, 1, 1, 1], [0], [0]>} : vector<2x8x16xf32>, vector<2x8x16xf32>, vector<2x8x8xf32> -> vector<2x8x8xf32>
    "tpu.trace_stop"() : () -> ()
    %94 = arith.addf %93, %5 : vector<2x8x8xf32>
    %cst_50 = arith.constant dense<0xFF800000> : vector<2x8xf32>
    %95 = vector.multi_reduction <maximumf>, %94, %cst_50 [2] : vector<2x8x8xf32> to vector<2x8xf32>
    %96 = vector.shape_cast %95 : vector<2x8xf32> to vector<2x8x1xf32>
    %97 = vector.broadcast %96 : vector<2x8x1xf32> to vector<2x8x8xf32>
    %98 = arith.subf %94, %97 : vector<2x8x8xf32>
    %99 = math.exp %98 : vector<2x8x8xf32>
    %cst_51 = arith.constant dense<0.000000e+00> : vector<2x8xf32>
    %100 = vector.multi_reduction <add>, %99, %cst_51 [2] : vector<2x8x8xf32> to vector<2x8xf32>
    %101 = vector.shape_cast %100 : vector<2x8xf32> to vector<2x8x1xf32>
    %102 = tpu.reciprocal %101 {approx = true} : vector<2x8x1xf32> -> vector<2x8x1xf32>
    %103 = vector.broadcast %102 : vector<2x8x1xf32> to vector<2x8x8xf32>
    %104 = arith.mulf %99, %103 : vector<2x8x8xf32>
    %c0_52 = arith.constant 0 : index
    %c3_53 = arith.constant 3 : index
    %c0_54 = arith.constant 0 : index
    %c0_55 = arith.constant 0 : index
    %105 = vector.load %arg10[%c0_52, %c3_53, %c0_54, %c0_55] : memref<2x4x8x8xf32, #tpu.memory_space<vmem>>, vector<2x1x8x8xf32>
    %106 = vector.shape_cast %105 : vector<2x1x8x8xf32> to vector<2x8x8xf32>
    %107 = vector.shape_cast %104 : vector<2x8x8xf32> to vector<2x1x8x8xf32>
    tpu.vector_store %arg10[%c0_52, %c3_53, %c0_54, %c0_55], %107 {strides = array<i32>} : memref<2x4x8x8xf32, #tpu.memory_space<vmem>>, vector<2x1x8x8xf32>,
    "tpu.trace_start"() <{level = 10 : i32, message = "bqk,bkd->bqd"}> : () -> ()
    %cst_56 = arith.constant dense<0.000000e+00> : vector<2x8x16xf32>
    %108 = tpu.matmul %104, %92, %cst_56 {dimension_numbers = #tpu.dot_dimension_numbers<[2], [1], [1], [2], [0, 0, 0, 1, 1, 2], [0], [0]>} : vector<2x8x8xf32>, vector<2x8x16xf32>, vector<2x8x16xf32> -> vector<2x8x16xf32>
    "tpu.trace_stop"() : () -> ()
    %109 = tpu.concatenate %51, %70, %89, %108 in 2 : vector<2x8x16xf32>, vector<2x8x16xf32>, vector<2x8x16xf32>, vector<2x8x16xf32> -> vector<2x8x64xf32>
    %110 = vector.shape_cast %109 : vector<2x8x64xf32> to vector<16x64xf32>
    %c0_57 = arith.constant 0 : index
    %c0_58 = arith.constant 0 : index
    %111 = vector.load %arg6[%c0_57, %c0_58] : memref<256x32xf32, #tpu.memory_space<vmem>>, vector<64x32xf32>
    %cst_59 = arith.constant dense<0.000000e+00> : vector<16x32xf32>
    %112 = tpu.matmul %110, %111, %cst_59 {dimension_numbers = #tpu.dot_dimension_numbers<[1], [0], [0], [1], [0, 0, 1, 1], [], []>} : vector<16x64xf32>, vector<64x32xf32>, vector<16x32xf32> -> vector<16x32xf32>
    %113 = vector.broadcast %10 : vector<1x32xf32> to vector<16x32xf32>
    %114 = arith.addf %112, %113 : vector<16x32xf32>
    %115 = arith.addf %114, %0 : vector<16x32xf32>
    %cst_60 = arith.constant dense<0.000000e+00> : vector<16xf32>
    %116 = vector.multi_reduction <add>, %115, %cst_60 [1] : vector<16x32xf32> to vector<16xf32>
    %117 = vector.shape_cast %116 : vector<16xf32> to vector<16x1xf32>
    %cst_61 = arith.constant 3.200000e+01 : f32
    %118 = vector.broadcast %cst_61 : f32 to vector<16x1xf32>
    %119 = arith.divf %117, %118 : vector<16x1xf32>
    %120 = vector.broadcast %119 : vector<16x1xf32> to vector<16x32xf32>
    %121 = arith.subf %115, %120 : vector<16x32xf32>
    %122 = arith.mulf %121, %121 : vector<16x32xf32>
    %cst_62 = arith.constant dense<0.000000e+00> : vector<16xf32>
    %123 = vector.multi_reduction <add>, %122, %cst_62 [1] : vector<16x32xf32> to vector<16xf32>
    %124 = vector.shape_cast %123 : vector<16xf32> to vector<16x1xf32>
    %cst_63 = arith.constant 3.200000e+01 : f32
    %125 = vector.broadcast %cst_63 : f32 to vector<16x1xf32>
    %126 = arith.divf %124, %125 : vector<16x1xf32>
    %cst_64 = arith.constant 9.99999974E-6 : f32
    %127 = vector.broadcast %cst_64 : f32 to vector<16x1xf32>
    %128 = arith.addf %126, %127 : vector<16x1xf32>
    %129 = math.rsqrt %128 : vector<16x1xf32>
    %130 = vector.broadcast %129 : vector<16x1xf32> to vector<16x32xf32>
    %131 = arith.mulf %121, %130 : vector<16x32xf32>
    %132 = vector.broadcast %13 : vector<1x32xf32> to vector<16x32xf32>
    %133 = arith.mulf %131, %132 : vector<16x32xf32>
    %134 = vector.broadcast %14 : vector<1x32xf32> to vector<16x32xf32>
    %135 = arith.addf %133, %134 : vector<16x32xf32>
    %c0_65 = arith.constant 0 : index
    %c0_66 = arith.constant 0 : index
    %136 = vector.load %arg5[%c0_65, %c0_66] : memref<32x256xf32, #tpu.memory_space<vmem>>, vector<32x64xf32>
    %cst_67 = arith.constant dense<0.000000e+00> : vector<16x64xf32>
    %137 = tpu.matmul %135, %136, %cst_67 {dimension_numbers = #tpu.dot_dimension_numbers<[1], [0], [0], [1], [0, 0, 1, 1], [], []>} : vector<16x32xf32>, vector<32x64xf32>, vector<16x64xf32> -> vector<16x64xf32>
    %c1_68 = arith.constant 1 : index
    %c0_69 = arith.constant 0 : index
    %138 = vector.load %arg7[%c1_68, %c0_69] : memref<2x640xf32, #tpu.memory_space<vmem>>, vector<1x64xf32>
    %139 = vector.broadcast %138 : vector<1x64xf32> to vector<16x64xf32>
    %140 = arith.addf %137, %139 : vector<16x64xf32>
    %141 = vector.shape_cast %140 : vector<16x64xf32> to vector<2x8x64xf32>
    %142 = vector.shape_cast %28 : vector<16x64xf32> to vector<2x8x64xf32>
    %143 = vector.shape_cast %29 : vector<16x64xf32> to vector<2x8x64xf32>
    %144 = vector.extract_strided_slice %141 {offsets = [0, 0, 0], sizes = [2, 8, 16], strides = [1, 1, 1]} : vector<2x8x64xf32> to vector<2x8x16xf32>
    %145 = vector.extract_strided_slice %142 {offsets = [0, 0, 0], sizes = [2, 8, 16], strides = [1, 1, 1]} : vector<2x8x64xf32> to vector<2x8x16xf32>
    %146 = vector.extract_strided_slice %143 {offsets = [0, 0, 0], sizes = [2, 8, 16], strides = [1, 1, 1]} : vector<2x8x64xf32> to vector<2x8x16xf32>
    "tpu.trace_start"() <{level = 10 : i32, message = "bqd,bkd->bqk"}> : () -> ()
    %cst_70 = arith.constant dense<0.000000e+00> : vector<2x8x8xf32>
    %147 = tpu.matmul %144, %145, %cst_70 {dimension_numbers = #tpu.dot_dimension_numbers<[2], [2], [1], [1], [0, 0, 0, 1, 1, 1], [0], [0]>} : vector<2x8x16xf32>, vector<2x8x16xf32>, vector<2x8x8xf32> -> vector<2x8x8xf32>
    "tpu.trace_stop"() : () -> ()
    %148 = arith.addf %147, %9 : vector<2x8x8xf32>
    %cst_71 = arith.constant dense<0xFF800000> : vector<2x8xf32>
    %149 = vector.multi_reduction <maximumf>, %148, %cst_71 [2] : vector<2x8x8xf32> to vector<2x8xf32>
    %150 = vector.shape_cast %149 : vector<2x8xf32> to vector<2x8x1xf32>
    %151 = vector.broadcast %150 : vector<2x8x1xf32> to vector<2x8x8xf32>
    %152 = arith.subf %148, %151 : vector<2x8x8xf32>
    %153 = math.exp %152 : vector<2x8x8xf32>
    %cst_72 = arith.constant dense<0.000000e+00> : vector<2x8xf32>
    %154 = vector.multi_reduction <add>, %153, %cst_72 [2] : vector<2x8x8xf32> to vector<2x8xf32>
    %155 = vector.shape_cast %154 : vector<2x8xf32> to vector<2x8x1xf32>
    %156 = tpu.reciprocal %155 {approx = true} : vector<2x8x1xf32> -> vector<2x8x1xf32>
    %157 = vector.broadcast %156 : vector<2x8x1xf32> to vector<2x8x8xf32>
    %158 = arith.mulf %153, %157 : vector<2x8x8xf32>
    %c0_73 = arith.constant 0 : index
    %c0_74 = arith.constant 0 : index
    %c0_75 = arith.constant 0 : index
    %c0_76 = arith.constant 0 : index
    %159 = vector.load %arg11[%c0_73, %c0_74, %c0_75, %c0_76] : memref<2x4x8x8xf32, #tpu.memory_space<vmem>>, vector<2x1x8x8xf32>
    %160 = vector.shape_cast %159 : vector<2x1x8x8xf32> to vector<2x8x8xf32>
    %161 = vector.shape_cast %158 : vector<2x8x8xf32> to vector<2x1x8x8xf32>
    tpu.vector_store %arg11[%c0_73, %c0_74, %c0_75, %c0_76], %161 {strides = array<i32>} : memref<2x4x8x8xf32, #tpu.memory_space<vmem>>, vector<2x1x8x8xf32>,
    "tpu.trace_start"() <{level = 10 : i32, message = "bqk,bkd->bqd"}> : () -> ()
    %cst_77 = arith.constant dense<0.000000e+00> : vector<2x8x16xf32>
    %162 = tpu.matmul %158, %146, %cst_77 {dimension_numbers = #tpu.dot_dimension_numbers<[2], [1], [1], [2], [0, 0, 0, 1, 1, 2], [0], [0]>} : vector<2x8x8xf32>, vector<2x8x16xf32>, vector<2x8x16xf32> -> vector<2x8x16xf32>
    "tpu.trace_stop"() : () -> ()
    %163 = vector.extract_strided_slice %141 {offsets = [0, 0, 16], sizes = [2, 8, 16], strides = [1, 1, 1]} : vector<2x8x64xf32> to vector<2x8x16xf32>
    %164 = vector.extract_strided_slice %142 {offsets = [0, 0, 16], sizes = [2, 8, 16], strides = [1, 1, 1]} : vector<2x8x64xf32> to vector<2x8x16xf32>
    %165 = vector.extract_strided_slice %143 {offsets = [0, 0, 16], sizes = [2, 8, 16], strides = [1, 1, 1]} : vector<2x8x64xf32> to vector<2x8x16xf32>
    "tpu.trace_start"() <{level = 10 : i32, message = "bqd,bkd->bqk"}> : () -> ()
    %cst_78 = arith.constant dense<0.000000e+00> : vector<2x8x8xf32>
    %166 = tpu.matmul %163, %164, %cst_78 {dimension_numbers = #tpu.dot_dimension_numbers<[2], [2], [1], [1], [0, 0, 0, 1, 1, 1], [0], [0]>} : vector<2x8x16xf32>, vector<2x8x16xf32>, vector<2x8x8xf32> -> vector<2x8x8xf32>
    "tpu.trace_stop"() : () -> ()
    %167 = arith.addf %166, %9 : vector<2x8x8xf32>
    %cst_79 = arith.constant dense<0xFF800000> : vector<2x8xf32>
    %168 = vector.multi_reduction <maximumf>, %167, %cst_79 [2] : vector<2x8x8xf32> to vector<2x8xf32>
    %169 = vector.shape_cast %168 : vector<2x8xf32> to vector<2x8x1xf32>
    %170 = vector.broadcast %169 : vector<2x8x1xf32> to vector<2x8x8xf32>
    %171 = arith.subf %167, %170 : vector<2x8x8xf32>
    %172 = math.exp %171 : vector<2x8x8xf32>
    %cst_80 = arith.constant dense<0.000000e+00> : vector<2x8xf32>
    %173 = vector.multi_reduction <add>, %172, %cst_80 [2] : vector<2x8x8xf32> to vector<2x8xf32>
    %174 = vector.shape_cast %173 : vector<2x8xf32> to vector<2x8x1xf32>
    %175 = tpu.reciprocal %174 {approx = true} : vector<2x8x1xf32> -> vector<2x8x1xf32>
    %176 = vector.broadcast %175 : vector<2x8x1xf32> to vector<2x8x8xf32>
    %177 = arith.mulf %172, %176 : vector<2x8x8xf32>
    %c0_81 = arith.constant 0 : index
    %c1_82 = arith.constant 1 : index
    %c0_83 = arith.constant 0 : index
    %c0_84 = arith.constant 0 : index
    %178 = vector.load %arg11[%c0_81, %c1_82, %c0_83, %c0_84] : memref<2x4x8x8xf32, #tpu.memory_space<vmem>>, vector<2x1x8x8xf32>
    %179 = vector.shape_cast %178 : vector<2x1x8x8xf32> to vector<2x8x8xf32>
    %180 = vector.shape_cast %177 : vector<2x8x8xf32> to vector<2x1x8x8xf32>
    tpu.vector_store %arg11[%c0_81, %c1_82, %c0_83, %c0_84], %180 {strides = array<i32>} : memref<2x4x8x8xf32, #tpu.memory_space<vmem>>, vector<2x1x8x8xf32>,
    "tpu.trace_start"() <{level = 10 : i32, message = "bqk,bkd->bqd"}> : () -> ()
    %cst_85 = arith.constant dense<0.000000e+00> : vector<2x8x16xf32>
    %181 = tpu.matmul %177, %165, %cst_85 {dimension_numbers = #tpu.dot_dimension_numbers<[2], [1], [1], [2], [0, 0, 0, 1, 1, 2], [0], [0]>} : vector<2x8x8xf32>, vector<2x8x16xf32>, vector<2x8x16xf32> -> vector<2x8x16xf32>
    "tpu.trace_stop"() : () -> ()
    %182 = vector.extract_strided_slice %141 {offsets = [0, 0, 32], sizes = [2, 8, 16], strides = [1, 1, 1]} : vector<2x8x64xf32> to vector<2x8x16xf32>
    %183 = vector.extract_strided_slice %142 {offsets = [0, 0, 32], sizes = [2, 8, 16], strides = [1, 1, 1]} : vector<2x8x64xf32> to vector<2x8x16xf32>
    %184 = vector.extract_strided_slice %143 {offsets = [0, 0, 32], sizes = [2, 8, 16], strides = [1, 1, 1]} : vector<2x8x64xf32> to vector<2x8x16xf32>
    "tpu.trace_start"() <{level = 10 : i32, message = "bqd,bkd->bqk"}> : () -> ()
    %cst_86 = arith.constant dense<0.000000e+00> : vector<2x8x8xf32>
    %185 = tpu.matmul %182, %183, %cst_86 {dimension_numbers = #tpu.dot_dimension_numbers<[2], [2], [1], [1], [0, 0, 0, 1, 1, 1], [0], [0]>} : vector<2x8x16xf32>, vector<2x8x16xf32>, vector<2x8x8xf32> -> vector<2x8x8xf32>
    "tpu.trace_stop"() : () -> ()
    %186 = arith.addf %185, %9 : vector<2x8x8xf32>
    %cst_87 = arith.constant dense<0xFF800000> : vector<2x8xf32>
    %187 = vector.multi_reduction <maximumf>, %186, %cst_87 [2] : vector<2x8x8xf32> to vector<2x8xf32>
    %188 = vector.shape_cast %187 : vector<2x8xf32> to vector<2x8x1xf32>
    %189 = vector.broadcast %188 : vector<2x8x1xf32> to vector<2x8x8xf32>
    %190 = arith.subf %186, %189 : vector<2x8x8xf32>
    %191 = math.exp %190 : vector<2x8x8xf32>
    %cst_88 = arith.constant dense<0.000000e+00> : vector<2x8xf32>
    %192 = vector.multi_reduction <add>, %191, %cst_88 [2] : vector<2x8x8xf32> to vector<2x8xf32>
    %193 = vector.shape_cast %192 : vector<2x8xf32> to vector<2x8x1xf32>
    %194 = tpu.reciprocal %193 {approx = true} : vector<2x8x1xf32> -> vector<2x8x1xf32>
    %195 = vector.broadcast %194 : vector<2x8x1xf32> to vector<2x8x8xf32>
    %196 = arith.mulf %191, %195 : vector<2x8x8xf32>
    %c0_89 = arith.constant 0 : index
    %c2_90 = arith.constant 2 : index
    %c0_91 = arith.constant 0 : index
    %c0_92 = arith.constant 0 : index
    %197 = vector.load %arg11[%c0_89, %c2_90, %c0_91, %c0_92] : memref<2x4x8x8xf32, #tpu.memory_space<vmem>>, vector<2x1x8x8xf32>
    %198 = vector.shape_cast %197 : vector<2x1x8x8xf32> to vector<2x8x8xf32>
    %199 = vector.shape_cast %196 : vector<2x8x8xf32> to vector<2x1x8x8xf32>
    tpu.vector_store %arg11[%c0_89, %c2_90, %c0_91, %c0_92], %199 {strides = array<i32>} : memref<2x4x8x8xf32, #tpu.memory_space<vmem>>, vector<2x1x8x8xf32>,
    "tpu.trace_start"() <{level = 10 : i32, message = "bqk,bkd->bqd"}> : () -> ()
    %cst_93 = arith.constant dense<0.000000e+00> : vector<2x8x16xf32>
    %200 = tpu.matmul %196, %184, %cst_93 {dimension_numbers = #tpu.dot_dimension_numbers<[2], [1], [1], [2], [0, 0, 0, 1, 1, 2], [0], [0]>} : vector<2x8x8xf32>, vector<2x8x16xf32>, vector<2x8x16xf32> -> vector<2x8x16xf32>
    "tpu.trace_stop"() : () -> ()
    %201 = vector.extract_strided_slice %141 {offsets = [0, 0, 48], sizes = [2, 8, 16], strides = [1, 1, 1]} : vector<2x8x64xf32> to vector<2x8x16xf32>
    %202 = vector.extract_strided_slice %142 {offsets = [0, 0, 48], sizes = [2, 8, 16], strides = [1, 1, 1]} : vector<2x8x64xf32> to vector<2x8x16xf32>
    %203 = vector.extract_strided_slice %143 {offsets = [0, 0, 48], sizes = [2, 8, 16], strides = [1, 1, 1]} : vector<2x8x64xf32> to vector<2x8x16xf32>
    "tpu.trace_start"() <{level = 10 : i32, message = "bqd,bkd->bqk"}> : () -> ()
    %cst_94 = arith.constant dense<0.000000e+00> : vector<2x8x8xf32>
    %204 = tpu.matmul %201, %202, %cst_94 {dimension_numbers = #tpu.dot_dimension_numbers<[2], [2], [1], [1], [0, 0, 0, 1, 1, 1], [0], [0]>} : vector<2x8x16xf32>, vector<2x8x16xf32>, vector<2x8x8xf32> -> vector<2x8x8xf32>
    "tpu.trace_stop"() : () -> ()
    %205 = arith.addf %204, %9 : vector<2x8x8xf32>
    %cst_95 = arith.constant dense<0xFF800000> : vector<2x8xf32>
    %206 = vector.multi_reduction <maximumf>, %205, %cst_95 [2] : vector<2x8x8xf32> to vector<2x8xf32>
    %207 = vector.shape_cast %206 : vector<2x8xf32> to vector<2x8x1xf32>
    %208 = vector.broadcast %207 : vector<2x8x1xf32> to vector<2x8x8xf32>
    %209 = arith.subf %205, %208 : vector<2x8x8xf32>
    %210 = math.exp %209 : vector<2x8x8xf32>
    %cst_96 = arith.constant dense<0.000000e+00> : vector<2x8xf32>
    %211 = vector.multi_reduction <add>, %210, %cst_96 [2] : vector<2x8x8xf32> to vector<2x8xf32>
    %212 = vector.shape_cast %211 : vector<2x8xf32> to vector<2x8x1xf32>
    %213 = tpu.reciprocal %212 {approx = true} : vector<2x8x1xf32> -> vector<2x8x1xf32>
    %214 = vector.broadcast %213 : vector<2x8x1xf32> to vector<2x8x8xf32>
    %215 = arith.mulf %210, %214 : vector<2x8x8xf32>
    %c0_97 = arith.constant 0 : index
    %c3_98 = arith.constant 3 : index
    %c0_99 = arith.constant 0 : index
    %c0_100 = arith.constant 0 : index
    %216 = vector.load %arg11[%c0_97, %c3_98, %c0_99, %c0_100] : memref<2x4x8x8xf32, #tpu.memory_space<vmem>>, vector<2x1x8x8xf32>
    %217 = vector.shape_cast %216 : vector<2x1x8x8xf32> to vector<2x8x8xf32>
    %218 = vector.shape_cast %215 : vector<2x8x8xf32> to vector<2x1x8x8xf32>
    tpu.vector_store %arg11[%c0_97, %c3_98, %c0_99, %c0_100], %218 {strides = array<i32>} : memref<2x4x8x8xf32, #tpu.memory_space<vmem>>, vector<2x1x8x8xf32>,
    "tpu.trace_start"() <{level = 10 : i32, message = "bqk,bkd->bqd"}> : () -> ()
    %cst_101 = arith.constant dense<0.000000e+00> : vector<2x8x16xf32>
    %219 = tpu.matmul %215, %203, %cst_101 {dimension_numbers = #tpu.dot_dimension_numbers<[2], [1], [1], [2], [0, 0, 0, 1, 1, 2], [0], [0]>} : vector<2x8x8xf32>, vector<2x8x16xf32>, vector<2x8x16xf32> -> vector<2x8x16xf32>
    "tpu.trace_stop"() : () -> ()
    %220 = tpu.concatenate %162, %181, %200, %219 in 2 : vector<2x8x16xf32>, vector<2x8x16xf32>, vector<2x8x16xf32>, vector<2x8x16xf32> -> vector<2x8x64xf32>
    %221 = vector.shape_cast %220 : vector<2x8x64xf32> to vector<16x64xf32>
    %c64 = arith.constant 64 : index
    %c0_102 = arith.constant 0 : index
    %222 = vector.load %arg6[%c64, %c0_102] : memref<256x32xf32, #tpu.memory_space<vmem>>, vector<64x32xf32>
    %cst_103 = arith.constant dense<0.000000e+00> : vector<16x32xf32>
    %223 = tpu.matmul %221, %222, %cst_103 {dimension_numbers = #tpu.dot_dimension_numbers<[1], [0], [0], [1], [0, 0, 1, 1], [], []>} : vector<16x64xf32>, vector<64x32xf32>, vector<16x32xf32> -> vector<16x32xf32>
    %224 = vector.broadcast %11 : vector<1x32xf32> to vector<16x32xf32>
    %225 = arith.addf %223, %224 : vector<16x32xf32>
    %226 = arith.addf %225, %135 : vector<16x32xf32>
    %cst_104 = arith.constant dense<0.000000e+00> : vector<16xf32>
    %227 = vector.multi_reduction <add>, %226, %cst_104 [1] : vector<16x32xf32> to vector<16xf32>
    %228 = vector.shape_cast %227 : vector<16xf32> to vector<16x1xf32>
    %cst_105 = arith.constant 3.200000e+01 : f32
    %229 = vector.broadcast %cst_105 : f32 to vector<16x1xf32>
    %230 = arith.divf %228, %229 : vector<16x1xf32>
    %231 = vector.broadcast %230 : vector<16x1xf32> to vector<16x32xf32>
    %232 = arith.subf %226, %231 : vector<16x32xf32>
    %233 = arith.mulf %232, %232 : vector<16x32xf32>
    %cst_106 = arith.constant dense<0.000000e+00> : vector<16xf32>
    %234 = vector.multi_reduction <add>, %233, %cst_106 [1] : vector<16x32xf32> to vector<16xf32>
    %235 = vector.shape_cast %234 : vector<16xf32> to vector<16x1xf32>
    %cst_107 = arith.constant 3.200000e+01 : f32
    %236 = vector.broadcast %cst_107 : f32 to vector<16x1xf32>
    %237 = arith.divf %235, %236 : vector<16x1xf32>
    %cst_108 = arith.constant 9.99999974E-6 : f32
    %238 = vector.broadcast %cst_108 : f32 to vector<16x1xf32>
    %239 = arith.addf %237, %238 : vector<16x1xf32>
    %240 = math.rsqrt %239 : vector<16x1xf32>
    %241 = vector.broadcast %240 : vector<16x1xf32> to vector<16x32xf32>
    %242 = arith.mulf %232, %241 : vector<16x32xf32>
    %243 = vector.broadcast %15 : vector<1x32xf32> to vector<16x32xf32>
    %244 = arith.mulf %242, %243 : vector<16x32xf32>
    %245 = vector.broadcast %16 : vector<1x32xf32> to vector<16x32xf32>
    %246 = arith.addf %244, %245 : vector<16x32xf32>
    %c0_109 = arith.constant 0 : index
    %c128 = arith.constant 128 : index
    %247 = vector.load %arg5[%c0_109, %c128] : memref<32x256xf32, #tpu.memory_space<vmem>>, vector<32x128xf32>
    %cst_110 = arith.constant dense<0.000000e+00> : vector<16x128xf32>
    %248 = tpu.matmul %246, %247, %cst_110 {dimension_numbers = #tpu.dot_dimension_numbers<[1], [0], [0], [1], [0, 0, 1, 1], [], []>} : vector<16x32xf32>, vector<32x128xf32>, vector<16x128xf32> -> vector<16x128xf32>
    %c1_111 = arith.constant 1 : index
    %c128_112 = arith.constant 128 : index
    %249 = vector.load %arg7[%c1_111, %c128_112] : memref<2x640xf32, #tpu.memory_space<vmem>>, vector<1x128xf32>
    %250 = vector.broadcast %249 : vector<1x128xf32> to vector<16x128xf32>
    %251 = arith.addf %248, %250 : vector<16x128xf32>
    %cst_113 = arith.constant 0.000000e+00 : f32
    %252 = vector.broadcast %cst_113 : f32 to vector<16x128xf32>
    %253 = arith.maximumf %251, %252 : vector<16x128xf32>
    %c128_114 = arith.constant 128 : index
    %c0_115 = arith.constant 0 : index
    %254 = vector.load %arg6[%c128_114, %c0_115] : memref<256x32xf32, #tpu.memory_space<vmem>>, vector<128x32xf32>
    %cst_116 = arith.constant dense<0.000000e+00> : vector<16x32xf32>
    %255 = tpu.matmul %253, %254, %cst_116 {dimension_numbers = #tpu.dot_dimension_numbers<[1], [0], [0], [1], [0, 0, 1, 1], [], []>} : vector<16x128xf32>, vector<128x32xf32>, vector<16x32xf32> -> vector<16x32xf32>
    %256 = vector.broadcast %12 : vector<1x32xf32> to vector<16x32xf32>
    %257 = arith.addf %255, %256 : vector<16x32xf32>
    %258 = arith.addf %257, %246 : vector<16x32xf32>
    %cst_117 = arith.constant dense<0.000000e+00> : vector<16xf32>
    %259 = vector.multi_reduction <add>, %258, %cst_117 [1] : vector<16x32xf32> to vector<16xf32>
    %260 = vector.shape_cast %259 : vector<16xf32> to vector<16x1xf32>
    %cst_118 = arith.constant 3.200000e+01 : f32
    %261 = vector.broadcast %cst_118 : f32 to vector<16x1xf32>
    %262 = arith.divf %260, %261 : vector<16x1xf32>
    %263 = vector.broadcast %262 : vector<16x1xf32> to vector<16x32xf32>
    %264 = arith.subf %258, %263 : vector<16x32xf32>
    %265 = arith.mulf %264, %264 : vector<16x32xf32>
    %cst_119 = arith.constant dense<0.000000e+00> : vector<16xf32>
    %266 = vector.multi_reduction <add>, %265, %cst_119 [1] : vector<16x32xf32> to vector<16xf32>
    %267 = vector.shape_cast %266 : vector<16xf32> to vector<16x1xf32>
    %cst_120 = arith.constant 3.200000e+01 : f32
    %268 = vector.broadcast %cst_120 : f32 to vector<16x1xf32>
    %269 = arith.divf %267, %268 : vector<16x1xf32>
    %cst_121 = arith.constant 9.99999974E-6 : f32
    %270 = vector.broadcast %cst_121 : f32 to vector<16x1xf32>
    %271 = arith.addf %269, %270 : vector<16x1xf32>
    %272 = math.rsqrt %271 : vector<16x1xf32>
    %273 = vector.broadcast %272 : vector<16x1xf32> to vector<16x32xf32>
    %274 = arith.mulf %264, %273 : vector<16x32xf32>
    %275 = vector.broadcast %17 : vector<1x32xf32> to vector<16x32xf32>
    %276 = arith.mulf %274, %275 : vector<16x32xf32>
    %277 = vector.broadcast %18 : vector<1x32xf32> to vector<16x32xf32>
    %278 = arith.addf %276, %277 : vector<16x32xf32>
    %c0_122 = arith.constant 0 : index
    %c0_123 = arith.constant 0 : index
    %279 = vector.load %arg9[%c0_122, %c0_123] : memref<16x32xf32, #tpu.memory_space<vmem>>, vector<16x32xf32>
    tpu.vector_store %arg9[%c0_122, %c0_123], %278 {strides = array<i32>} : memref<16x32xf32, #tpu.memory_space<vmem>>, vector<16x32xf32>,
    return
  }
}

</mosaic_0001>

<llo_original>
// kernel: decoder_layer.1
$region0: #{decoder_layer.1}
  #allocation0 [shape = 'u32[]', space=smem, size = 0x4, offset = 0x4, fixed_abs, tag = 'smem constant byte address 0x4 - core index']
  #allocation1 [shape = 'u32[144,128]{1,0:T(1,128)}', space=vmem, size = 0x12000, scoped, tag = 'internal scratch']
  %s0 = inlined_call_operand.vmem [shape: f32[16,32], index: 0, kind: input, shape index: {}]
  %s1 = inlined_call_operand.vmem [shape: f32[16,32], index: 1, kind: input, shape index: {}]
  %s2 = inlined_call_operand.vmem [shape: s32[2,8,8], index: 2, kind: input, shape index: {}]
  %s3 = inlined_call_operand.vmem [shape: s32[2,8,8], index: 3, kind: input, shape index: {}]
  %s4 = inlined_call_operand.vmem [shape: f32[32,640], index: 4, kind: input, shape index: {}]
  %s5 = inlined_call_operand.vmem [shape: f32[32,256], index: 5, kind: input, shape index: {}]
  %s6 = inlined_call_operand.vmem [shape: f32[256,32], index: 6, kind: input, shape index: {}]
  %s7 = inlined_call_operand.vmem [shape: f32[2,640], index: 7, kind: input, shape index: {}]
  %s8 = inlined_call_operand.vmem [shape: f32[9,32], index: 8, kind: input, shape index: {}]
  %s9 = inlined_call_operand.hbm [shape: f32[16,32], index: 9, kind: output, shape index: {0}]
  %s10 = inlined_call_operand.hbm [shape: f32[2,4,8,8], index: 10, kind: output, shape index: {1}]
  %s11 = inlined_call_operand.hbm [shape: f32[2,4,8,8], index: 11, kind: output, shape index: {2}]
  %12 = xla_tuple %s9, %s10, %s11
  %s13 = sld [smem:[#allocation0]]
  $region62: #{decoder_layer.1} parent=0
    _
  %s15 = ssub.s32 1, %s13
  %s16 = scalar_select 0, %s15, %s13
  $region1: #{decoder_layer.1} parent=0
    #allocation2 [shape = 'u8[8192]{0}', space=vmem, size = 0x2000, scoped, tag = 'output window, operand 0, single buffered']
    #allocation3 [shape = 's32[1]{0}', space=sflag, size = 0x4, scoped, tag = 'scoped memory for decoder_layer.1']
    #allocation4 [shape = 'u8[32768]{0}', space=vmem, size = 0x8000, scoped, tag = 'output window, operand 1, single buffered']
    #allocation5 [shape = 's32[1]{0}', space=sflag, size = 0x4, scoped, tag = 'scoped memory for decoder_layer.1']
    #allocation6 [shape = 'u8[32768]{0}', space=vmem, size = 0x8000, scoped, tag = 'output window, operand 2, single buffered']
    %17 = vsyncpa [#allocation3], 0
    %18 = vsyncpa [#allocation5], 0
    // Predicated region
    $region2: #{decoder_layer.1} parent=1 // pred_check
      _
    $region3: #{decoder_layer.1} parent=1 // pred_check_branch
      %20 = sbr.rel (0) target = $region5
    $region4: #{decoder_layer.1} parent=1 // pred_region
      _
    $region5: #{decoder_layer.1} parent=1 // pred_fallthru
      _
    // Predicated region
    $region6: #{decoder_layer.1} parent=1 // pred_check
      _
    $region7: #{decoder_layer.1} parent=1 // pred_check_branch
      %22 = sbr.rel (0) target = $region9
    $region8: #{decoder_layer.1} parent=1 // pred_region
      _
    $region9: #{decoder_layer.1} parent=1 // pred_fallthru
      _
    // Predicated region
    $region10: #{decoder_layer.1} parent=1 // pred_check
      _
    $region11: #{decoder_layer.1} parent=1 // pred_check_branch
      %24 = sbr.rel (0) target = $region13
    $region12: #{decoder_layer.1} parent=1 // pred_region
      _
    $region13: #{decoder_layer.1} parent=1 // pred_fallthru
      _
    // Predicated region
    $region14: #{decoder_layer.1} parent=1 // pred_check
      _
    $region15: #{decoder_layer.1} parent=1 // pred_check_branch
      %26 = sbr.rel (0) target = $region17
    $region16: #{decoder_layer.1} parent=1 // pred_region
      _
    $region17: #{decoder_layer.1} parent=1 // pred_fallthru
      _
    // Predicated region
    $region18: #{decoder_layer.1} parent=1 // pred_check
      _
    $region19: #{decoder_layer.1} parent=1 // pred_check_branch
      %28 = sbr.rel (0) target = $region21
    $region20: #{decoder_layer.1} parent=1 // pred_region
      _
    $region21: #{decoder_layer.1} parent=1 // pred_fallthru
      _
    // Predicated region
    $region22: #{decoder_layer.1} parent=1 // pred_check
      _
    $region23: #{decoder_layer.1} parent=1 // pred_check_branch
      %30 = sbr.rel (0) target = $region25
    $region24: #{decoder_layer.1} parent=1 // pred_region
      _
    $region25: #{decoder_layer.1} parent=1 // pred_fallthru
      _
    // Predicated region
    $region26: #{decoder_layer.1} parent=1 // pred_check
      _
    $region27: #{decoder_layer.1} parent=1 // pred_check_branch
      %32 = sbr.rel (0) target = $region29
    $region28: #{decoder_layer.1} parent=1 // pred_region
      _
    $region29: #{decoder_layer.1} parent=1 // pred_fallthru
      _
    // Predicated region
    $region30: #{decoder_layer.1} parent=1 // pred_check
      _
    $region31: #{decoder_layer.1} parent=1 // pred_check_branch
      %34 = sbr.rel (0) target = $region33
    $region32: #{decoder_layer.1} parent=1 // pred_region
      _
    $region33: #{decoder_layer.1} parent=1 // pred_fallthru
      _
    // Predicated region
    $region34: #{decoder_layer.1} parent=1 // pred_check
      _
    $region35: #{decoder_layer.1} parent=1 // pred_check_branch
      %36 = sbr.rel (0) target = $region37
    $region36: #{decoder_layer.1} parent=1 // pred_region
      _
    $region37: #{decoder_layer.1} parent=1 // pred_fallthru
      _
    %v37 = vld [vmem:[%s0] sm:$0xff]
    %v38 = vld [vmem:[%s0 + $0x8] sm:$0xff]
    %v39 = vld [vmem:[%s1] sm:$0xff]
    %v40 = vld [vmem:[%s1 + $0x8] sm:$0xff]
    %v41 = vld [vmem:[%s2] sm:$0xff]
    %v42 = vld [vmem:[%s2 + $0x8] sm:$0xff]
    %v43 = vcvt.s32.f32 %v41
    %v44 = vcvt.s32.f32 %v42
    %v45 = vmul.f32 %v43, -1e+09
    %v46 = vmul.f32 %v44, -1e+09
    %v47 = vld [vmem:[%s3] sm:$0xff]
    %v48 = vld [vmem:[%s3 + $0x8] sm:$0xff]
    %v49 = vcvt.s32.f32 %v47
    %v50 = vcvt.s32.f32 %v48
    %v51 = vmul.f32 %v49, -1e+09
    %v52 = vmul.f32 %v50, -1e+09
    %v53 = vld [vmem:[%s8] sm:$0x1]
    %v54 = vld [vmem:[%s8 + $0x1] sm:$0x1]
    %v55 = vld [vmem:[%s8 + $0x2] sm:$0x1]
    %v56 = vld [vmem:[%s8 + $0x3] sm:$0x1]
    %v57 = vld [vmem:[%s8 + $0x4] sm:$0x1]
    %v58 = vld [vmem:[%s8 + $0x5] sm:$0x1]
    %v59 = vld [vmem:[%s8 + $0x6] sm:$0x1]
    %v60 = vld [vmem:[%s8 + $0x7] sm:$0x1]
    %v61 = vld [vmem:[%s8 + $0x8] sm:$0x1]
    %v62 = vld [vmem:[%s4] sm:$0xff]
    %v63 = vld [vmem:[%s4 + $0x8] sm:$0xff]
    %v64 = vld [vmem:[%s4 + $0x10] sm:$0xff]
    %v65 = vld [vmem:[%s4 + $0x18] sm:$0xff]
    %v66 = vld [vmem:[%s4 + $0x20] sm:$0xff]
    %v67 = vld [vmem:[%s4 + $0x28] sm:$0xff]
    %v68 = vld [vmem:[%s4 + $0x30] sm:$0xff]
    %v69 = vld [vmem:[%s4 + $0x38] sm:$0xff]
    %v70 = vld [vmem:[%s4 + $0x40] sm:$0xff]
    %v71 = vld [vmem:[%s4 + $0x48] sm:$0xff]
    %v72 = vld [vmem:[%s4 + $0x50] sm:$0xff]
    %v73 = vld [vmem:[%s4 + $0x58] sm:$0xff]
    %v74 = vld [vmem:[%s4 + $0x60] sm:$0xff]
    %v75 = vld [vmem:[%s4 + $0x68] sm:$0xff]
    %v76 = vld [vmem:[%s4 + $0x70] sm:$0xff]
    %v77 = vld [vmem:[%s4 + $0x78] sm:$0xff]
    %v78 = vld [vmem:[%s4 + $0x80] sm:$0xff]
    %v79 = vld [vmem:[%s4 + $0x88] sm:$0xff]
    %v80 = vld [vmem:[%s4 + $0x90] sm:$0xff]
    %v81 = vld [vmem:[%s4 + $0x98] sm:$0xff]
    %v82 = vld [vmem:[%s7] ss:$2 sm:$0x1f]
    %v84 = vlaneseq
    %v85 = vshrl.u32 %v84, 7
    %v86 = vsub.s32 0, %v85
    %v87 = vrot.slane %v82, %v86
    %v88 = vlaneseq
    %v89 = vshrl.u32 %v88, 7
    %v90 = vsub.s32 1, %v89
    %v91 = vrot.slane %v82, %v90
    %v92 = vlaneseq
    %v93 = vshrl.u32 %v92, 7
    %v94 = vsub.s32 2, %v93
    %v95 = vrot.slane %v82, %v94
    %v96 = vlaneseq
    %v97 = vshrl.u32 %v96, 7
    %v98 = vsub.s32 3, %v97
    %v99 = vrot.slane %v82, %v98
    %v100 = vlaneseq
    %v101 = vshrl.u32 %v100, 7
    %v102 = vsub.s32 4, %v101
    %v103 = vrot.slane %v82, %v102
    %vm109 = vcmask 261120
    %v111 = vsel %vm109, %v37, 0
    %v114 = vsel %vm109, %v38, 0
    %v117 = vsel %vm109, %v39, 0
    %v120 = vsel %vm109, %v40, 0
    %122 = vmatprep.subr.mxu0 %v63
    %123 = vmatpush1.msra.mxu0 %v62
    %124 = vmatprep.subr.mxu0 %v68
    %125 = vmatpush1.msra.mxu0 %v67
    %126 = vmatprep.subr.mxu0 %v73
    %127 = vmatpush1.msra.mxu0 %v72
    %128 = vmatprep.subr.mxu0 %v78
    %129 = vmatpush1.msra.mxu0 %v77
    %130 = vmatprep.subr.mxu0 0.0
    %131 = vmatpush1.msra.mxu0 0.0
    %132 = vmatprep.subr.mxu0 0.0
    %133 = vmatpush1.msra.mxu0 0.0
    %134 = vmatprep.subr.mxu0 0.0
    %135 = vmatpush1.msra.mxu0 0.0
    %136 = vmatprep.subr.mxu0 0.0
    %137 = vmatpush1.msra.mxu0 0.0
    %138 = vmatprep.subr.mxu0 0.0
    %139 = vmatpush1.msra.mxu0 0.0
    %140 = vmatprep.subr.mxu0 0.0
    %141 = vmatpush1.msra.mxu0 0.0
    %142 = vmatprep.subr.mxu0 0.0
    %143 = vmatpush1.msra.mxu0 0.0
    %144 = vmatprep.subr.mxu0 0.0
    %145 = vmatpush1.msra.mxu0 0.0
    %146 = vmatprep.subr.mxu0 0.0
    %147 = vmatpush1.msra.mxu0 0.0
    %148 = vmatprep.subr.mxu0 0.0
    %149 = vmatpush1.msra.mxu0 0.0
    %150 = vmatprep.subr.mxu0 0.0
    %151 = vmatpush1.msra.mxu0 0.0
    %152 = vmatprep.subr.mxu0 0.0
    %153 = vmatpush1.msra.mxu0 0.0
    %154 = vmatprep.subr.mxu0 0.0
    %155 = vmatpush1.msra.mxu0 0.0
    %156 = vmatprep.subr.mxu0 0.0
    %157 = vmatpush1.msra.mxu0 0.0
    %158 = vmatprep.subr.mxu0 0.0
    %159 = vmatpush1.msra.mxu0 0.0
    %160 = vmatprep.subr.mxu0 0.0
    %161 = vmatpush1.msra.mxu0 0.0
    %162 = vmatprep.subr.mxu0 0.0
    %163 = vmatpush1.msra.mxu0 0.0
    %164 = vmatprep.subr.mxu0 0.0
    %165 = vmatpush1.msra.mxu0 0.0
    %166 = vmatprep.subr.mxu0 0.0
    %167 = vmatpush1.msra.mxu0 0.0
    %168 = vmatprep.subr.mxu0 0.0
    %169 = vmatpush1.msra.mxu0 0.0
    %170 = vmatprep.subr.mxu0 0.0
    %171 = vmatpush1.msra.mxu0 0.0
    %172 = vmatprep.subr.mxu0 0.0
    %173 = vmatpush1.msra.mxu0 0.0
    %174 = vmatprep.subr.mxu0 0.0
    %175 = vmatpush1.msra.mxu0 0.0
    %176 = vmatprep.subr.mxu0 0.0
    %177 = vmatpush1.msra.mxu0 0.0
    %178 = vmatprep.subr.mxu0 0.0
    %179 = vmatpush1.msra.mxu0 0.0
    %180 = vmatprep.subr.mxu0 0.0
    %181 = vmatpush1.msra.mxu0 0.0
    %182 = vmatprep.subr.mxu0 0.0
    %183 = vmatpush1.msra.mxu0 0.0
    %184 = vmatprep.subr.mxu0 0.0
    %185 = vmatpush1.msra.mxu0 0.0
    %186 = vmatprep.mubr.f32.mxu0 0.0
    %187 = vmatmul.mubr.f32.gmra.mrb[0].mxu0 %v111
    %v188 = vpop.f32.mrb[0].mxu0
    %v189 = vadd.f32 %v87, %v188
    %v190 = vpop.f32.mrb[0].mxu0
    %v191 = vadd.f32 %v91, %v190
    %192 = vmatprep.mubr.f32.mxu0 0.0
    %193 = vmatmul.mubr.f32.gmra.mrb[0].mxu0 %v114
    %v194 = vpop.f32.mrb[0].mxu0
    %v195 = vadd.f32 %v87, %v194
    %v196 = vpop.f32.mrb[0].mxu0
    %v197 = vadd.f32 %v91, %v196
    %198 = vmatprep.mubr.f32.mxu0 0.0
    %199 = vmatmul.mubr.f32.gmra.mrb[0].mxu0 %v117
    %v200 = vpop.f32.mrb[0].mxu0
    %v201 = vpop.f32.mrb[0].mxu0
    %202 = vmatprep.mubr.f32.mxu0 0.0
    %203 = vmatmul.mubr.f32.gmra.mrb[0].mxu0 %v120
    %v204 = vpop.f32.mrb[0].mxu0
    %v205 = vpop.f32.mrb[0].mxu0
    %206 = vdwg.mxu0
    %207 = vmatprep.subr.mxu0 %v65
    %208 = vmatpush1.msra.mxu0 %v64
    %209 = vmatprep.subr.mxu0 %v70
    %210 = vmatpush1.msra.mxu0 %v69
    %211 = vmatprep.subr.mxu0 %v75
    %212 = vmatpush1.msra.mxu0 %v74
    %213 = vmatprep.subr.mxu0 %v80
    %214 = vmatpush1.msra.mxu0 %v79
    %215 = vmatprep.subr.mxu0 0.0
    %216 = vmatpush1.msra.mxu0 0.0
    %217 = vmatprep.subr.mxu0 0.0
    %218 = vmatpush1.msra.mxu0 0.0
    %219 = vmatprep.subr.mxu0 0.0
    %220 = vmatpush1.msra.mxu0 0.0
    %221 = vmatprep.subr.mxu0 0.0
    %222 = vmatpush1.msra.mxu0 0.0
    %223 = vmatprep.subr.mxu0 0.0
    %224 = vmatpush1.msra.mxu0 0.0
    %225 = vmatprep.subr.mxu0 0.0
    %226 = vmatpush1.msra.mxu0 0.0
    %227 = vmatprep.subr.mxu0 0.0
    %228 = vmatpush1.msra.mxu0 0.0
    %229 = vmatprep.subr.mxu0 0.0
    %230 = vmatpush1.msra.mxu0 0.0
    %231 = vmatprep.subr.mxu0 0.0
    %232 = vmatpush1.msra.mxu0 0.0
    %233 = vmatprep.subr.mxu0 0.0
    %234 = vmatpush1.msra.mxu0 0.0
    %235 = vmatprep.subr.mxu0 0.0
    %236 = vmatpush1.msra.mxu0 0.0
    %237 = vmatprep.subr.mxu0 0.0
    %238 = vmatpush1.msra.mxu0 0.0
    %239 = vmatprep.subr.mxu0 0.0
    %240 = vmatpush1.msra.mxu0 0.0
    %241 = vmatprep.subr.mxu0 0.0
    %242 = vmatpush1.msra.mxu0 0.0
    %243 = vmatprep.subr.mxu0 0.0
    %244 = vmatpush1.msra.mxu0 0.0
    %245 = vmatprep.subr.mxu0 0.0
    %246 = vmatpush1.msra.mxu0 0.0
    %247 = vmatprep.subr.mxu0 0.0
    %248 = vmatpush1.msra.mxu0 0.0
    %249 = vmatprep.subr.mxu0 0.0
    %250 = vmatpush1.msra.mxu0 0.0
    %251 = vmatprep.subr.mxu0 0.0
    %252 = vmatpush1.msra.mxu0 0.0
    %253 = vmatprep.subr.mxu0 0.0
    %254 = vmatpush1.msra.mxu0 0.0
    %255 = vmatprep.subr.mxu0 0.0
    %256 = vmatpush1.msra.mxu0 0.0
    %257 = vmatprep.subr.mxu0 0.0
    %258 = vmatpush1.msra.mxu0 0.0
    %259 = vmatprep.subr.mxu0 0.0
    %260 = vmatpush1.msra.mxu0 0.0
    %261 = vmatprep.subr.mxu0 0.0
    %262 = vmatpush1.msra.mxu0 0.0
    %263 = vmatprep.subr.mxu0 0.0
    %264 = vmatpush1.msra.mxu0 0.0
    %265 = vmatprep.subr.mxu0 0.0
    %266 = vmatpush1.msra.mxu0 0.0
    %267 = vmatprep.subr.mxu0 0.0
    %268 = vmatpush1.msra.mxu0 0.0
    %269 = vmatprep.subr.mxu0 0.0
    %270 = vmatpush1.msra.mxu0 0.0
    %271 = vmatprep.mubr.f32.mxu0 0.0
    %272 = vmatmul.mubr.f32.gmra.mrb[0].mxu0 %v111
    %v273 = vpop.f32.mrb[0].mxu0
    %v274 = vadd.f32 %v95, %v273
    %v275 = vpop.f32.mrb[0].mxu0
    %276 = vmatprep.mubr.f32.mxu0 0.0
    %277 = vmatmul.mubr.f32.gmra.mrb[0].mxu0 %v114
    %v278 = vpop.f32.mrb[0].mxu0
    %v279 = vadd.f32 %v95, %v278
    %v280 = vpop.f32.mrb[0].mxu0
    %281 = vmatprep.mubr.f32.mxu0 0.0
    %282 = vmatmul.mubr.f32.gmra.mrb[0].mxu0 %v117
    %v283 = vpop.f32.mrb[0].mxu0
    %v284 = vpop.f32.mrb[0].mxu0
    %v285 = vadd.f32 %v99, %v284
    %286 = vmatprep.mubr.f32.mxu0 0.0
    %287 = vmatmul.mubr.f32.gmra.mrb[0].mxu0 %v120
    %v288 = vpop.f32.mrb[0].mxu0
    %v289 = vpop.f32.mrb[0].mxu0
    %v290 = vadd.f32 %v99, %v289
    %291 = vdwg.mxu0
    %292 = vmatprep.subr.mxu0 0.0
    %293 = vmatpush1.msra.mxu0 %v66
    %294 = vmatprep.subr.mxu0 0.0
    %295 = vmatpush1.msra.mxu0 %v71
    %296 = vmatprep.subr.mxu0 0.0
    %297 = vmatpush1.msra.mxu0 %v76
    %298 = vmatprep.subr.mxu0 0.0
    %299 = vmatpush1.msra.mxu0 %v81
    %300 = vmatprep.subr.mxu0 0.0
    %301 = vmatpush1.msra.mxu0 0.0
    %302 = vmatprep.subr.mxu0 0.0
    %303 = vmatpush1.msra.mxu0 0.0
    %304 = vmatprep.subr.mxu0 0.0
    %305 = vmatpush1.msra.mxu0 0.0
    %306 = vmatprep.subr.mxu0 0.0
    %307 = vmatpush1.msra.mxu0 0.0
    %308 = vmatprep.subr.mxu0 0.0
    %309 = vmatpush1.msra.mxu0 0.0
    %310 = vmatprep.subr.mxu0 0.0
    %311 = vmatpush1.msra.mxu0 0.0
    %312 = vmatprep.subr.mxu0 0.0
    %313 = vmatpush1.msra.mxu0 0.0
    %314 = vmatprep.subr.mxu0 0.0
    %315 = vmatpush1.msra.mxu0 0.0
    %316 = vmatprep.subr.mxu0 0.0
    %317 = vmatpush1.msra.mxu0 0.0
    %318 = vmatprep.subr.mxu0 0.0
    %319 = vmatpush1.msra.mxu0 0.0
    %320 = vmatprep.subr.mxu0 0.0
    %321 = vmatpush1.msra.mxu0 0.0
    %322 = vmatprep.subr.mxu0 0.0
    %323 = vmatpush1.msra.mxu0 0.0
    %324 = vmatprep.subr.mxu0 0.0
    %325 = vmatpush1.msra.mxu0 0.0
    %326 = vmatprep.subr.mxu0 0.0
    %327 = vmatpush1.msra.mxu0 0.0
    %328 = vmatprep.subr.mxu0 0.0
    %329 = vmatpush1.msra.mxu0 0.0
    %330 = vmatprep.subr.mxu0 0.0
    %331 = vmatpush1.msra.mxu0 0.0
    %332 = vmatprep.subr.mxu0 0.0
    %333 = vmatpush1.msra.mxu0 0.0
    %334 = vmatprep.subr.mxu0 0.0
    %335 = vmatpush1.msra.mxu0 0.0
    %336 = vmatprep.subr.mxu0 0.0
    %337 = vmatpush1.msra.mxu0 0.0
    %338 = vmatprep.subr.mxu0 0.0
    %339 = vmatpush1.msra.mxu0 0.0
    %340 = vmatprep.subr.mxu0 0.0
    %341 = vmatpush1.msra.mxu0 0.0
    %342 = vmatprep.subr.mxu0 0.0
    %343 = vmatpush1.msra.mxu0 0.0
    %344 = vmatprep.subr.mxu0 0.0
    %345 = vmatpush1.msra.mxu0 0.0
    %346 = vmatprep.subr.mxu0 0.0
    %347 = vmatpush1.msra.mxu0 0.0
    %348 = vmatprep.subr.mxu0 0.0
    %349 = vmatpush1.msra.mxu0 0.0
    %350 = vmatprep.subr.mxu0 0.0
    %351 = vmatpush1.msra.mxu0 0.0
    %352 = vmatprep.subr.mxu0 0.0
    %353 = vmatpush1.msra.mxu0 0.0
    %354 = vmatprep.subr.mxu0 0.0
    %355 = vmatpush1.msra.mxu0 0.0
    %356 = vmatprep.mubr.f32.mxu0 0.0
    %357 = vmatmul.mubr.f32.gmra.mrb[0].mxu0 %v111
    %v358 = vpop.f32.mrb[0].mxu0
    %v359 = vpop.f32.mrb[0].mxu0
    %360 = vmatprep.mubr.f32.mxu0 0.0
    %361 = vmatmul.mubr.f32.gmra.mrb[0].mxu0 %v114
    %v362 = vpop.f32.mrb[0].mxu0
    %v363 = vpop.f32.mrb[0].mxu0
    %364 = vmatprep.mubr.f32.mxu0 0.0
    %365 = vmatmul.mubr.f32.gmra.mrb[0].mxu0 %v117
    %v366 = vpop.f32.mrb[0].mxu0
    %v367 = vadd.f32 %v103, %v366
    %v368 = vpop.f32.mrb[0].mxu0
    %369 = vmatprep.mubr.f32.mxu0 0.0
    %370 = vmatmul.mubr.f32.gmra.mrb[0].mxu0 %v120
    %v371 = vpop.f32.mrb[0].mxu0
    %v372 = vadd.f32 %v103, %v371
    %v373 = vpop.f32.mrb[0].mxu0
    %374 = vdwg.mxu0
    %vm375 = vcmask 130048
    %v377 = vsel %vm375, %v189, 0
    %v380 = vsel %vm375, %v191, 0
    %382 = vmatprep.subr.mxu0 0.0
    %383 = vmatpush1.xpose.msra.mxu0 %v380
    %384 = vmatprep.subr.mxu0 0.0
    %385 = vmatpush1.xpose.msra.mxu0 0.0
    %386 = vmatprep.subr.mxu0 0.0
    %387 = vmatpush1.xpose.msra.mxu0 0.0
    %388 = vmatprep.subr.mxu0 0.0
    %389 = vmatpush1.xpose.msra.mxu0 0.0
    %390 = vmatprep.subr.mxu0 0.0
    %391 = vmatpush1.xpose.msra.mxu0 0.0
    %392 = vmatprep.subr.mxu0 0.0
    %393 = vmatpush1.xpose.msra.mxu0 0.0
    %394 = vmatprep.subr.mxu0 0.0
    %395 = vmatpush1.xpose.msra.mxu0 0.0
    %396 = vmatprep.subr.mxu0 0.0
    %397 = vmatpush1.xpose.msra.mxu0 0.0
    %398 = vmatprep.subr.mxu0 0.0
    %399 = vmatpush1.xpose.msra.mxu0 0.0
    %400 = vmatprep.subr.mxu0 0.0
    %401 = vmatpush1.xpose.msra.mxu0 0.0
    %402 = vmatprep.subr.mxu0 0.0
    %403 = vmatpush1.xpose.msra.mxu0 0.0
    %404 = vmatprep.subr.mxu0 0.0
    %405 = vmatpush1.xpose.msra.mxu0 0.0
    %406 = vmatprep.subr.mxu0 0.0
    %407 = vmatpush1.xpose.msra.mxu0 0.0
    %408 = vmatprep.subr.mxu0 0.0
    %409 = vmatpush1.xpose.msra.mxu0 0.0
    %410 = vmatprep.subr.mxu0 0.0
    %411 = vmatpush1.xpose.msra.mxu0 0.0
    %412 = vmatprep.subr.mxu0 0.0
    %413 = vmatpush1.xpose.msra.mxu0 0.0
    %414 = vmatprep.subr.mxu0 0.0
    %415 = vmatpush1.xpose.msra.mxu0 0.0
    %416 = vmatprep.subr.mxu0 0.0
    %417 = vmatpush1.xpose.msra.mxu0 0.0
    %418 = vmatprep.subr.mxu0 0.0
    %419 = vmatpush1.xpose.msra.mxu0 0.0
    %420 = vmatprep.subr.mxu0 0.0
    %421 = vmatpush1.xpose.msra.mxu0 0.0
    %422 = vmatprep.subr.mxu0 0.0
    %423 = vmatpush1.xpose.msra.mxu0 0.0
    %424 = vmatprep.subr.mxu0 0.0
    %425 = vmatpush1.xpose.msra.mxu0 0.0
    %426 = vmatprep.subr.mxu0 0.0
    %427 = vmatpush1.xpose.msra.mxu0 0.0
    %428 = vmatprep.subr.mxu0 0.0
    %429 = vmatpush1.xpose.msra.mxu0 0.0
    %430 = vmatprep.subr.mxu0 0.0
    %431 = vmatpush1.xpose.msra.mxu0 0.0
    %432 = vmatprep.subr.mxu0 0.0
    %433 = vmatpush1.xpose.msra.mxu0 0.0
    %434 = vmatprep.subr.mxu0 0.0
    %435 = vmatpush1.xpose.msra.mxu0 0.0
    %436 = vmatprep.subr.mxu0 0.0
    %437 = vmatpush1.xpose.msra.mxu0 0.0
    %438 = vmatprep.subr.mxu0 0.0
    %439 = vmatpush1.xpose.msra.mxu0 0.0
    %440 = vmatprep.subr.mxu0 0.0
    %441 = vmatpush1.xpose.msra.mxu0 0.0
    %442 = vmatprep.subr.mxu0 0.0
    %443 = vmatpush1.xpose.msra.mxu0 0.0
    %444 = vmatprep.subr.mxu0 0.0
    %445 = vmatpush1.xpose.msra.mxu0 0.0
    %446 = vmatprep.mubr.f32.mxu0 0.0
    %447 = vmatmul.mubr.f32.gmra.mrb[0].mxu0 %v377
    %v448 = vpop.f32.mrb[0].mxu0
    %v449 = vadd.f32 %v45, %v448
    %v450 = vpop.f32.mrb[0].mxu0
    %451 = vdwg.mxu0
    %v453 = vsel %vm375, %v195, 0
    %v456 = vsel %vm375, %v197, 0
    %458 = vmatprep.subr.mxu0 0.0
    %459 = vmatpush1.xpose.msra.mxu0 %v456
    %460 = vmatprep.subr.mxu0 0.0
    %461 = vmatpush1.xpose.msra.mxu0 0.0
    %462 = vmatprep.subr.mxu0 0.0
    %463 = vmatpush1.xpose.msra.mxu0 0.0
    %464 = vmatprep.subr.mxu0 0.0
    %465 = vmatpush1.xpose.msra.mxu0 0.0
    %466 = vmatprep.subr.mxu0 0.0
    %467 = vmatpush1.xpose.msra.mxu0 0.0
    %468 = vmatprep.subr.mxu0 0.0
    %469 = vmatpush1.xpose.msra.mxu0 0.0
    %470 = vmatprep.subr.mxu0 0.0
    %471 = vmatpush1.xpose.msra.mxu0 0.0
    %472 = vmatprep.subr.mxu0 0.0
    %473 = vmatpush1.xpose.msra.mxu0 0.0
    %474 = vmatprep.subr.mxu0 0.0
    %475 = vmatpush1.xpose.msra.mxu0 0.0
    %476 = vmatprep.subr.mxu0 0.0
    %477 = vmatpush1.xpose.msra.mxu0 0.0
    %478 = vmatprep.subr.mxu0 0.0
    %479 = vmatpush1.xpose.msra.mxu0 0.0
    %480 = vmatprep.subr.mxu0 0.0
    %481 = vmatpush1.xpose.msra.mxu0 0.0
    %482 = vmatprep.subr.mxu0 0.0
    %483 = vmatpush1.xpose.msra.mxu0 0.0
    %484 = vmatprep.subr.mxu0 0.0
    %485 = vmatpush1.xpose.msra.mxu0 0.0
    %486 = vmatprep.subr.mxu0 0.0
    %487 = vmatpush1.xpose.msra.mxu0 0.0
    %488 = vmatprep.subr.mxu0 0.0
    %489 = vmatpush1.xpose.msra.mxu0 0.0
    %490 = vmatprep.subr.mxu0 0.0
    %491 = vmatpush1.xpose.msra.mxu0 0.0
    %492 = vmatprep.subr.mxu0 0.0
    %493 = vmatpush1.xpose.msra.mxu0 0.0
    %494 = vmatprep.subr.mxu0 0.0
    %495 = vmatpush1.xpose.msra.mxu0 0.0
    %496 = vmatprep.subr.mxu0 0.0
    %497 = vmatpush1.xpose.msra.mxu0 0.0
    %498 = vmatprep.subr.mxu0 0.0
    %499 = vmatpush1.xpose.msra.mxu0 0.0
    %500 = vmatprep.subr.mxu0 0.0
    %501 = vmatpush1.xpose.msra.mxu0 0.0
    %502 = vmatprep.subr.mxu0 0.0
    %503 = vmatpush1.xpose.msra.mxu0 0.0
    %504 = vmatprep.subr.mxu0 0.0
    %505 = vmatpush1.xpose.msra.mxu0 0.0
    %506 = vmatprep.subr.mxu0 0.0
    %507 = vmatpush1.xpose.msra.mxu0 0.0
    %508 = vmatprep.subr.mxu0 0.0
    %509 = vmatpush1.xpose.msra.mxu0 0.0
    %510 = vmatprep.subr.mxu0 0.0
    %511 = vmatpush1.xpose.msra.mxu0 0.0
    %512 = vmatprep.subr.mxu0 0.0
    %513 = vmatpush1.xpose.msra.mxu0 0.0
    %514 = vmatprep.subr.mxu0 0.0
    %515 = vmatpush1.xpose.msra.mxu0 0.0
    %516 = vmatprep.subr.mxu0 0.0
    %517 = vmatpush1.xpose.msra.mxu0 0.0
    %518 = vmatprep.subr.mxu0 0.0
    %519 = vmatpush1.xpose.msra.mxu0 0.0
    %520 = vmatprep.subr.mxu0 0.0
    %521 = vmatpush1.xpose.msra.mxu0 0.0
    %522 = vmatprep.mubr.f32.mxu0 0.0
    %523 = vmatmul.mubr.f32.gmra.mrb[0].mxu0 %v453
    %v524 = vpop.f32.mrb[0].mxu0
    %v525 = vadd.f32 %v46, %v524
    %v526 = vpop.f32.mrb[0].mxu0
    %527 = vdwg.mxu0
    %vm528 = vcmask 64512
    %v529 = vsel %vm528, %v449, -inf
    %530 = vmax.xlane.f32.xlu0 %v529
    %v531 = vpop.xlane.xlu0 %530
    %v532 = vsel %vm528, %v525, -inf
    %533 = vmax.xlane.f32.xlu0 %v532
    %v534 = vpop.xlane.xlu0 %533
    %v535 = vsub.f32 %v449, %v531
    %v536 = vsub.f32 %v525, %v534
    %v537 = vmul.f32 %v535, 1.442695
    %v538 = vpow.pop %v537
    %v539 = vmul.f32 %v536, 1.442695
    %v540 = vpow.pop %v539
    %v541 = vsel %vm528, %v538, 0.0
    %542 = vadd.xlane.f32.xlu0 %v541
    %v543 = vpop.xlane.xlu0 %542
    %v544 = vsel %vm528, %v540, 0.0
    %545 = vadd.xlane.f32.xlu0 %v544
    %v546 = vpop.xlane.xlu0 %545
    %v547 = vrcp.pop %v543
    %v548 = vrcp.pop %v546
    %v549 = vmul.f32 %v538, %v547
    %v550 = vmul.f32 %v540, %v548
    %551 = vst.msk [vmem:[#allocation4] sm:$0xff] %vm528, %v549
    %552 = vst.msk [vmem:[#allocation4 + $0x20] sm:$0xff] %vm528, %v550
    %v554 = vsel %vm528, %v549, 0
    %556 = vmatprep.subr.mxu0 0.0
    %557 = vmatpush1.msra.mxu0 %v274
    %558 = vmatprep.subr.mxu0 0.0
    %559 = vmatpush1.msra.mxu0 0.0
    %560 = vmatprep.subr.mxu0 0.0
    %561 = vmatpush1.msra.mxu0 0.0
    %562 = vmatprep.subr.mxu0 0.0
    %563 = vmatpush1.msra.mxu0 0.0
    %564 = vmatprep.subr.mxu0 0.0
    %565 = vmatpush1.msra.mxu0 0.0
    %566 = vmatprep.subr.mxu0 0.0
    %567 = vmatpush1.msra.mxu0 0.0
    %568 = vmatprep.subr.mxu0 0.0
    %569 = vmatpush1.msra.mxu0 0.0
    %570 = vmatprep.subr.mxu0 0.0
    %571 = vmatpush1.msra.mxu0 0.0
    %572 = vmatprep.subr.mxu0 0.0
    %573 = vmatpush1.msra.mxu0 0.0
    %574 = vmatprep.subr.mxu0 0.0
    %575 = vmatpush1.msra.mxu0 0.0
    %576 = vmatprep.subr.mxu0 0.0
    %577 = vmatpush1.msra.mxu0 0.0
    %578 = vmatprep.subr.mxu0 0.0
    %579 = vmatpush1.msra.mxu0 0.0
    %580 = vmatprep.subr.mxu0 0.0
    %581 = vmatpush1.msra.mxu0 0.0
    %582 = vmatprep.subr.mxu0 0.0
    %583 = vmatpush1.msra.mxu0 0.0
    %584 = vmatprep.subr.mxu0 0.0
    %585 = vmatpush1.msra.mxu0 0.0
    %586 = vmatprep.subr.mxu0 0.0
    %587 = vmatpush1.msra.mxu0 0.0
    %588 = vmatprep.subr.mxu0 0.0
    %589 = vmatpush1.msra.mxu0 0.0
    %590 = vmatprep.subr.mxu0 0.0
    %591 = vmatpush1.msra.mxu0 0.0
    %592 = vmatprep.subr.mxu0 0.0
    %593 = vmatpush1.msra.mxu0 0.0
    %594 = vmatprep.subr.mxu0 0.0
    %595 = vmatpush1.msra.mxu0 0.0
    %596 = vmatprep.subr.mxu0 0.0
    %597 = vmatpush1.msra.mxu0 0.0
    %598 = vmatprep.subr.mxu0 0.0
    %599 = vmatpush1.msra.mxu0 0.0
    %600 = vmatprep.subr.mxu0 0.0
    %601 = vmatpush1.msra.mxu0 0.0
    %602 = vmatprep.subr.mxu0 0.0
    %603 = vmatpush1.msra.mxu0 0.0
    %604 = vmatprep.subr.mxu0 0.0
    %605 = vmatpush1.msra.mxu0 0.0
    %606 = vmatprep.subr.mxu0 0.0
    %607 = vmatpush1.msra.mxu0 0.0
    %608 = vmatprep.subr.mxu0 0.0
    %609 = vmatpush1.msra.mxu0 0.0
    %610 = vmatprep.subr.mxu0 0.0
    %611 = vmatpush1.msra.mxu0 0.0
    %612 = vmatprep.subr.mxu0 0.0
    %613 = vmatpush1.msra.mxu0 0.0
    %614 = vmatprep.subr.mxu0 0.0
    %615 = vmatpush1.msra.mxu0 0.0
    %616 = vmatprep.subr.mxu0 0.0
    %617 = vmatpush1.msra.mxu0 0.0
    %618 = vmatprep.subr.mxu0 0.0
    %619 = vmatpush1.msra.mxu0 0.0
    %620 = vmatprep.mubr.f32.mxu0 0.0
    %621 = vmatmul.mubr.f32.gmra.mrb[0].mxu0 %v554
    %v622 = vpop.f32.mrb[0].mxu0
    %v623 = vadd.f32 0.0, %v622
    %v624 = vpop.f32.mrb[0].mxu0
    %625 = vdwg.mxu0
    %v627 = vsel %vm528, %v550, 0
    %629 = vmatprep.subr.mxu0 0.0
    %630 = vmatpush1.msra.mxu0 %v279
    %631 = vmatprep.subr.mxu0 0.0
    %632 = vmatpush1.msra.mxu0 0.0
    %633 = vmatprep.subr.mxu0 0.0
    %634 = vmatpush1.msra.mxu0 0.0
    %635 = vmatprep.subr.mxu0 0.0
    %636 = vmatpush1.msra.mxu0 0.0
    %637 = vmatprep.subr.mxu0 0.0
    %638 = vmatpush1.msra.mxu0 0.0
    %639 = vmatprep.subr.mxu0 0.0
    %640 = vmatpush1.msra.mxu0 0.0
    %641 = vmatprep.subr.mxu0 0.0
    %642 = vmatpush1.msra.mxu0 0.0
    %643 = vmatprep.subr.mxu0 0.0
    %644 = vmatpush1.msra.mxu0 0.0
    %645 = vmatprep.subr.mxu0 0.0
    %646 = vmatpush1.msra.mxu0 0.0
    %647 = vmatprep.subr.mxu0 0.0
    %648 = vmatpush1.msra.mxu0 0.0
    %649 = vmatprep.subr.mxu0 0.0
    %650 = vmatpush1.msra.mxu0 0.0
    %651 = vmatprep.subr.mxu0 0.0
    %652 = vmatpush1.msra.mxu0 0.0
    %653 = vmatprep.subr.mxu0 0.0
    %654 = vmatpush1.msra.mxu0 0.0
    %655 = vmatprep.subr.mxu0 0.0
    %656 = vmatpush1.msra.mxu0 0.0
    %657 = vmatprep.subr.mxu0 0.0
    %658 = vmatpush1.msra.mxu0 0.0
    %659 = vmatprep.subr.mxu0 0.0
    %660 = vmatpush1.msra.mxu0 0.0
    %661 = vmatprep.subr.mxu0 0.0
    %662 = vmatpush1.msra.mxu0 0.0
    %663 = vmatprep.subr.mxu0 0.0
    %664 = vmatpush1.msra.mxu0 0.0
    %665 = vmatprep.subr.mxu0 0.0
    %666 = vmatpush1.msra.mxu0 0.0
    %667 = vmatprep.subr.mxu0 0.0
    %668 = vmatpush1.msra.mxu0 0.0
    %669 = vmatprep.subr.mxu0 0.0
    %670 = vmatpush1.msra.mxu0 0.0
    %671 = vmatprep.subr.mxu0 0.0
    %672 = vmatpush1.msra.mxu0 0.0
    %673 = vmatprep.subr.mxu0 0.0
    %674 = vmatpush1.msra.mxu0 0.0
    %675 = vmatprep.subr.mxu0 0.0
    %676 = vmatpush1.msra.mxu0 0.0
    %677 = vmatprep.subr.mxu0 0.0
    %678 = vmatpush1.msra.mxu0 0.0
    %679 = vmatprep.subr.mxu0 0.0
    %680 = vmatpush1.msra.mxu0 0.0
    %681 = vmatprep.subr.mxu0 0.0
    %682 = vmatpush1.msra.mxu0 0.0
    %683 = vmatprep.subr.mxu0 0.0
    %684 = vmatpush1.msra.mxu0 0.0
    %685 = vmatprep.subr.mxu0 0.0
    %686 = vmatpush1.msra.mxu0 0.0
    %687 = vmatprep.subr.mxu0 0.0
    %688 = vmatpush1.msra.mxu0 0.0
    %689 = vmatprep.subr.mxu0 0.0
    %690 = vmatpush1.msra.mxu0 0.0
    %691 = vmatprep.subr.mxu0 0.0
    %692 = vmatpush1.msra.mxu0 0.0
    %693 = vmatprep.mubr.f32.mxu0 0.0
    %694 = vmatmul.mubr.f32.gmra.mrb[0].mxu0 %v627
    %v695 = vpop.f32.mrb[0].mxu0
    %v696 = vadd.f32 0.0, %v695
    %v697 = vpop.f32.mrb[0].mxu0
    %698 = vdwg.mxu0
    %699 = vrot.lane.b32.xlu0 %v189, 112
    %v700 = vpop.permute.xlu0 %699
    %701 = vrot.lane.b32.xlu0 %v191, 112
    %v702 = vpop.permute.xlu0 %701
    %v703 = vsel %vm375, %v700, 0
    %v705 = vsel %vm375, %v702, 0
    %707 = vmatprep.subr.mxu0 0.0
    %708 = vmatpush1.xpose.msra.mxu0 %v705
    %709 = vmatprep.subr.mxu0 0.0
    %710 = vmatpush1.xpose.msra.mxu0 0.0
    %711 = vmatprep.subr.mxu0 0.0
    %712 = vmatpush1.xpose.msra.mxu0 0.0
    %713 = vmatprep.subr.mxu0 0.0
    %714 = vmatpush1.xpose.msra.mxu0 0.0
    %715 = vmatprep.subr.mxu0 0.0
    %716 = vmatpush1.xpose.msra.mxu0 0.0
    %717 = vmatprep.subr.mxu0 0.0
    %718 = vmatpush1.xpose.msra.mxu0 0.0
    %719 = vmatprep.subr.mxu0 0.0
    %720 = vmatpush1.xpose.msra.mxu0 0.0
    %721 = vmatprep.subr.mxu0 0.0
    %722 = vmatpush1.xpose.msra.mxu0 0.0
    %723 = vmatprep.subr.mxu0 0.0
    %724 = vmatpush1.xpose.msra.mxu0 0.0
    %725 = vmatprep.subr.mxu0 0.0
    %726 = vmatpush1.xpose.msra.mxu0 0.0
    %727 = vmatprep.subr.mxu0 0.0
    %728 = vmatpush1.xpose.msra.mxu0 0.0
    %729 = vmatprep.subr.mxu0 0.0
    %730 = vmatpush1.xpose.msra.mxu0 0.0
    %731 = vmatprep.subr.mxu0 0.0
    %732 = vmatpush1.xpose.msra.mxu0 0.0
    %733 = vmatprep.subr.mxu0 0.0
    %734 = vmatpush1.xpose.msra.mxu0 0.0
    %735 = vmatprep.subr.mxu0 0.0
    %736 = vmatpush1.xpose.msra.mxu0 0.0
    %737 = vmatprep.subr.mxu0 0.0
    %738 = vmatpush1.xpose.msra.mxu0 0.0
    %739 = vmatprep.subr.mxu0 0.0
    %740 = vmatpush1.xpose.msra.mxu0 0.0
    %741 = vmatprep.subr.mxu0 0.0
    %742 = vmatpush1.xpose.msra.mxu0 0.0
    %743 = vmatprep.subr.mxu0 0.0
    %744 = vmatpush1.xpose.msra.mxu0 0.0
    %745 = vmatprep.subr.mxu0 0.0
    %746 = vmatpush1.xpose.msra.mxu0 0.0
    %747 = vmatprep.subr.mxu0 0.0
    %748 = vmatpush1.xpose.msra.mxu0 0.0
    %749 = vmatprep.subr.mxu0 0.0
    %750 = vmatpush1.xpose.msra.mxu0 0.0
    %751 = vmatprep.subr.mxu0 0.0
    %752 = vmatpush1.xpose.msra.mxu0 0.0
    %753 = vmatprep.subr.mxu0 0.0
    %754 = vmatpush1.xpose.msra.mxu0 0.0
    %755 = vmatprep.subr.mxu0 0.0
    %756 = vmatpush1.xpose.msra.mxu0 0.0
    %757 = vmatprep.subr.mxu0 0.0
    %758 = vmatpush1.xpose.msra.mxu0 0.0
    %759 = vmatprep.subr.mxu0 0.0
    %760 = vmatpush1.xpose.msra.mxu0 0.0
    %761 = vmatprep.subr.mxu0 0.0
    %762 = vmatpush1.xpose.msra.mxu0 0.0
    %763 = vmatprep.subr.mxu0 0.0
    %764 = vmatpush1.xpose.msra.mxu0 0.0
    %765 = vmatprep.subr.mxu0 0.0
    %766 = vmatpush1.xpose.msra.mxu0 0.0
    %767 = vmatprep.subr.mxu0 0.0
    %768 = vmatpush1.xpose.msra.mxu0 0.0
    %769 = vmatprep.subr.mxu0 0.0
    %770 = vmatpush1.xpose.msra.mxu0 0.0
    %771 = vmatprep.mubr.f32.mxu0 0.0
    %772 = vmatmul.mubr.f32.gmra.mrb[0].mxu0 %v703
    %v773 = vpop.f32.mrb[0].mxu0
    %v774 = vadd.f32 %v45, %v773
    %v775 = vpop.f32.mrb[0].mxu0
    %776 = vdwg.mxu0
    %777 = vrot.lane.b32.xlu0 %v195, 112
    %v778 = vpop.permute.xlu0 %777
    %779 = vrot.lane.b32.xlu0 %v197, 112
    %v780 = vpop.permute.xlu0 %779
    %v781 = vsel %vm375, %v778, 0
    %v783 = vsel %vm375, %v780, 0
    %785 = vmatprep.subr.mxu0 0.0
    %786 = vmatpush1.xpose.msra.mxu0 %v783
    %787 = vmatprep.subr.mxu0 0.0
    %788 = vmatpush1.xpose.msra.mxu0 0.0
    %789 = vmatprep.subr.mxu0 0.0
    %790 = vmatpush1.xpose.msra.mxu0 0.0
    %791 = vmatprep.subr.mxu0 0.0
    %792 = vmatpush1.xpose.msra.mxu0 0.0
    %793 = vmatprep.subr.mxu0 0.0
    %794 = vmatpush1.xpose.msra.mxu0 0.0
    %795 = vmatprep.subr.mxu0 0.0
    %796 = vmatpush1.xpose.msra.mxu0 0.0
    %797 = vmatprep.subr.mxu0 0.0
    %798 = vmatpush1.xpose.msra.mxu0 0.0
    %799 = vmatprep.subr.mxu0 0.0
    %800 = vmatpush1.xpose.msra.mxu0 0.0
    %801 = vmatprep.subr.mxu0 0.0
    %802 = vmatpush1.xpose.msra.mxu0 0.0
    %803 = vmatprep.subr.mxu0 0.0
    %804 = vmatpush1.xpose.msra.mxu0 0.0
    %805 = vmatprep.subr.mxu0 0.0
    %806 = vmatpush1.xpose.msra.mxu0 0.0
    %807 = vmatprep.subr.mxu0 0.0
    %808 = vmatpush1.xpose.msra.mxu0 0.0
    %809 = vmatprep.subr.mxu0 0.0
    %810 = vmatpush1.xpose.msra.mxu0 0.0
    %811 = vmatprep.subr.mxu0 0.0
    %812 = vmatpush1.xpose.msra.mxu0 0.0
    %813 = vmatprep.subr.mxu0 0.0
    %814 = vmatpush1.xpose.msra.mxu0 0.0
    %815 = vmatprep.subr.mxu0 0.0
    %816 = vmatpush1.xpose.msra.mxu0 0.0
    %817 = vmatprep.subr.mxu0 0.0
    %818 = vmatpush1.xpose.msra.mxu0 0.0
    %819 = vmatprep.subr.mxu0 0.0
    %820 = vmatpush1.xpose.msra.mxu0 0.0
    %821 = vmatprep.subr.mxu0 0.0
    %822 = vmatpush1.xpose.msra.mxu0 0.0
    %823 = vmatprep.subr.mxu0 0.0
    %824 = vmatpush1.xpose.msra.mxu0 0.0
    %825 = vmatprep.subr.mxu0 0.0
    %826 = vmatpush1.xpose.msra.mxu0 0.0
    %827 = vmatprep.subr.mxu0 0.0
    %828 = vmatpush1.xpose.msra.mxu0 0.0
    %829 = vmatprep.subr.mxu0 0.0
    %830 = vmatpush1.xpose.msra.mxu0 0.0
    %831 = vmatprep.subr.mxu0 0.0
    %832 = vmatpush1.xpose.msra.mxu0 0.0
    %833 = vmatprep.subr.mxu0 0.0
    %834 = vmatpush1.xpose.msra.mxu0 0.0
    %835 = vmatprep.subr.mxu0 0.0
    %836 = vmatpush1.xpose.msra.mxu0 0.0
    %837 = vmatprep.subr.mxu0 0.0
    %838 = vmatpush1.xpose.msra.mxu0 0.0
    %839 = vmatprep.subr.mxu0 0.0
    %840 = vmatpush1.xpose.msra.mxu0 0.0
    %841 = vmatprep.subr.mxu0 0.0
    %842 = vmatpush1.xpose.msra.mxu0 0.0
    %843 = vmatprep.subr.mxu0 0.0
    %844 = vmatpush1.xpose.msra.mxu0 0.0
    %845 = vmatprep.subr.mxu0 0.0
    %846 = vmatpush1.xpose.msra.mxu0 0.0
    %847 = vmatprep.subr.mxu0 0.0
    %848 = vmatpush1.xpose.msra.mxu0 0.0
    %849 = vmatprep.mubr.f32.mxu0 0.0
    %850 = vmatmul.mubr.f32.gmra.mrb[0].mxu0 %v781
    %v851 = vpop.f32.mrb[0].mxu0
    %v852 = vadd.f32 %v46, %v851
    %v853 = vpop.f32.mrb[0].mxu0
    %854 = vdwg.mxu0
    %v855 = vsel %vm528, %v774, -inf
    %856 = vmax.xlane.f32.xlu0 %v855
    %v857 = vpop.xlane.xlu0 %856
    %v858 = vsel %vm528, %v852, -inf
    %859 = vmax.xlane.f32.xlu0 %v858
    %v860 = vpop.xlane.xlu0 %859
    %v861 = vsub.f32 %v774, %v857
    %v862 = vsub.f32 %v852, %v860
    %v863 = vmul.f32 %v861, 1.442695
    %v864 = vpow.pop %v863
    %v865 = vmul.f32 %v862, 1.442695
    %v866 = vpow.pop %v865
    %v867 = vsel %vm528, %v864, 0.0
    %868 = vadd.xlane.f32.xlu0 %v867
    %v869 = vpop.xlane.xlu0 %868
    %v870 = vsel %vm528, %v866, 0.0
    %871 = vadd.xlane.f32.xlu0 %v870
    %v872 = vpop.xlane.xlu0 %871
    %v873 = vrcp.pop %v869
    %v874 = vrcp.pop %v872
    %v875 = vmul.f32 %v864, %v873
    %v876 = vmul.f32 %v866, %v874
    %s877 = scalar_lea.vmem [#allocation4], 8
    %878 = vst.msk [vmem:[%s877] sm:$0xff] %vm528, %v875
    %879 = vst.msk [vmem:[%s877 + $0x20] sm:$0xff] %vm528, %v876
    %881 = vrot.lane.b32.xlu0 %v274, 112
    %v882 = vpop.permute.xlu0 %881
    %v885 = vsel %vm528, %v875, 0
    %887 = vmatprep.subr.mxu0 0.0
    %888 = vmatpush1.msra.mxu0 %v882
    %889 = vmatprep.subr.mxu0 0.0
    %890 = vmatpush1.msra.mxu0 0.0
    %891 = vmatprep.subr.mxu0 0.0
    %892 = vmatpush1.msra.mxu0 0.0
    %893 = vmatprep.subr.mxu0 0.0
    %894 = vmatpush1.msra.mxu0 0.0
    %895 = vmatprep.subr.mxu0 0.0
    %896 = vmatpush1.msra.mxu0 0.0
    %897 = vmatprep.subr.mxu0 0.0
    %898 = vmatpush1.msra.mxu0 0.0
    %899 = vmatprep.subr.mxu0 0.0
    %900 = vmatpush1.msra.mxu0 0.0
    %901 = vmatprep.subr.mxu0 0.0
    %902 = vmatpush1.msra.mxu0 0.0
    %903 = vmatprep.subr.mxu0 0.0
    %904 = vmatpush1.msra.mxu0 0.0
    %905 = vmatprep.subr.mxu0 0.0
    %906 = vmatpush1.msra.mxu0 0.0
    %907 = vmatprep.subr.mxu0 0.0
    %908 = vmatpush1.msra.mxu0 0.0
    %909 = vmatprep.subr.mxu0 0.0
    %910 = vmatpush1.msra.mxu0 0.0
    %911 = vmatprep.subr.mxu0 0.0
    %912 = vmatpush1.msra.mxu0 0.0
    %913 = vmatprep.subr.mxu0 0.0
    %914 = vmatpush1.msra.mxu0 0.0
    %915 = vmatprep.subr.mxu0 0.0
    %916 = vmatpush1.msra.mxu0 0.0
    %917 = vmatprep.subr.mxu0 0.0
    %918 = vmatpush1.msra.mxu0 0.0
    %919 = vmatprep.subr.mxu0 0.0
    %920 = vmatpush1.msra.mxu0 0.0
    %921 = vmatprep.subr.mxu0 0.0
    %922 = vmatpush1.msra.mxu0 0.0
    %923 = vmatprep.subr.mxu0 0.0
    %924 = vmatpush1.msra.mxu0 0.0
    %925 = vmatprep.subr.mxu0 0.0
    %926 = vmatpush1.msra.mxu0 0.0
    %927 = vmatprep.subr.mxu0 0.0
    %928 = vmatpush1.msra.mxu0 0.0
    %929 = vmatprep.subr.mxu0 0.0
    %930 = vmatpush1.msra.mxu0 0.0
    %931 = vmatprep.subr.mxu0 0.0
    %932 = vmatpush1.msra.mxu0 0.0
    %933 = vmatprep.subr.mxu0 0.0
    %934 = vmatpush1.msra.mxu0 0.0
    %935 = vmatprep.subr.mxu0 0.0
    %936 = vmatpush1.msra.mxu0 0.0
    %937 = vmatprep.subr.mxu0 0.0
    %938 = vmatpush1.msra.mxu0 0.0
    %939 = vmatprep.subr.mxu0 0.0
    %940 = vmatpush1.msra.mxu0 0.0
    %941 = vmatprep.subr.mxu0 0.0
    %942 = vmatpush1.msra.mxu0 0.0
    %943 = vmatprep.subr.mxu0 0.0
    %944 = vmatpush1.msra.mxu0 0.0
    %945 = vmatprep.subr.mxu0 0.0
    %946 = vmatpush1.msra.mxu0 0.0
    %947 = vmatprep.subr.mxu0 0.0
    %948 = vmatpush1.msra.mxu0 0.0
    %949 = vmatprep.subr.mxu0 0.0
    %950 = vmatpush1.msra.mxu0 0.0
    %951 = vmatprep.mubr.f32.mxu0 0.0
    %952 = vmatmul.mubr.f32.gmra.mrb[0].mxu0 %v885
    %v953 = vpop.f32.mrb[0].mxu0
    %v954 = vadd.f32 0.0, %v953
    %v955 = vpop.f32.mrb[0].mxu0
    %956 = vdwg.mxu0
    %958 = vrot.lane.b32.xlu0 %v279, 112
    %v959 = vpop.permute.xlu0 %958
    %v962 = vsel %vm528, %v876, 0
    %964 = vmatprep.subr.mxu0 0.0
    %965 = vmatpush1.msra.mxu0 %v959
    %966 = vmatprep.subr.mxu0 0.0
    %967 = vmatpush1.msra.mxu0 0.0
    %968 = vmatprep.subr.mxu0 0.0
    %969 = vmatpush1.msra.mxu0 0.0
    %970 = vmatprep.subr.mxu0 0.0
    %971 = vmatpush1.msra.mxu0 0.0
    %972 = vmatprep.subr.mxu0 0.0
    %973 = vmatpush1.msra.mxu0 0.0
    %974 = vmatprep.subr.mxu0 0.0
    %975 = vmatpush1.msra.mxu0 0.0
    %976 = vmatprep.subr.mxu0 0.0
    %977 = vmatpush1.msra.mxu0 0.0
    %978 = vmatprep.subr.mxu0 0.0
    %979 = vmatpush1.msra.mxu0 0.0
    %980 = vmatprep.subr.mxu0 0.0
    %981 = vmatpush1.msra.mxu0 0.0
    %982 = vmatprep.subr.mxu0 0.0
    %983 = vmatpush1.msra.mxu0 0.0
    %984 = vmatprep.subr.mxu0 0.0
    %985 = vmatpush1.msra.mxu0 0.0
    %986 = vmatprep.subr.mxu0 0.0
    %987 = vmatpush1.msra.mxu0 0.0
    %988 = vmatprep.subr.mxu0 0.0
    %989 = vmatpush1.msra.mxu0 0.0
    %990 = vmatprep.subr.mxu0 0.0
    %991 = vmatpush1.msra.mxu0 0.0
    %992 = vmatprep.subr.mxu0 0.0
    %993 = vmatpush1.msra.mxu0 0.0
    %994 = vmatprep.subr.mxu0 0.0
    %995 = vmatpush1.msra.mxu0 0.0
    %996 = vmatprep.subr.mxu0 0.0
    %997 = vmatpush1.msra.mxu0 0.0
    %998 = vmatprep.subr.mxu0 0.0
    %999 = vmatpush1.msra.mxu0 0.0
    %1000 = vmatprep.subr.mxu0 0.0
    %1001 = vmatpush1.msra.mxu0 0.0
    %1002 = vmatprep.subr.mxu0 0.0
    %1003 = vmatpush1.msra.mxu0 0.0
    %1004 = vmatprep.subr.mxu0 0.0
    %1005 = vmatpush1.msra.mxu0 0.0
    %1006 = vmatprep.subr.mxu0 0.0
    %1007 = vmatpush1.msra.mxu0 0.0
    %1008 = vmatprep.subr.mxu0 0.0
    %1009 = vmatpush1.msra.mxu0 0.0
    %1010 = vmatprep.subr.mxu0 0.0
    %1011 = vmatpush1.msra.mxu0 0.0
    %1012 = vmatprep.subr.mxu0 0.0
    %1013 = vmatpush1.msra.mxu0 0.0
    %1014 = vmatprep.subr.mxu0 0.0
    %1015 = vmatpush1.msra.mxu0 0.0
    %1016 = vmatprep.subr.mxu0 0.0
    %1017 = vmatpush1.msra.mxu0 0.0
    %1018 = vmatprep.subr.mxu0 0.0
    %1019 = vmatpush1.msra.mxu0 0.0
    %1020 = vmatprep.subr.mxu0 0.0
    %1021 = vmatpush1.msra.mxu0 0.0
    %1022 = vmatprep.subr.mxu0 0.0
    %1023 = vmatpush1.msra.mxu0 0.0
    %1024 = vmatprep.subr.mxu0 0.0
    %1025 = vmatpush1.msra.mxu0 0.0
    %1026 = vmatprep.subr.mxu0 0.0
    %1027 = vmatpush1.msra.mxu0 0.0
    %1028 = vmatprep.mubr.f32.mxu0 0.0
    %1029 = vmatmul.mubr.f32.gmra.mrb[0].mxu0 %v962
    %v1030 = vpop.f32.mrb[0].mxu0
    %v1031 = vadd.f32 0.0, %v1030
    %v1032 = vpop.f32.mrb[0].mxu0
    %1033 = vdwg.mxu0
    %1034 = vrot.lane.b32.xlu0 %v189, 96
    %v1035 = vpop.permute.xlu0 %1034
    %1036 = vrot.lane.b32.xlu0 %v191, 96
    %v1037 = vpop.permute.xlu0 %1036
    %v1038 = vsel %vm375, %v1035, 0
    %v1040 = vsel %vm375, %v1037, 0
    %1042 = vmatprep.subr.mxu0 0.0
    %1043 = vmatpush1.xpose.msra.mxu0 %v1040
    %1044 = vmatprep.subr.mxu0 0.0
    %1045 = vmatpush1.xpose.msra.mxu0 0.0
    %1046 = vmatprep.subr.mxu0 0.0
    %1047 = vmatpush1.xpose.msra.mxu0 0.0
    %1048 = vmatprep.subr.mxu0 0.0
    %1049 = vmatpush1.xpose.msra.mxu0 0.0
    %1050 = vmatprep.subr.mxu0 0.0
    %1051 = vmatpush1.xpose.msra.mxu0 0.0
    %1052 = vmatprep.subr.mxu0 0.0
    %1053 = vmatpush1.xpose.msra.mxu0 0.0
    %1054 = vmatprep.subr.mxu0 0.0
    %1055 = vmatpush1.xpose.msra.mxu0 0.0
    %1056 = vmatprep.subr.mxu0 0.0
    %1057 = vmatpush1.xpose.msra.mxu0 0.0
    %1058 = vmatprep.subr.mxu0 0.0
    %1059 = vmatpush1.xpose.msra.mxu0 0.0
    %1060 = vmatprep.subr.mxu0 0.0
    %1061 = vmatpush1.xpose.msra.mxu0 0.0
    %1062 = vmatprep.subr.mxu0 0.0
    %1063 = vmatpush1.xpose.msra.mxu0 0.0
    %1064 = vmatprep.subr.mxu0 0.0
    %1065 = vmatpush1.xpose.msra.mxu0 0.0
    %1066 = vmatprep.subr.mxu0 0.0
    %1067 = vmatpush1.xpose.msra.mxu0 0.0
    %1068 = vmatprep.subr.mxu0 0.0
    %1069 = vmatpush1.xpose.msra.mxu0 0.0
    %1070 = vmatprep.subr.mxu0 0.0
    %1071 = vmatpush1.xpose.msra.mxu0 0.0
    %1072 = vmatprep.subr.mxu0 0.0
    %1073 = vmatpush1.xpose.msra.mxu0 0.0
    %1074 = vmatprep.subr.mxu0 0.0
    %1075 = vmatpush1.xpose.msra.mxu0 0.0
    %1076 = vmatprep.subr.mxu0 0.0
    %1077 = vmatpush1.xpose.msra.mxu0 0.0
    %1078 = vmatprep.subr.mxu0 0.0
    %1079 = vmatpush1.xpose.msra.mxu0 0.0
    %1080 = vmatprep.subr.mxu0 0.0
    %1081 = vmatpush1.xpose.msra.mxu0 0.0
    %1082 = vmatprep.subr.mxu0 0.0
    %1083 = vmatpush1.xpose.msra.mxu0 0.0
    %1084 = vmatprep.subr.mxu0 0.0
    %1085 = vmatpush1.xpose.msra.mxu0 0.0
    %1086 = vmatprep.subr.mxu0 0.0
    %1087 = vmatpush1.xpose.msra.mxu0 0.0
    %1088 = vmatprep.subr.mxu0 0.0
    %1089 = vmatpush1.xpose.msra.mxu0 0.0
    %1090 = vmatprep.subr.mxu0 0.0
    %1091 = vmatpush1.xpose.msra.mxu0 0.0
    %1092 = vmatprep.subr.mxu0 0.0
    %1093 = vmatpush1.xpose.msra.mxu0 0.0
    %1094 = vmatprep.subr.mxu0 0.0
    %1095 = vmatpush1.xpose.msra.mxu0 0.0
    %1096 = vmatprep.subr.mxu0 0.0
    %1097 = vmatpush1.xpose.msra.mxu0 0.0
    %1098 = vmatprep.subr.mxu0 0.0
    %1099 = vmatpush1.xpose.msra.mxu0 0.0
    %1100 = vmatprep.subr.mxu0 0.0
    %1101 = vmatpush1.xpose.msra.mxu0 0.0
    %1102 = vmatprep.subr.mxu0 0.0
    %1103 = vmatpush1.xpose.msra.mxu0 0.0
    %1104 = vmatprep.subr.mxu0 0.0
    %1105 = vmatpush1.xpose.msra.mxu0 0.0
    %1106 = vmatprep.mubr.f32.mxu0 0.0
    %1107 = vmatmul.mubr.f32.gmra.mrb[0].mxu0 %v1038
    %v1108 = vpop.f32.mrb[0].mxu0
    %v1109 = vadd.f32 %v45, %v1108
    %v1110 = vpop.f32.mrb[0].mxu0
    %1111 = vdwg.mxu0
    %1112 = vrot.lane.b32.xlu0 %v195, 96
    %v1113 = vpop.permute.xlu0 %1112
    %1114 = vrot.lane.b32.xlu0 %v197, 96
    %v1115 = vpop.permute.xlu0 %1114
    %v1116 = vsel %vm375, %v1113, 0
    %v1118 = vsel %vm375, %v1115, 0
    %1120 = vmatprep.subr.mxu0 0.0
    %1121 = vmatpush1.xpose.msra.mxu0 %v1118
    %1122 = vmatprep.subr.mxu0 0.0
    %1123 = vmatpush1.xpose.msra.mxu0 0.0
    %1124 = vmatprep.subr.mxu0 0.0
    %1125 = vmatpush1.xpose.msra.mxu0 0.0
    %1126 = vmatprep.subr.mxu0 0.0
    %1127 = vmatpush1.xpose.msra.mxu0 0.0
    %1128 = vmatprep.subr.mxu0 0.0
    %1129 = vmatpush1.xpose.msra.mxu0 0.0
    %1130 = vmatprep.subr.mxu0 0.0
    %1131 = vmatpush1.xpose.msra.mxu0 0.0
    %1132 = vmatprep.subr.mxu0 0.0
    %1133 = vmatpush1.xpose.msra.mxu0 0.0
    %1134 = vmatprep.subr.mxu0 0.0
    %1135 = vmatpush1.xpose.msra.mxu0 0.0
    %1136 = vmatprep.subr.mxu0 0.0
    %1137 = vmatpush1.xpose.msra.mxu0 0.0
    %1138 = vmatprep.subr.mxu0 0.0
    %1139 = vmatpush1.xpose.msra.mxu0 0.0
    %1140 = vmatprep.subr.mxu0 0.0
    %1141 = vmatpush1.xpose.msra.mxu0 0.0
    %1142 = vmatprep.subr.mxu0 0.0
    %1143 = vmatpush1.xpose.msra.mxu0 0.0
    %1144 = vmatprep.subr.mxu0 0.0
    %1145 = vmatpush1.xpose.msra.mxu0 0.0
    %1146 = vmatprep.subr.mxu0 0.0
    %1147 = vmatpush1.xpose.msra.mxu0 0.0
    %1148 = vmatprep.subr.mxu0 0.0
    %1149 = vmatpush1.xpose.msra.mxu0 0.0
    %1150 = vmatprep.subr.mxu0 0.0
    %1151 = vmatpush1.xpose.msra.mxu0 0.0
    %1152 = vmatprep.subr.mxu0 0.0
    %1153 = vmatpush1.xpose.msra.mxu0 0.0
    %1154 = vmatprep.subr.mxu0 0.0
    %1155 = vmatpush1.xpose.msra.mxu0 0.0
    %1156 = vmatprep.subr.mxu0 0.0
    %1157 = vmatpush1.xpose.msra.mxu0 0.0
    %1158 = vmatprep.subr.mxu0 0.0
    %1159 = vmatpush1.xpose.msra.mxu0 0.0
    %1160 = vmatprep.subr.mxu0 0.0
    %1161 = vmatpush1.xpose.msra.mxu0 0.0
    %1162 = vmatprep.subr.mxu0 0.0
    %1163 = vmatpush1.xpose.msra.mxu0 0.0
    %1164 = vmatprep.subr.mxu0 0.0
    %1165 = vmatpush1.xpose.msra.mxu0 0.0
    %1166 = vmatprep.subr.mxu0 0.0
    %1167 = vmatpush1.xpose.msra.mxu0 0.0
    %1168 = vmatprep.subr.mxu0 0.0
    %1169 = vmatpush1.xpose.msra.mxu0 0.0
    %1170 = vmatprep.subr.mxu0 0.0
    %1171 = vmatpush1.xpose.msra.mxu0 0.0
    %1172 = vmatprep.subr.mxu0 0.0
    %1173 = vmatpush1.xpose.msra.mxu0 0.0
    %1174 = vmatprep.subr.mxu0 0.0
    %1175 = vmatpush1.xpose.msra.mxu0 0.0
    %1176 = vmatprep.subr.mxu0 0.0
    %1177 = vmatpush1.xpose.msra.mxu0 0.0
    %1178 = vmatprep.subr.mxu0 0.0
    %1179 = vmatpush1.xpose.msra.mxu0 0.0
    %1180 = vmatprep.subr.mxu0 0.0
    %1181 = vmatpush1.xpose.msra.mxu0 0.0
    %1182 = vmatprep.subr.mxu0 0.0
    %1183 = vmatpush1.xpose.msra.mxu0 0.0
    %1184 = vmatprep.mubr.f32.mxu0 0.0
    %1185 = vmatmul.mubr.f32.gmra.mrb[0].mxu0 %v1116
    %v1186 = vpop.f32.mrb[0].mxu0
    %v1187 = vadd.f32 %v46, %v1186
    %v1188 = vpop.f32.mrb[0].mxu0
    %1189 = vdwg.mxu0
    %v1190 = vsel %vm528, %v1109, -inf
    %1191 = vmax.xlane.f32.xlu0 %v1190
    %v1192 = vpop.xlane.xlu0 %1191
    %v1193 = vsel %vm528, %v1187, -inf
    %1194 = vmax.xlane.f32.xlu0 %v1193
    %v1195 = vpop.xlane.xlu0 %1194
    %v1196 = vsub.f32 %v1109, %v1192
    %v1197 = vsub.f32 %v1187, %v1195
    %v1198 = vmul.f32 %v1196, 1.442695
    %v1199 = vpow.pop %v1198
    %v1200 = vmul.f32 %v1197, 1.442695
    %v1201 = vpow.pop %v1200
    %v1202 = vsel %vm528, %v1199, 0.0
    %1203 = vadd.xlane.f32.xlu0 %v1202
    %v1204 = vpop.xlane.xlu0 %1203
    %v1205 = vsel %vm528, %v1201, 0.0
    %1206 = vadd.xlane.f32.xlu0 %v1205
    %v1207 = vpop.xlane.xlu0 %1206
    %v1208 = vrcp.pop %v1204
    %v1209 = vrcp.pop %v1207
    %v1210 = vmul.f32 %v1199, %v1208
    %v1211 = vmul.f32 %v1201, %v1209
    %s1212 = scalar_lea.vmem [#allocation4], 16
    %1213 = vst.msk [vmem:[%s1212] sm:$0xff] %vm528, %v1210
    %1214 = vst.msk [vmem:[%s1212 + $0x20] sm:$0xff] %vm528, %v1211
    %1215 = vrot.lane.b32.xlu0 %v274, 96
    %v1216 = vpop.permute.xlu0 %1215
    %v1219 = vsel %vm528, %v1210, 0
    %1221 = vmatprep.subr.mxu0 0.0
    %1222 = vmatpush1.msra.mxu0 %v1216
    %1223 = vmatprep.subr.mxu0 0.0
    %1224 = vmatpush1.msra.mxu0 0.0
    %1225 = vmatprep.subr.mxu0 0.0
    %1226 = vmatpush1.msra.mxu0 0.0
    %1227 = vmatprep.subr.mxu0 0.0
    %1228 = vmatpush1.msra.mxu0 0.0
    %1229 = vmatprep.subr.mxu0 0.0
    %1230 = vmatpush1.msra.mxu0 0.0
    %1231 = vmatprep.subr.mxu0 0.0
    %1232 = vmatpush1.msra.mxu0 0.0
    %1233 = vmatprep.subr.mxu0 0.0
    %1234 = vmatpush1.msra.mxu0 0.0
    %1235 = vmatprep.subr.mxu0 0.0
    %1236 = vmatpush1.msra.mxu0 0.0
    %1237 = vmatprep.subr.mxu0 0.0
    %1238 = vmatpush1.msra.mxu0 0.0
    %1239 = vmatprep.subr.mxu0 0.0
    %1240 = vmatpush1.msra.mxu0 0.0
    %1241 = vmatprep.subr.mxu0 0.0
    %1242 = vmatpush1.msra.mxu0 0.0
    %1243 = vmatprep.subr.mxu0 0.0
    %1244 = vmatpush1.msra.mxu0 0.0
    %1245 = vmatprep.subr.mxu0 0.0
    %1246 = vmatpush1.msra.mxu0 0.0
    %1247 = vmatprep.subr.mxu0 0.0
    %1248 = vmatpush1.msra.mxu0 0.0
    %1249 = vmatprep.subr.mxu0 0.0
    %1250 = vmatpush1.msra.mxu0 0.0
    %1251 = vmatprep.subr.mxu0 0.0
    %1252 = vmatpush1.msra.mxu0 0.0
    %1253 = vmatprep.subr.mxu0 0.0
    %1254 = vmatpush1.msra.mxu0 0.0
    %1255 = vmatprep.subr.mxu0 0.0
    %1256 = vmatpush1.msra.mxu0 0.0
    %1257 = vmatprep.subr.mxu0 0.0
    %1258 = vmatpush1.msra.mxu0 0.0
    %1259 = vmatprep.subr.mxu0 0.0
    %1260 = vmatpush1.msra.mxu0 0.0
    %1261 = vmatprep.subr.mxu0 0.0
    %1262 = vmatpush1.msra.mxu0 0.0
    %1263 = vmatprep.subr.mxu0 0.0
    %1264 = vmatpush1.msra.mxu0 0.0
    %1265 = vmatprep.subr.mxu0 0.0
    %1266 = vmatpush1.msra.mxu0 0.0
    %1267 = vmatprep.subr.mxu0 0.0
    %1268 = vmatpush1.msra.mxu0 0.0
    %1269 = vmatprep.subr.mxu0 0.0
    %1270 = vmatpush1.msra.mxu0 0.0
    %1271 = vmatprep.subr.mxu0 0.0
    %1272 = vmatpush1.msra.mxu0 0.0
    %1273 = vmatprep.subr.mxu0 0.0
    %1274 = vmatpush1.msra.mxu0 0.0
    %1275 = vmatprep.subr.mxu0 0.0
    %1276 = vmatpush1.msra.mxu0 0.0
    %1277 = vmatprep.subr.mxu0 0.0
    %1278 = vmatpush1.msra.mxu0 0.0
    %1279 = vmatprep.subr.mxu0 0.0
    %1280 = vmatpush1.msra.mxu0 0.0
    %1281 = vmatprep.subr.mxu0 0.0
    %1282 = vmatpush1.msra.mxu0 0.0
    %1283 = vmatprep.subr.mxu0 0.0
    %1284 = vmatpush1.msra.mxu0 0.0
    %1285 = vmatprep.mubr.f32.mxu0 0.0
    %1286 = vmatmul.mubr.f32.gmra.mrb[0].mxu0 %v1219
    %v1287 = vpop.f32.mrb[0].mxu0
    %v1288 = vadd.f32 0.0, %v1287
    %v1289 = vpop.f32.mrb[0].mxu0
    %1290 = vdwg.mxu0
    %1291 = vrot.lane.b32.xlu0 %v279, 96
    %v1292 = vpop.permute.xlu0 %1291
    %v1295 = vsel %vm528, %v1211, 0
    %1297 = vmatprep.subr.mxu0 0.0
    %1298 = vmatpush1.msra.mxu0 %v1292
    %1299 = vmatprep.subr.mxu0 0.0
    %1300 = vmatpush1.msra.mxu0 0.0
    %1301 = vmatprep.subr.mxu0 0.0
    %1302 = vmatpush1.msra.mxu0 0.0
    %1303 = vmatprep.subr.mxu0 0.0
    %1304 = vmatpush1.msra.mxu0 0.0
    %1305 = vmatprep.subr.mxu0 0.0
    %1306 = vmatpush1.msra.mxu0 0.0
    %1307 = vmatprep.subr.mxu0 0.0
    %1308 = vmatpush1.msra.mxu0 0.0
    %1309 = vmatprep.subr.mxu0 0.0
    %1310 = vmatpush1.msra.mxu0 0.0
    %1311 = vmatprep.subr.mxu0 0.0
    %1312 = vmatpush1.msra.mxu0 0.0
    %1313 = vmatprep.subr.mxu0 0.0
    %1314 = vmatpush1.msra.mxu0 0.0
    %1315 = vmatprep.subr.mxu0 0.0
    %1316 = vmatpush1.msra.mxu0 0.0
    %1317 = vmatprep.subr.mxu0 0.0
    %1318 = vmatpush1.msra.mxu0 0.0
    %1319 = vmatprep.subr.mxu0 0.0
    %1320 = vmatpush1.msra.mxu0 0.0
    %1321 = vmatprep.subr.mxu0 0.0
    %1322 = vmatpush1.msra.mxu0 0.0
    %1323 = vmatprep.subr.mxu0 0.0
    %1324 = vmatpush1.msra.mxu0 0.0
    %1325 = vmatprep.subr.mxu0 0.0
    %1326 = vmatpush1.msra.mxu0 0.0
    %1327 = vmatprep.subr.mxu0 0.0
    %1328 = vmatpush1.msra.mxu0 0.0
    %1329 = vmatprep.subr.mxu0 0.0
    %1330 = vmatpush1.msra.mxu0 0.0
    %1331 = vmatprep.subr.mxu0 0.0
    %1332 = vmatpush1.msra.mxu0 0.0
    %1333 = vmatprep.subr.mxu0 0.0
    %1334 = vmatpush1.msra.mxu0 0.0
    %1335 = vmatprep.subr.mxu0 0.0
    %1336 = vmatpush1.msra.mxu0 0.0
    %1337 = vmatprep.subr.mxu0 0.0
    %1338 = vmatpush1.msra.mxu0 0.0
    %1339 = vmatprep.subr.mxu0 0.0
    %1340 = vmatpush1.msra.mxu0 0.0
    %1341 = vmatprep.subr.mxu0 0.0
    %1342 = vmatpush1.msra.mxu0 0.0
    %1343 = vmatprep.subr.mxu0 0.0
    %1344 = vmatpush1.msra.mxu0 0.0
    %1345 = vmatprep.subr.mxu0 0.0
    %1346 = vmatpush1.msra.mxu0 0.0
    %1347 = vmatprep.subr.mxu0 0.0
    %1348 = vmatpush1.msra.mxu0 0.0
    %1349 = vmatprep.subr.mxu0 0.0
    %1350 = vmatpush1.msra.mxu0 0.0
    %1351 = vmatprep.subr.mxu0 0.0
    %1352 = vmatpush1.msra.mxu0 0.0
    %1353 = vmatprep.subr.mxu0 0.0
    %1354 = vmatpush1.msra.mxu0 0.0
    %1355 = vmatprep.subr.mxu0 0.0
    %1356 = vmatpush1.msra.mxu0 0.0
    %1357 = vmatprep.subr.mxu0 0.0
    %1358 = vmatpush1.msra.mxu0 0.0
    %1359 = vmatprep.subr.mxu0 0.0
    %1360 = vmatpush1.msra.mxu0 0.0
    %1361 = vmatprep.mubr.f32.mxu0 0.0
    %1362 = vmatmul.mubr.f32.gmra.mrb[0].mxu0 %v1295
    %v1363 = vpop.f32.mrb[0].mxu0
    %v1364 = vadd.f32 0.0, %v1363
    %v1365 = vpop.f32.mrb[0].mxu0
    %1366 = vdwg.mxu0
    %1367 = vrot.lane.b32.xlu0 %v189, 80
    %v1368 = vpop.permute.xlu0 %1367
    %1369 = vrot.lane.b32.xlu0 %v191, 80
    %v1370 = vpop.permute.xlu0 %1369
    %v1371 = vsel %vm375, %v1368, 0
    %v1373 = vsel %vm375, %v1370, 0
    %1375 = vmatprep.subr.mxu0 0.0
    %1376 = vmatpush1.xpose.msra.mxu0 %v1373
    %1377 = vmatprep.subr.mxu0 0.0
    %1378 = vmatpush1.xpose.msra.mxu0 0.0
    %1379 = vmatprep.subr.mxu0 0.0
    %1380 = vmatpush1.xpose.msra.mxu0 0.0
    %1381 = vmatprep.subr.mxu0 0.0
    %1382 = vmatpush1.xpose.msra.mxu0 0.0
    %1383 = vmatprep.subr.mxu0 0.0
    %1384 = vmatpush1.xpose.msra.mxu0 0.0
    %1385 = vmatprep.subr.mxu0 0.0
    %1386 = vmatpush1.xpose.msra.mxu0 0.0
    %1387 = vmatprep.subr.mxu0 0.0
    %1388 = vmatpush1.xpose.msra.mxu0 0.0
    %1389 = vmatprep.subr.mxu0 0.0
    %1390 = vmatpush1.xpose.msra.mxu0 0.0
    %1391 = vmatprep.subr.mxu0 0.0
    %1392 = vmatpush1.xpose.msra.mxu0 0.0
    %1393 = vmatprep.subr.mxu0 0.0
    %1394 = vmatpush1.xpose.msra.mxu0 0.0
    %1395 = vmatprep.subr.mxu0 0.0
    %1396 = vmatpush1.xpose.msra.mxu0 0.0
    %1397 = vmatprep.subr.mxu0 0.0
    %1398 = vmatpush1.xpose.msra.mxu0 0.0
    %1399 = vmatprep.subr.mxu0 0.0
    %1400 = vmatpush1.xpose.msra.mxu0 0.0
    %1401 = vmatprep.subr.mxu0 0.0
    %1402 = vmatpush1.xpose.msra.mxu0 0.0
    %1403 = vmatprep.subr.mxu0 0.0
    %1404 = vmatpush1.xpose.msra.mxu0 0.0
    %1405 = vmatprep.subr.mxu0 0.0
    %1406 = vmatpush1.xpose.msra.mxu0 0.0
    %1407 = vmatprep.subr.mxu0 0.0
    %1408 = vmatpush1.xpose.msra.mxu0 0.0
    %1409 = vmatprep.subr.mxu0 0.0
    %1410 = vmatpush1.xpose.msra.mxu0 0.0
    %1411 = vmatprep.subr.mxu0 0.0
    %1412 = vmatpush1.xpose.msra.mxu0 0.0
    %1413 = vmatprep.subr.mxu0 0.0
    %1414 = vmatpush1.xpose.msra.mxu0 0.0
    %1415 = vmatprep.subr.mxu0 0.0
    %1416 = vmatpush1.xpose.msra.mxu0 0.0
    %1417 = vmatprep.subr.mxu0 0.0
    %1418 = vmatpush1.xpose.msra.mxu0 0.0
    %1419 = vmatprep.subr.mxu0 0.0
    %1420 = vmatpush1.xpose.msra.mxu0 0.0
    %1421 = vmatprep.subr.mxu0 0.0
    %1422 = vmatpush1.xpose.msra.mxu0 0.0
    %1423 = vmatprep.subr.mxu0 0.0
    %1424 = vmatpush1.xpose.msra.mxu0 0.0
    %1425 = vmatprep.subr.mxu0 0.0
    %1426 = vmatpush1.xpose.msra.mxu0 0.0
    %1427 = vmatprep.subr.mxu0 0.0
    %1428 = vmatpush1.xpose.msra.mxu0 0.0
    %1429 = vmatprep.subr.mxu0 0.0
    %1430 = vmatpush1.xpose.msra.mxu0 0.0
    %1431 = vmatprep.subr.mxu0 0.0
    %1432 = vmatpush1.xpose.msra.mxu0 0.0
    %1433 = vmatprep.subr.mxu0 0.0
    %1434 = vmatpush1.xpose.msra.mxu0 0.0
    %1435 = vmatprep.subr.mxu0 0.0
    %1436 = vmatpush1.xpose.msra.mxu0 0.0
    %1437 = vmatprep.subr.mxu0 0.0
    %1438 = vmatpush1.xpose.msra.mxu0 0.0
    %1439 = vmatprep.mubr.f32.mxu0 0.0
    %1440 = vmatmul.mubr.f32.gmra.mrb[0].mxu0 %v1371
    %v1441 = vpop.f32.mrb[0].mxu0
    %v1442 = vadd.f32 %v45, %v1441
    %v1443 = vpop.f32.mrb[0].mxu0
    %1444 = vdwg.mxu0
    %1445 = vrot.lane.b32.xlu0 %v195, 80
    %v1446 = vpop.permute.xlu0 %1445
    %1447 = vrot.lane.b32.xlu0 %v197, 80
    %v1448 = vpop.permute.xlu0 %1447
    %v1449 = vsel %vm375, %v1446, 0
    %v1451 = vsel %vm375, %v1448, 0
    %1453 = vmatprep.subr.mxu0 0.0
    %1454 = vmatpush1.xpose.msra.mxu0 %v1451
    %1455 = vmatprep.subr.mxu0 0.0
    %1456 = vmatpush1.xpose.msra.mxu0 0.0
    %1457 = vmatprep.subr.mxu0 0.0
    %1458 = vmatpush1.xpose.msra.mxu0 0.0
    %1459 = vmatprep.subr.mxu0 0.0
    %1460 = vmatpush1.xpose.msra.mxu0 0.0
    %1461 = vmatprep.subr.mxu0 0.0
    %1462 = vmatpush1.xpose.msra.mxu0 0.0
    %1463 = vmatprep.subr.mxu0 0.0
    %1464 = vmatpush1.xpose.msra.mxu0 0.0
    %1465 = vmatprep.subr.mxu0 0.0
    %1466 = vmatpush1.xpose.msra.mxu0 0.0
    %1467 = vmatprep.subr.mxu0 0.0
    %1468 = vmatpush1.xpose.msra.mxu0 0.0
    %1469 = vmatprep.subr.mxu0 0.0
    %1470 = vmatpush1.xpose.msra.mxu0 0.0
    %1471 = vmatprep.subr.mxu0 0.0
    %1472 = vmatpush1.xpose.msra.mxu0 0.0
    %1473 = vmatprep.subr.mxu0 0.0
    %1474 = vmatpush1.xpose.msra.mxu0 0.0
    %1475 = vmatprep.subr.mxu0 0.0
    %1476 = vmatpush1.xpose.msra.mxu0 0.0
    %1477 = vmatprep.subr.mxu0 0.0
    %1478 = vmatpush1.xpose.msra.mxu0 0.0
    %1479 = vmatprep.subr.mxu0 0.0
    %1480 = vmatpush1.xpose.msra.mxu0 0.0
    %1481 = vmatprep.subr.mxu0 0.0
    %1482 = vmatpush1.xpose.msra.mxu0 0.0
    %1483 = vmatprep.subr.mxu0 0.0
    %1484 = vmatpush1.xpose.msra.mxu0 0.0
    %1485 = vmatprep.subr.mxu0 0.0
    %1486 = vmatpush1.xpose.msra.mxu0 0.0
    %1487 = vmatprep.subr.mxu0 0.0
    %1488 = vmatpush1.xpose.msra.mxu0 0.0
    %1489 = vmatprep.subr.mxu0 0.0
    %1490 = vmatpush1.xpose.msra.mxu0 0.0
    %1491 = vmatprep.subr.mxu0 0.0
    %1492 = vmatpush1.xpose.msra.mxu0 0.0
    %1493 = vmatprep.subr.mxu0 0.0
    %1494 = vmatpush1.xpose.msra.mxu0 0.0
    %1495 = vmatprep.subr.mxu0 0.0
    %1496 = vmatpush1.xpose.msra.mxu0 0.0
    %1497 = vmatprep.subr.mxu0 0.0
    %1498 = vmatpush1.xpose.msra.mxu0 0.0
    %1499 = vmatprep.subr.mxu0 0.0
    %1500 = vmatpush1.xpose.msra.mxu0 0.0
    %1501 = vmatprep.subr.mxu0 0.0
    %1502 = vmatpush1.xpose.msra.mxu0 0.0
    %1503 = vmatprep.subr.mxu0 0.0
    %1504 = vmatpush1.xpose.msra.mxu0 0.0
    %1505 = vmatprep.subr.mxu0 0.0
    %1506 = vmatpush1.xpose.msra.mxu0 0.0
    %1507 = vmatprep.subr.mxu0 0.0
    %1508 = vmatpush1.xpose.msra.mxu0 0.0
    %1509 = vmatprep.subr.mxu0 0.0
    %1510 = vmatpush1.xpose.msra.mxu0 0.0
    %1511 = vmatprep.subr.mxu0 0.0
    %1512 = vmatpush1.xpose.msra.mxu0 0.0
    %1513 = vmatprep.subr.mxu0 0.0
    %1514 = vmatpush1.xpose.msra.mxu0 0.0
    %1515 = vmatprep.subr.mxu0 0.0
    %1516 = vmatpush1.xpose.msra.mxu0 0.0
    %1517 = vmatprep.mubr.f32.mxu0 0.0
    %1518 = vmatmul.mubr.f32.gmra.mrb[0].mxu0 %v1449
    %v1519 = vpop.f32.mrb[0].mxu0
    %v1520 = vadd.f32 %v46, %v1519
    %v1521 = vpop.f32.mrb[0].mxu0
    %1522 = vdwg.mxu0
    %v1523 = vsel %vm528, %v1442, -inf
    %1524 = vmax.xlane.f32.xlu0 %v1523
    %v1525 = vpop.xlane.xlu0 %1524
    %v1526 = vsel %vm528, %v1520, -inf
    %1527 = vmax.xlane.f32.xlu0 %v1526
    %v1528 = vpop.xlane.xlu0 %1527
    %v1529 = vsub.f32 %v1442, %v1525
    %v1530 = vsub.f32 %v1520, %v1528
    %v1531 = vmul.f32 %v1529, 1.442695
    %v1532 = vpow.pop %v1531
    %v1533 = vmul.f32 %v1530, 1.442695
    %v1534 = vpow.pop %v1533
    %v1535 = vsel %vm528, %v1532, 0.0
    %1536 = vadd.xlane.f32.xlu0 %v1535
    %v1537 = vpop.xlane.xlu0 %1536
    %v1538 = vsel %vm528, %v1534, 0.0
    %1539 = vadd.xlane.f32.xlu0 %v1538
    %v1540 = vpop.xlane.xlu0 %1539
    %v1541 = vrcp.pop %v1537
    %v1542 = vrcp.pop %v1540
    %v1543 = vmul.f32 %v1532, %v1541
    %v1544 = vmul.f32 %v1534, %v1542
    %s1545 = scalar_lea.vmem [#allocation4], 24
    %1546 = vst.msk [vmem:[%s1545] sm:$0xff] %vm528, %v1543
    %1547 = vst.msk [vmem:[%s1545 + $0x20] sm:$0xff] %vm528, %v1544
    %1548 = vrot.lane.b32.xlu0 %v274, 80
    %v1549 = vpop.permute.xlu0 %1548
    %v1552 = vsel %vm528, %v1543, 0
    %1554 = vmatprep.subr.mxu0 0.0
    %1555 = vmatpush1.msra.mxu0 %v1549
    %1556 = vmatprep.subr.mxu0 0.0
    %1557 = vmatpush1.msra.mxu0 0.0
    %1558 = vmatprep.subr.mxu0 0.0
    %1559 = vmatpush1.msra.mxu0 0.0
    %1560 = vmatprep.subr.mxu0 0.0
    %1561 = vmatpush1.msra.mxu0 0.0
    %1562 = vmatprep.subr.mxu0 0.0
    %1563 = vmatpush1.msra.mxu0 0.0
    %1564 = vmatprep.subr.mxu0 0.0
    %1565 = vmatpush1.msra.mxu0 0.0
    %1566 = vmatprep.subr.mxu0 0.0
    %1567 = vmatpush1.msra.mxu0 0.0
    %1568 = vmatprep.subr.mxu0 0.0
    %1569 = vmatpush1.msra.mxu0 0.0
    %1570 = vmatprep.subr.mxu0 0.0
    %1571 = vmatpush1.msra.mxu0 0.0
    %1572 = vmatprep.subr.mxu0 0.0
    %1573 = vmatpush1.msra.mxu0 0.0
    %1574 = vmatprep.subr.mxu0 0.0
    %1575 = vmatpush1.msra.mxu0 0.0
    %1576 = vmatprep.subr.mxu0 0.0
    %1577 = vmatpush1.msra.mxu0 0.0
    %1578 = vmatprep.subr.mxu0 0.0
    %1579 = vmatpush1.msra.mxu0 0.0
    %1580 = vmatprep.subr.mxu0 0.0
    %1581 = vmatpush1.msra.mxu0 0.0
    %1582 = vmatprep.subr.mxu0 0.0
    %1583 = vmatpush1.msra.mxu0 0.0
    %1584 = vmatprep.subr.mxu0 0.0
    %1585 = vmatpush1.msra.mxu0 0.0
    %1586 = vmatprep.subr.mxu0 0.0
    %1587 = vmatpush1.msra.mxu0 0.0
    %1588 = vmatprep.subr.mxu0 0.0
    %1589 = vmatpush1.msra.mxu0 0.0
    %1590 = vmatprep.subr.mxu0 0.0
    %1591 = vmatpush1.msra.mxu0 0.0
    %1592 = vmatprep.subr.mxu0 0.0
    %1593 = vmatpush1.msra.mxu0 0.0
    %1594 = vmatprep.subr.mxu0 0.0
    %1595 = vmatpush1.msra.mxu0 0.0
    %1596 = vmatprep.subr.mxu0 0.0
    %1597 = vmatpush1.msra.mxu0 0.0
    %1598 = vmatprep.subr.mxu0 0.0
    %1599 = vmatpush1.msra.mxu0 0.0
    %1600 = vmatprep.subr.mxu0 0.0
    %1601 = vmatpush1.msra.mxu0 0.0
    %1602 = vmatprep.subr.mxu0 0.0
    %1603 = vmatpush1.msra.mxu0 0.0
    %1604 = vmatprep.subr.mxu0 0.0
    %1605 = vmatpush1.msra.mxu0 0.0
    %1606 = vmatprep.subr.mxu0 0.0
    %1607 = vmatpush1.msra.mxu0 0.0
    %1608 = vmatprep.subr.mxu0 0.0
    %1609 = vmatpush1.msra.mxu0 0.0
    %1610 = vmatprep.subr.mxu0 0.0
    %1611 = vmatpush1.msra.mxu0 0.0
    %1612 = vmatprep.subr.mxu0 0.0
    %1613 = vmatpush1.msra.mxu0 0.0
    %1614 = vmatprep.subr.mxu0 0.0
    %1615 = vmatpush1.msra.mxu0 0.0
    %1616 = vmatprep.subr.mxu0 0.0
    %1617 = vmatpush1.msra.mxu0 0.0
    %1618 = vmatprep.mubr.f32.mxu0 0.0
    %1619 = vmatmul.mubr.f32.gmra.mrb[0].mxu0 %v1552
    %v1620 = vpop.f32.mrb[0].mxu0
    %v1621 = vadd.f32 0.0, %v1620
    %v1622 = vpop.f32.mrb[0].mxu0
    %1623 = vdwg.mxu0
    %1624 = vrot.lane.b32.xlu0 %v279, 80
    %v1625 = vpop.permute.xlu0 %1624
    %v1628 = vsel %vm528, %v1544, 0
    %1630 = vmatprep.subr.mxu0 0.0
    %1631 = vmatpush1.msra.mxu0 %v1625
    %1632 = vmatprep.subr.mxu0 0.0
    %1633 = vmatpush1.msra.mxu0 0.0
    %1634 = vmatprep.subr.mxu0 0.0
    %1635 = vmatpush1.msra.mxu0 0.0
    %1636 = vmatprep.subr.mxu0 0.0
    %1637 = vmatpush1.msra.mxu0 0.0
    %1638 = vmatprep.subr.mxu0 0.0
    %1639 = vmatpush1.msra.mxu0 0.0
    %1640 = vmatprep.subr.mxu0 0.0
    %1641 = vmatpush1.msra.mxu0 0.0
    %1642 = vmatprep.subr.mxu0 0.0
    %1643 = vmatpush1.msra.mxu0 0.0
    %1644 = vmatprep.subr.mxu0 0.0
    %1645 = vmatpush1.msra.mxu0 0.0
    %1646 = vmatprep.subr.mxu0 0.0
    %1647 = vmatpush1.msra.mxu0 0.0
    %1648 = vmatprep.subr.mxu0 0.0
    %1649 = vmatpush1.msra.mxu0 0.0
    %1650 = vmatprep.subr.mxu0 0.0
    %1651 = vmatpush1.msra.mxu0 0.0
    %1652 = vmatprep.subr.mxu0 0.0
    %1653 = vmatpush1.msra.mxu0 0.0
    %1654 = vmatprep.subr.mxu0 0.0
    %1655 = vmatpush1.msra.mxu0 0.0
    %1656 = vmatprep.subr.mxu0 0.0
    %1657 = vmatpush1.msra.mxu0 0.0
    %1658 = vmatprep.subr.mxu0 0.0
    %1659 = vmatpush1.msra.mxu0 0.0
    %1660 = vmatprep.subr.mxu0 0.0
    %1661 = vmatpush1.msra.mxu0 0.0
    %1662 = vmatprep.subr.mxu0 0.0
    %1663 = vmatpush1.msra.mxu0 0.0
    %1664 = vmatprep.subr.mxu0 0.0
    %1665 = vmatpush1.msra.mxu0 0.0
    %1666 = vmatprep.subr.mxu0 0.0
    %1667 = vmatpush1.msra.mxu0 0.0
    %1668 = vmatprep.subr.mxu0 0.0
    %1669 = vmatpush1.msra.mxu0 0.0
    %1670 = vmatprep.subr.mxu0 0.0
    %1671 = vmatpush1.msra.mxu0 0.0
    %1672 = vmatprep.subr.mxu0 0.0
    %1673 = vmatpush1.msra.mxu0 0.0
    %1674 = vmatprep.subr.mxu0 0.0
    %1675 = vmatpush1.msra.mxu0 0.0
    %1676 = vmatprep.subr.mxu0 0.0
    %1677 = vmatpush1.msra.mxu0 0.0
    %1678 = vmatprep.subr.mxu0 0.0
    %1679 = vmatpush1.msra.mxu0 0.0
    %1680 = vmatprep.subr.mxu0 0.0
    %1681 = vmatpush1.msra.mxu0 0.0
    %1682 = vmatprep.subr.mxu0 0.0
    %1683 = vmatpush1.msra.mxu0 0.0
    %1684 = vmatprep.subr.mxu0 0.0
    %1685 = vmatpush1.msra.mxu0 0.0
    %1686 = vmatprep.subr.mxu0 0.0
    %1687 = vmatpush1.msra.mxu0 0.0
    %1688 = vmatprep.subr.mxu0 0.0
    %1689 = vmatpush1.msra.mxu0 0.0
    %1690 = vmatprep.subr.mxu0 0.0
    %1691 = vmatpush1.msra.mxu0 0.0
    %1692 = vmatprep.subr.mxu0 0.0
    %1693 = vmatpush1.msra.mxu0 0.0
    %1694 = vmatprep.mubr.f32.mxu0 0.0
    %1695 = vmatmul.mubr.f32.gmra.mrb[0].mxu0 %v1628
    %v1696 = vpop.f32.mrb[0].mxu0
    %v1697 = vadd.f32 0.0, %v1696
    %v1698 = vpop.f32.mrb[0].mxu0
    %1699 = vdwg.mxu0
    %1702 = vrot.lane.b32.xlu0 %v954, 16
    %v1703 = vpop.permute.xlu0 %1702
    %1704 = vrot.lane.b32.xlu0 %v1031, 16
    %v1705 = vpop.permute.xlu0 %1704
    %1710 = vrot.lane.b32.xlu0 %v1288, 32
    %v1711 = vpop.permute.xlu0 %1710
    %1712 = vrot.lane.b32.xlu0 %v1364, 32
    %v1713 = vpop.permute.xlu0 %1712
    %1718 = vrot.lane.b32.xlu0 %v1621, 48
    %v1719 = vpop.permute.xlu0 %1718
    %1720 = vrot.lane.b32.xlu0 %v1697, 48
    %v1721 = vpop.permute.xlu0 %1720
    %v1724 = vsel %vm375, %v623, %v1703
    %v1725 = vsel %vm375, %v696, %v1705
    %v1726 = vsel %vm109, %v1724, %v1711
    %v1727 = vsel %vm109, %v1725, %v1713
    %vm1728 = vcmask 392192
    %v1729 = vsel %vm1728, %v1726, %v1719
    %v1730 = vsel %vm1728, %v1727, %v1721
    %v1731 = vld [vmem:[%s6] sm:$0xff]
    %v1732 = vld [vmem:[%s6 + $0x8] sm:$0xff]
    %v1733 = vld [vmem:[%s6 + $0x10] sm:$0xff]
    %v1734 = vld [vmem:[%s6 + $0x18] sm:$0xff]
    %v1735 = vld [vmem:[%s6 + $0x20] sm:$0xff]
    %v1736 = vld [vmem:[%s6 + $0x28] sm:$0xff]
    %v1737 = vld [vmem:[%s6 + $0x30] sm:$0xff]
    %v1738 = vld [vmem:[%s6 + $0x38] sm:$0xff]
    %v1739 = vlaneseq
    %v1740 = vshrl.u32 %v1739, 7
    %v1741 = vsub.s32 0, %v1740
    %v1742 = vrot.slane %v53, %v1741
    %vm1743 = vcmask 523264
    %v1745 = vsel %vm1743, %v1729, 0
    %v1748 = vsel %vm1743, %v1730, 0
    %1750 = vmatprep.subr.mxu0 0.0
    %1751 = vmatpush1.msra.mxu0 %v1731
    %1752 = vmatprep.subr.mxu0 0.0
    %1753 = vmatpush1.msra.mxu0 %v1732
    %1754 = vmatprep.subr.mxu0 0.0
    %1755 = vmatpush1.msra.mxu0 %v1733
    %1756 = vmatprep.subr.mxu0 0.0
    %1757 = vmatpush1.msra.mxu0 %v1734
    %1758 = vmatprep.subr.mxu0 0.0
    %1759 = vmatpush1.msra.mxu0 %v1735
    %1760 = vmatprep.subr.mxu0 0.0
    %1761 = vmatpush1.msra.mxu0 %v1736
    %1762 = vmatprep.subr.mxu0 0.0
    %1763 = vmatpush1.msra.mxu0 %v1737
    %1764 = vmatprep.subr.mxu0 0.0
    %1765 = vmatpush1.msra.mxu0 %v1738
    %1766 = vmatprep.subr.mxu0 0.0
    %1767 = vmatpush1.msra.mxu0 0.0
    %1768 = vmatprep.subr.mxu0 0.0
    %1769 = vmatpush1.msra.mxu0 0.0
    %1770 = vmatprep.subr.mxu0 0.0
    %1771 = vmatpush1.msra.mxu0 0.0
    %1772 = vmatprep.subr.mxu0 0.0
    %1773 = vmatpush1.msra.mxu0 0.0
    %1774 = vmatprep.subr.mxu0 0.0
    %1775 = vmatpush1.msra.mxu0 0.0
    %1776 = vmatprep.subr.mxu0 0.0
    %1777 = vmatpush1.msra.mxu0 0.0
    %1778 = vmatprep.subr.mxu0 0.0
    %1779 = vmatpush1.msra.mxu0 0.0
    %1780 = vmatprep.subr.mxu0 0.0
    %1781 = vmatpush1.msra.mxu0 0.0
    %1782 = vmatprep.subr.mxu0 0.0
    %1783 = vmatpush1.msra.mxu0 0.0
    %1784 = vmatprep.subr.mxu0 0.0
    %1785 = vmatpush1.msra.mxu0 0.0
    %1786 = vmatprep.subr.mxu0 0.0
    %1787 = vmatpush1.msra.mxu0 0.0
    %1788 = vmatprep.subr.mxu0 0.0
    %1789 = vmatpush1.msra.mxu0 0.0
    %1790 = vmatprep.subr.mxu0 0.0
    %1791 = vmatpush1.msra.mxu0 0.0
    %1792 = vmatprep.subr.mxu0 0.0
    %1793 = vmatpush1.msra.mxu0 0.0
    %1794 = vmatprep.subr.mxu0 0.0
    %1795 = vmatpush1.msra.mxu0 0.0
    %1796 = vmatprep.subr.mxu0 0.0
    %1797 = vmatpush1.msra.mxu0 0.0
    %1798 = vmatprep.subr.mxu0 0.0
    %1799 = vmatpush1.msra.mxu0 0.0
    %1800 = vmatprep.subr.mxu0 0.0
    %1801 = vmatpush1.msra.mxu0 0.0
    %1802 = vmatprep.subr.mxu0 0.0
    %1803 = vmatpush1.msra.mxu0 0.0
    %1804 = vmatprep.subr.mxu0 0.0
    %1805 = vmatpush1.msra.mxu0 0.0
    %1806 = vmatprep.subr.mxu0 0.0
    %1807 = vmatpush1.msra.mxu0 0.0
    %1808 = vmatprep.subr.mxu0 0.0
    %1809 = vmatpush1.msra.mxu0 0.0
    %1810 = vmatprep.subr.mxu0 0.0
    %1811 = vmatpush1.msra.mxu0 0.0
    %1812 = vmatprep.subr.mxu0 0.0
    %1813 = vmatpush1.msra.mxu0 0.0
    %1814 = vmatprep.mubr.f32.mxu0 0.0
    %1815 = vmatmul.mubr.f32.gmra.mrb[0].mxu0 %v1745
    %v1816 = vpop.f32.mrb[0].mxu0
    %v1817 = vadd.f32 %v1742, %v1816
    %v1818 = vpop.f32.mrb[0].mxu0
    %1819 = vmatprep.mubr.f32.mxu0 0.0
    %1820 = vmatmul.mubr.f32.gmra.mrb[0].mxu0 %v1748
    %v1821 = vpop.f32.mrb[0].mxu0
    %v1822 = vadd.f32 %v1742, %v1821
    %v1823 = vpop.f32.mrb[0].mxu0
    %1824 = vdwg.mxu0
    %v1825 = vadd.f32 %v1817, %v37
    %v1826 = vadd.f32 %v1822, %v38
    %v1827 = vsel %vm109, %v1825, 0.0
    %1828 = vadd.xlane.f32.xlu0 %v1827
    %v1829 = vpop.xlane.xlu0 %1828
    %v1830 = vsel %vm109, %v1826, 0.0
    %1831 = vadd.xlane.f32.xlu0 %v1830
    %v1832 = vpop.xlane.xlu0 %1831
    %v1833 = vrcp.pop 32.0
    %v1834 = vmul.f32 %v1829, %v1833
    %v1835 = vmul.f32 %v1832, %v1833
    %v1836 = vsub.f32 %v1825, %v1834
    %v1837 = vsub.f32 %v1826, %v1835
    %v1838 = vmul.f32 %v1836, %v1836
    %v1839 = vmul.f32 %v1837, %v1837
    %v1840 = vsel %vm109, %v1838, 0.0
    %1841 = vadd.xlane.f32.xlu0 %v1840
    %v1842 = vpop.xlane.xlu0 %1841
    %v1843 = vsel %vm109, %v1839, 0.0
    %1844 = vadd.xlane.f32.xlu0 %v1843
    %v1845 = vpop.xlane.xlu0 %1844
    %v1846 = vmul.f32 %v1842, %v1833
    %v1847 = vmul.f32 %v1845, %v1833
    %v1848 = vadd.f32 %v1846, 1e-05
    %v1849 = vadd.f32 %v1847, 1e-05
    %v1850 = vrsqrt.pop %v1848
    %v1851 = vrsqrt.pop %v1849
    %v1852 = vmul.f32 %v1836, %v1850
    %v1853 = vmul.f32 %v1837, %v1851
    %v1854 = vlaneseq
    %v1855 = vshrl.u32 %v1854, 7
    %v1856 = vsub.s32 0, %v1855
    %v1857 = vrot.slane %v56, %v1856
    %v1858 = vmul.f32 %v1852, %v1857
    %v1859 = vmul.f32 %v1853, %v1857
    %v1860 = vlaneseq
    %v1861 = vshrl.u32 %v1860, 7
    %v1862 = vsub.s32 0, %v1861
    %v1863 = vrot.slane %v57, %v1862
    %v1864 = vadd.f32 %v1858, %v1863
    %v1865 = vadd.f32 %v1859, %v1863
    %v1866 = vld [vmem:[%s5] sm:$0xff]
    %v1867 = vld [vmem:[%s5 + $0x10] sm:$0xff]
    %v1868 = vld [vmem:[%s5 + $0x20] sm:$0xff]
    %v1869 = vld [vmem:[%s5 + $0x30] sm:$0xff]
    %v1870 = vld [vmem:[%s7 + $0x1] sm:$0x1]
    %v1871 = vlaneseq
    %v1872 = vshrl.u32 %v1871, 7
    %v1873 = vsub.s32 0, %v1872
    %v1874 = vrot.slane %v1870, %v1873
    %v1876 = vsel %vm109, %v1864, 0
    %v1879 = vsel %vm109, %v1865, 0
    %1881 = vmatprep.subr.mxu0 0.0
    %1882 = vmatpush1.msra.mxu0 %v1866
    %1883 = vmatprep.subr.mxu0 0.0
    %1884 = vmatpush1.msra.mxu0 %v1867
    %1885 = vmatprep.subr.mxu0 0.0
    %1886 = vmatpush1.msra.mxu0 %v1868
    %1887 = vmatprep.subr.mxu0 0.0
    %1888 = vmatpush1.msra.mxu0 %v1869
    %1889 = vmatprep.subr.mxu0 0.0
    %1890 = vmatpush1.msra.mxu0 0.0
    %1891 = vmatprep.subr.mxu0 0.0
    %1892 = vmatpush1.msra.mxu0 0.0
    %1893 = vmatprep.subr.mxu0 0.0
    %1894 = vmatpush1.msra.mxu0 0.0
    %1895 = vmatprep.subr.mxu0 0.0
    %1896 = vmatpush1.msra.mxu0 0.0
    %1897 = vmatprep.subr.mxu0 0.0
    %1898 = vmatpush1.msra.mxu0 0.0
    %1899 = vmatprep.subr.mxu0 0.0
    %1900 = vmatpush1.msra.mxu0 0.0
    %1901 = vmatprep.subr.mxu0 0.0
    %1902 = vmatpush1.msra.mxu0 0.0
    %1903 = vmatprep.subr.mxu0 0.0
    %1904 = vmatpush1.msra.mxu0 0.0
    %1905 = vmatprep.subr.mxu0 0.0
    %1906 = vmatpush1.msra.mxu0 0.0
    %1907 = vmatprep.subr.mxu0 0.0
    %1908 = vmatpush1.msra.mxu0 0.0
    %1909 = vmatprep.subr.mxu0 0.0
    %1910 = vmatpush1.msra.mxu0 0.0
    %1911 = vmatprep.subr.mxu0 0.0
    %1912 = vmatpush1.msra.mxu0 0.0
    %1913 = vmatprep.subr.mxu0 0.0
    %1914 = vmatpush1.msra.mxu0 0.0
    %1915 = vmatprep.subr.mxu0 0.0
    %1916 = vmatpush1.msra.mxu0 0.0
    %1917 = vmatprep.subr.mxu0 0.0
    %1918 = vmatpush1.msra.mxu0 0.0
    %1919 = vmatprep.subr.mxu0 0.0
    %1920 = vmatpush1.msra.mxu0 0.0
    %1921 = vmatprep.subr.mxu0 0.0
    %1922 = vmatpush1.msra.mxu0 0.0
    %1923 = vmatprep.subr.mxu0 0.0
    %1924 = vmatpush1.msra.mxu0 0.0
    %1925 = vmatprep.subr.mxu0 0.0
    %1926 = vmatpush1.msra.mxu0 0.0
    %1927 = vmatprep.subr.mxu0 0.0
    %1928 = vmatpush1.msra.mxu0 0.0
    %1929 = vmatprep.subr.mxu0 0.0
    %1930 = vmatpush1.msra.mxu0 0.0
    %1931 = vmatprep.subr.mxu0 0.0
    %1932 = vmatpush1.msra.mxu0 0.0
    %1933 = vmatprep.subr.mxu0 0.0
    %1934 = vmatpush1.msra.mxu0 0.0
    %1935 = vmatprep.subr.mxu0 0.0
    %1936 = vmatpush1.msra.mxu0 0.0
    %1937 = vmatprep.subr.mxu0 0.0
    %1938 = vmatpush1.msra.mxu0 0.0
    %1939 = vmatprep.subr.mxu0 0.0
    %1940 = vmatpush1.msra.mxu0 0.0
    %1941 = vmatprep.subr.mxu0 0.0
    %1942 = vmatpush1.msra.mxu0 0.0
    %1943 = vmatprep.subr.mxu0 0.0
    %1944 = vmatpush1.msra.mxu0 0.0
    %1945 = vmatprep.mubr.f32.mxu0 0.0
    %1946 = vmatmul.mubr.f32.gmra.mrb[0].mxu0 %v1876
    %v1947 = vpop.f32.mrb[0].mxu0
    %v1948 = vadd.f32 %v1874, %v1947
    %v1949 = vpop.f32.mrb[0].mxu0
    %1950 = vmatprep.mubr.f32.mxu0 0.0
    %1951 = vmatmul.mubr.f32.gmra.mrb[0].mxu0 %v1879
    %v1952 = vpop.f32.mrb[0].mxu0
    %v1953 = vadd.f32 %v1874, %v1952
    %v1954 = vpop.f32.mrb[0].mxu0
    %1955 = vdwg.mxu0
    %v1957 = vsel %vm375, %v1948, 0
    %v1960 = vsel %vm375, %v285, 0
    %1962 = vmatprep.subr.mxu0 0.0
    %1963 = vmatpush1.xpose.msra.mxu0 %v1960
    %1964 = vmatprep.subr.mxu0 0.0
    %1965 = vmatpush1.xpose.msra.mxu0 0.0
    %1966 = vmatprep.subr.mxu0 0.0
    %1967 = vmatpush1.xpose.msra.mxu0 0.0
    %1968 = vmatprep.subr.mxu0 0.0
    %1969 = vmatpush1.xpose.msra.mxu0 0.0
    %1970 = vmatprep.subr.mxu0 0.0
    %1971 = vmatpush1.xpose.msra.mxu0 0.0
    %1972 = vmatprep.subr.mxu0 0.0
    %1973 = vmatpush1.xpose.msra.mxu0 0.0
    %1974 = vmatprep.subr.mxu0 0.0
    %1975 = vmatpush1.xpose.msra.mxu0 0.0
    %1976 = vmatprep.subr.mxu0 0.0
    %1977 = vmatpush1.xpose.msra.mxu0 0.0
    %1978 = vmatprep.subr.mxu0 0.0
    %1979 = vmatpush1.xpose.msra.mxu0 0.0
    %1980 = vmatprep.subr.mxu0 0.0
    %1981 = vmatpush1.xpose.msra.mxu0 0.0
    %1982 = vmatprep.subr.mxu0 0.0
    %1983 = vmatpush1.xpose.msra.mxu0 0.0
    %1984 = vmatprep.subr.mxu0 0.0
    %1985 = vmatpush1.xpose.msra.mxu0 0.0
    %1986 = vmatprep.subr.mxu0 0.0
    %1987 = vmatpush1.xpose.msra.mxu0 0.0
    %1988 = vmatprep.subr.mxu0 0.0
    %1989 = vmatpush1.xpose.msra.mxu0 0.0
    %1990 = vmatprep.subr.mxu0 0.0
    %1991 = vmatpush1.xpose.msra.mxu0 0.0
    %1992 = vmatprep.subr.mxu0 0.0
    %1993 = vmatpush1.xpose.msra.mxu0 0.0
    %1994 = vmatprep.subr.mxu0 0.0
    %1995 = vmatpush1.xpose.msra.mxu0 0.0
    %1996 = vmatprep.subr.mxu0 0.0
    %1997 = vmatpush1.xpose.msra.mxu0 0.0
    %1998 = vmatprep.subr.mxu0 0.0
    %1999 = vmatpush1.xpose.msra.mxu0 0.0
    %2000 = vmatprep.subr.mxu0 0.0
    %2001 = vmatpush1.xpose.msra.mxu0 0.0
    %2002 = vmatprep.subr.mxu0 0.0
    %2003 = vmatpush1.xpose.msra.mxu0 0.0
    %2004 = vmatprep.subr.mxu0 0.0
    %2005 = vmatpush1.xpose.msra.mxu0 0.0
    %2006 = vmatprep.subr.mxu0 0.0
    %2007 = vmatpush1.xpose.msra.mxu0 0.0
    %2008 = vmatprep.subr.mxu0 0.0
    %2009 = vmatpush1.xpose.msra.mxu0 0.0
    %2010 = vmatprep.subr.mxu0 0.0
    %2011 = vmatpush1.xpose.msra.mxu0 0.0
    %2012 = vmatprep.subr.mxu0 0.0
    %2013 = vmatpush1.xpose.msra.mxu0 0.0
    %2014 = vmatprep.subr.mxu0 0.0
    %2015 = vmatpush1.xpose.msra.mxu0 0.0
    %2016 = vmatprep.subr.mxu0 0.0
    %2017 = vmatpush1.xpose.msra.mxu0 0.0
    %2018 = vmatprep.subr.mxu0 0.0
    %2019 = vmatpush1.xpose.msra.mxu0 0.0
    %2020 = vmatprep.subr.mxu0 0.0
    %2021 = vmatpush1.xpose.msra.mxu0 0.0
    %2022 = vmatprep.subr.mxu0 0.0
    %2023 = vmatpush1.xpose.msra.mxu0 0.0
    %2024 = vmatprep.subr.mxu0 0.0
    %2025 = vmatpush1.xpose.msra.mxu0 0.0
    %2026 = vmatprep.mubr.f32.mxu0 0.0
    %2027 = vmatmul.mubr.f32.gmra.mrb[0].mxu0 %v1957
    %v2028 = vpop.f32.mrb[0].mxu0
    %v2029 = vadd.f32 %v51, %v2028
    %v2030 = vpop.f32.mrb[0].mxu0
    %2031 = vdwg.mxu0
    %v2033 = vsel %vm375, %v1953, 0
    %v2036 = vsel %vm375, %v290, 0
    %2038 = vmatprep.subr.mxu0 0.0
    %2039 = vmatpush1.xpose.msra.mxu0 %v2036
    %2040 = vmatprep.subr.mxu0 0.0
    %2041 = vmatpush1.xpose.msra.mxu0 0.0
    %2042 = vmatprep.subr.mxu0 0.0
    %2043 = vmatpush1.xpose.msra.mxu0 0.0
    %2044 = vmatprep.subr.mxu0 0.0
    %2045 = vmatpush1.xpose.msra.mxu0 0.0
    %2046 = vmatprep.subr.mxu0 0.0
    %2047 = vmatpush1.xpose.msra.mxu0 0.0
    %2048 = vmatprep.subr.mxu0 0.0
    %2049 = vmatpush1.xpose.msra.mxu0 0.0
    %2050 = vmatprep.subr.mxu0 0.0
    %2051 = vmatpush1.xpose.msra.mxu0 0.0
    %2052 = vmatprep.subr.mxu0 0.0
    %2053 = vmatpush1.xpose.msra.mxu0 0.0
    %2054 = vmatprep.subr.mxu0 0.0
    %2055 = vmatpush1.xpose.msra.mxu0 0.0
    %2056 = vmatprep.subr.mxu0 0.0
    %2057 = vmatpush1.xpose.msra.mxu0 0.0
    %2058 = vmatprep.subr.mxu0 0.0
    %2059 = vmatpush1.xpose.msra.mxu0 0.0
    %2060 = vmatprep.subr.mxu0 0.0
    %2061 = vmatpush1.xpose.msra.mxu0 0.0
    %2062 = vmatprep.subr.mxu0 0.0
    %2063 = vmatpush1.xpose.msra.mxu0 0.0
    %2064 = vmatprep.subr.mxu0 0.0
    %2065 = vmatpush1.xpose.msra.mxu0 0.0
    %2066 = vmatprep.subr.mxu0 0.0
    %2067 = vmatpush1.xpose.msra.mxu0 0.0
    %2068 = vmatprep.subr.mxu0 0.0
    %2069 = vmatpush1.xpose.msra.mxu0 0.0
    %2070 = vmatprep.subr.mxu0 0.0
    %2071 = vmatpush1.xpose.msra.mxu0 0.0
    %2072 = vmatprep.subr.mxu0 0.0
    %2073 = vmatpush1.xpose.msra.mxu0 0.0
    %2074 = vmatprep.subr.mxu0 0.0
    %2075 = vmatpush1.xpose.msra.mxu0 0.0
    %2076 = vmatprep.subr.mxu0 0.0
    %2077 = vmatpush1.xpose.msra.mxu0 0.0
    %2078 = vmatprep.subr.mxu0 0.0
    %2079 = vmatpush1.xpose.msra.mxu0 0.0
    %2080 = vmatprep.subr.mxu0 0.0
    %2081 = vmatpush1.xpose.msra.mxu0 0.0
    %2082 = vmatprep.subr.mxu0 0.0
    %2083 = vmatpush1.xpose.msra.mxu0 0.0
    %2084 = vmatprep.subr.mxu0 0.0
    %2085 = vmatpush1.xpose.msra.mxu0 0.0
    %2086 = vmatprep.subr.mxu0 0.0
    %2087 = vmatpush1.xpose.msra.mxu0 0.0
    %2088 = vmatprep.subr.mxu0 0.0
    %2089 = vmatpush1.xpose.msra.mxu0 0.0
    %2090 = vmatprep.subr.mxu0 0.0
    %2091 = vmatpush1.xpose.msra.mxu0 0.0
    %2092 = vmatprep.subr.mxu0 0.0
    %2093 = vmatpush1.xpose.msra.mxu0 0.0
    %2094 = vmatprep.subr.mxu0 0.0
    %2095 = vmatpush1.xpose.msra.mxu0 0.0
    %2096 = vmatprep.subr.mxu0 0.0
    %2097 = vmatpush1.xpose.msra.mxu0 0.0
    %2098 = vmatprep.subr.mxu0 0.0
    %2099 = vmatpush1.xpose.msra.mxu0 0.0
    %2100 = vmatprep.subr.mxu0 0.0
    %2101 = vmatpush1.xpose.msra.mxu0 0.0
    %2102 = vmatprep.mubr.f32.mxu0 0.0
    %2103 = vmatmul.mubr.f32.gmra.mrb[0].mxu0 %v2033
    %v2104 = vpop.f32.mrb[0].mxu0
    %v2105 = vadd.f32 %v52, %v2104
    %v2106 = vpop.f32.mrb[0].mxu0
    %2107 = vdwg.mxu0
    %v2108 = vsel %vm528, %v2029, -inf
    %2109 = vmax.xlane.f32.xlu0 %v2108
    %v2110 = vpop.xlane.xlu0 %2109
    %v2111 = vsel %vm528, %v2105, -inf
    %2112 = vmax.xlane.f32.xlu0 %v2111
    %v2113 = vpop.xlane.xlu0 %2112
    %v2114 = vsub.f32 %v2029, %v2110
    %v2115 = vsub.f32 %v2105, %v2113
    %v2116 = vmul.f32 %v2114, 1.442695
    %v2117 = vpow.pop %v2116
    %v2118 = vmul.f32 %v2115, 1.442695
    %v2119 = vpow.pop %v2118
    %v2120 = vsel %vm528, %v2117, 0.0
    %2121 = vadd.xlane.f32.xlu0 %v2120
    %v2122 = vpop.xlane.xlu0 %2121
    %v2123 = vsel %vm528, %v2119, 0.0
    %2124 = vadd.xlane.f32.xlu0 %v2123
    %v2125 = vpop.xlane.xlu0 %2124
    %v2126 = vrcp.pop %v2122
    %v2127 = vrcp.pop %v2125
    %v2128 = vmul.f32 %v2117, %v2126
    %v2129 = vmul.f32 %v2119, %v2127
    %2130 = vst.msk [vmem:[#allocation6] sm:$0xff] %vm528, %v2128
    %2131 = vst.msk [vmem:[#allocation6 + $0x20] sm:$0xff] %vm528, %v2129
    %v2133 = vsel %vm528, %v2128, 0
    %2135 = vmatprep.subr.mxu0 0.0
    %2136 = vmatpush1.msra.mxu0 %v367
    %2137 = vmatprep.subr.mxu0 0.0
    %2138 = vmatpush1.msra.mxu0 0.0
    %2139 = vmatprep.subr.mxu0 0.0
    %2140 = vmatpush1.msra.mxu0 0.0
    %2141 = vmatprep.subr.mxu0 0.0
    %2142 = vmatpush1.msra.mxu0 0.0
    %2143 = vmatprep.subr.mxu0 0.0
    %2144 = vmatpush1.msra.mxu0 0.0
    %2145 = vmatprep.subr.mxu0 0.0
    %2146 = vmatpush1.msra.mxu0 0.0
    %2147 = vmatprep.subr.mxu0 0.0
    %2148 = vmatpush1.msra.mxu0 0.0
    %2149 = vmatprep.subr.mxu0 0.0
    %2150 = vmatpush1.msra.mxu0 0.0
    %2151 = vmatprep.subr.mxu0 0.0
    %2152 = vmatpush1.msra.mxu0 0.0
    %2153 = vmatprep.subr.mxu0 0.0
    %2154 = vmatpush1.msra.mxu0 0.0
    %2155 = vmatprep.subr.mxu0 0.0
    %2156 = vmatpush1.msra.mxu0 0.0
    %2157 = vmatprep.subr.mxu0 0.0
    %2158 = vmatpush1.msra.mxu0 0.0
    %2159 = vmatprep.subr.mxu0 0.0
    %2160 = vmatpush1.msra.mxu0 0.0
    %2161 = vmatprep.subr.mxu0 0.0
    %2162 = vmatpush1.msra.mxu0 0.0
    %2163 = vmatprep.subr.mxu0 0.0
    %2164 = vmatpush1.msra.mxu0 0.0
    %2165 = vmatprep.subr.mxu0 0.0
    %2166 = vmatpush1.msra.mxu0 0.0
    %2167 = vmatprep.subr.mxu0 0.0
    %2168 = vmatpush1.msra.mxu0 0.0
    %2169 = vmatprep.subr.mxu0 0.0
    %2170 = vmatpush1.msra.mxu0 0.0
    %2171 = vmatprep.subr.mxu0 0.0
    %2172 = vmatpush1.msra.mxu0 0.0
    %2173 = vmatprep.subr.mxu0 0.0
    %2174 = vmatpush1.msra.mxu0 0.0
    %2175 = vmatprep.subr.mxu0 0.0
    %2176 = vmatpush1.msra.mxu0 0.0
    %2177 = vmatprep.subr.mxu0 0.0
    %2178 = vmatpush1.msra.mxu0 0.0
    %2179 = vmatprep.subr.mxu0 0.0
    %2180 = vmatpush1.msra.mxu0 0.0
    %2181 = vmatprep.subr.mxu0 0.0
    %2182 = vmatpush1.msra.mxu0 0.0
    %2183 = vmatprep.subr.mxu0 0.0
    %2184 = vmatpush1.msra.mxu0 0.0
    %2185 = vmatprep.subr.mxu0 0.0
    %2186 = vmatpush1.msra.mxu0 0.0
    %2187 = vmatprep.subr.mxu0 0.0
    %2188 = vmatpush1.msra.mxu0 0.0
    %2189 = vmatprep.subr.mxu0 0.0
    %2190 = vmatpush1.msra.mxu0 0.0
    %2191 = vmatprep.subr.mxu0 0.0
    %2192 = vmatpush1.msra.mxu0 0.0
    %2193 = vmatprep.subr.mxu0 0.0
    %2194 = vmatpush1.msra.mxu0 0.0
    %2195 = vmatprep.subr.mxu0 0.0
    %2196 = vmatpush1.msra.mxu0 0.0
    %2197 = vmatprep.subr.mxu0 0.0
    %2198 = vmatpush1.msra.mxu0 0.0
    %2199 = vmatprep.mubr.f32.mxu0 0.0
    %2200 = vmatmul.mubr.f32.gmra.mrb[0].mxu0 %v2133
    %v2201 = vpop.f32.mrb[0].mxu0
    %v2202 = vadd.f32 0.0, %v2201
    %v2203 = vpop.f32.mrb[0].mxu0
    %2204 = vdwg.mxu0
    %v2206 = vsel %vm528, %v2129, 0
    %2208 = vmatprep.subr.mxu0 0.0
    %2209 = vmatpush1.msra.mxu0 %v372
    %2210 = vmatprep.subr.mxu0 0.0
    %2211 = vmatpush1.msra.mxu0 0.0
    %2212 = vmatprep.subr.mxu0 0.0
    %2213 = vmatpush1.msra.mxu0 0.0
    %2214 = vmatprep.subr.mxu0 0.0
    %2215 = vmatpush1.msra.mxu0 0.0
    %2216 = vmatprep.subr.mxu0 0.0
    %2217 = vmatpush1.msra.mxu0 0.0
    %2218 = vmatprep.subr.mxu0 0.0
    %2219 = vmatpush1.msra.mxu0 0.0
    %2220 = vmatprep.subr.mxu0 0.0
    %2221 = vmatpush1.msra.mxu0 0.0
    %2222 = vmatprep.subr.mxu0 0.0
    %2223 = vmatpush1.msra.mxu0 0.0
    %2224 = vmatprep.subr.mxu0 0.0
    %2225 = vmatpush1.msra.mxu0 0.0
    %2226 = vmatprep.subr.mxu0 0.0
    %2227 = vmatpush1.msra.mxu0 0.0
    %2228 = vmatprep.subr.mxu0 0.0
    %2229 = vmatpush1.msra.mxu0 0.0
    %2230 = vmatprep.subr.mxu0 0.0
    %2231 = vmatpush1.msra.mxu0 0.0
    %2232 = vmatprep.subr.mxu0 0.0
    %2233 = vmatpush1.msra.mxu0 0.0
    %2234 = vmatprep.subr.mxu0 0.0
    %2235 = vmatpush1.msra.mxu0 0.0
    %2236 = vmatprep.subr.mxu0 0.0
    %2237 = vmatpush1.msra.mxu0 0.0
    %2238 = vmatprep.subr.mxu0 0.0
    %2239 = vmatpush1.msra.mxu0 0.0
    %2240 = vmatprep.subr.mxu0 0.0
    %2241 = vmatpush1.msra.mxu0 0.0
    %2242 = vmatprep.subr.mxu0 0.0
    %2243 = vmatpush1.msra.mxu0 0.0
    %2244 = vmatprep.subr.mxu0 0.0
    %2245 = vmatpush1.msra.mxu0 0.0
    %2246 = vmatprep.subr.mxu0 0.0
    %2247 = vmatpush1.msra.mxu0 0.0
    %2248 = vmatprep.subr.mxu0 0.0
    %2249 = vmatpush1.msra.mxu0 0.0
    %2250 = vmatprep.subr.mxu0 0.0
    %2251 = vmatpush1.msra.mxu0 0.0
    %2252 = vmatprep.subr.mxu0 0.0
    %2253 = vmatpush1.msra.mxu0 0.0
    %2254 = vmatprep.subr.mxu0 0.0
    %2255 = vmatpush1.msra.mxu0 0.0
    %2256 = vmatprep.subr.mxu0 0.0
    %2257 = vmatpush1.msra.mxu0 0.0
    %2258 = vmatprep.subr.mxu0 0.0
    %2259 = vmatpush1.msra.mxu0 0.0
    %2260 = vmatprep.subr.mxu0 0.0
    %2261 = vmatpush1.msra.mxu0 0.0
    %2262 = vmatprep.subr.mxu0 0.0
    %2263 = vmatpush1.msra.mxu0 0.0
    %2264 = vmatprep.subr.mxu0 0.0
    %2265 = vmatpush1.msra.mxu0 0.0
    %2266 = vmatprep.subr.mxu0 0.0
    %2267 = vmatpush1.msra.mxu0 0.0
    %2268 = vmatprep.subr.mxu0 0.0
    %2269 = vmatpush1.msra.mxu0 0.0
    %2270 = vmatprep.subr.mxu0 0.0
    %2271 = vmatpush1.msra.mxu0 0.0
    %2272 = vmatprep.mubr.f32.mxu0 0.0
    %2273 = vmatmul.mubr.f32.gmra.mrb[0].mxu0 %v2206
    %v2274 = vpop.f32.mrb[0].mxu0
    %v2275 = vadd.f32 0.0, %v2274
    %v2276 = vpop.f32.mrb[0].mxu0
    %2277 = vdwg.mxu0
    %2278 = vrot.lane.b32.xlu0 %v1948, 112
    %v2279 = vpop.permute.xlu0 %2278
    %2280 = vrot.lane.b32.xlu0 %v285, 112
    %v2281 = vpop.permute.xlu0 %2280
    %v2282 = vsel %vm375, %v2279, 0
    %v2284 = vsel %vm375, %v2281, 0
    %2286 = vmatprep.subr.mxu0 0.0
    %2287 = vmatpush1.xpose.msra.mxu0 %v2284
    %2288 = vmatprep.subr.mxu0 0.0
    %2289 = vmatpush1.xpose.msra.mxu0 0.0
    %2290 = vmatprep.subr.mxu0 0.0
    %2291 = vmatpush1.xpose.msra.mxu0 0.0
    %2292 = vmatprep.subr.mxu0 0.0
    %2293 = vmatpush1.xpose.msra.mxu0 0.0
    %2294 = vmatprep.subr.mxu0 0.0
    %2295 = vmatpush1.xpose.msra.mxu0 0.0
    %2296 = vmatprep.subr.mxu0 0.0
    %2297 = vmatpush1.xpose.msra.mxu0 0.0
    %2298 = vmatprep.subr.mxu0 0.0
    %2299 = vmatpush1.xpose.msra.mxu0 0.0
    %2300 = vmatprep.subr.mxu0 0.0
    %2301 = vmatpush1.xpose.msra.mxu0 0.0
    %2302 = vmatprep.subr.mxu0 0.0
    %2303 = vmatpush1.xpose.msra.mxu0 0.0
    %2304 = vmatprep.subr.mxu0 0.0
    %2305 = vmatpush1.xpose.msra.mxu0 0.0
    %2306 = vmatprep.subr.mxu0 0.0
    %2307 = vmatpush1.xpose.msra.mxu0 0.0
    %2308 = vmatprep.subr.mxu0 0.0
    %2309 = vmatpush1.xpose.msra.mxu0 0.0
    %2310 = vmatprep.subr.mxu0 0.0
    %2311 = vmatpush1.xpose.msra.mxu0 0.0
    %2312 = vmatprep.subr.mxu0 0.0
    %2313 = vmatpush1.xpose.msra.mxu0 0.0
    %2314 = vmatprep.subr.mxu0 0.0
    %2315 = vmatpush1.xpose.msra.mxu0 0.0
    %2316 = vmatprep.subr.mxu0 0.0
    %2317 = vmatpush1.xpose.msra.mxu0 0.0
    %2318 = vmatprep.subr.mxu0 0.0
    %2319 = vmatpush1.xpose.msra.mxu0 0.0
    %2320 = vmatprep.subr.mxu0 0.0
    %2321 = vmatpush1.xpose.msra.mxu0 0.0
    %2322 = vmatprep.subr.mxu0 0.0
    %2323 = vmatpush1.xpose.msra.mxu0 0.0
    %2324 = vmatprep.subr.mxu0 0.0
    %2325 = vmatpush1.xpose.msra.mxu0 0.0
    %2326 = vmatprep.subr.mxu0 0.0
    %2327 = vmatpush1.xpose.msra.mxu0 0.0
    %2328 = vmatprep.subr.mxu0 0.0
    %2329 = vmatpush1.xpose.msra.mxu0 0.0
    %2330 = vmatprep.subr.mxu0 0.0
    %2331 = vmatpush1.xpose.msra.mxu0 0.0
    %2332 = vmatprep.subr.mxu0 0.0
    %2333 = vmatpush1.xpose.msra.mxu0 0.0
    %2334 = vmatprep.subr.mxu0 0.0
    %2335 = vmatpush1.xpose.msra.mxu0 0.0
    %2336 = vmatprep.subr.mxu0 0.0
    %2337 = vmatpush1.xpose.msra.mxu0 0.0
    %2338 = vmatprep.subr.mxu0 0.0
    %2339 = vmatpush1.xpose.msra.mxu0 0.0
    %2340 = vmatprep.subr.mxu0 0.0
    %2341 = vmatpush1.xpose.msra.mxu0 0.0
    %2342 = vmatprep.subr.mxu0 0.0
    %2343 = vmatpush1.xpose.msra.mxu0 0.0
    %2344 = vmatprep.subr.mxu0 0.0
    %2345 = vmatpush1.xpose.msra.mxu0 0.0
    %2346 = vmatprep.subr.mxu0 0.0
    %2347 = vmatpush1.xpose.msra.mxu0 0.0
    %2348 = vmatprep.subr.mxu0 0.0
    %2349 = vmatpush1.xpose.msra.mxu0 0.0
    %2350 = vmatprep.mubr.f32.mxu0 0.0
    %2351 = vmatmul.mubr.f32.gmra.mrb[0].mxu0 %v2282
    %v2352 = vpop.f32.mrb[0].mxu0
    %v2353 = vadd.f32 %v51, %v2352
    %v2354 = vpop.f32.mrb[0].mxu0
    %2355 = vdwg.mxu0
    %2356 = vrot.lane.b32.xlu0 %v1953, 112
    %v2357 = vpop.permute.xlu0 %2356
    %2358 = vrot.lane.b32.xlu0 %v290, 112
    %v2359 = vpop.permute.xlu0 %2358
    %v2360 = vsel %vm375, %v2357, 0
    %v2362 = vsel %vm375, %v2359, 0
    %2364 = vmatprep.subr.mxu0 0.0
    %2365 = vmatpush1.xpose.msra.mxu0 %v2362
    %2366 = vmatprep.subr.mxu0 0.0
    %2367 = vmatpush1.xpose.msra.mxu0 0.0
    %2368 = vmatprep.subr.mxu0 0.0
    %2369 = vmatpush1.xpose.msra.mxu0 0.0
    %2370 = vmatprep.subr.mxu0 0.0
    %2371 = vmatpush1.xpose.msra.mxu0 0.0
    %2372 = vmatprep.subr.mxu0 0.0
    %2373 = vmatpush1.xpose.msra.mxu0 0.0
    %2374 = vmatprep.subr.mxu0 0.0
    %2375 = vmatpush1.xpose.msra.mxu0 0.0
    %2376 = vmatprep.subr.mxu0 0.0
    %2377 = vmatpush1.xpose.msra.mxu0 0.0
    %2378 = vmatprep.subr.mxu0 0.0
    %2379 = vmatpush1.xpose.msra.mxu0 0.0
    %2380 = vmatprep.subr.mxu0 0.0
    %2381 = vmatpush1.xpose.msra.mxu0 0.0
    %2382 = vmatprep.subr.mxu0 0.0
    %2383 = vmatpush1.xpose.msra.mxu0 0.0
    %2384 = vmatprep.subr.mxu0 0.0
    %2385 = vmatpush1.xpose.msra.mxu0 0.0
    %2386 = vmatprep.subr.mxu0 0.0
    %2387 = vmatpush1.xpose.msra.mxu0 0.0
    %2388 = vmatprep.subr.mxu0 0.0
    %2389 = vmatpush1.xpose.msra.mxu0 0.0
    %2390 = vmatprep.subr.mxu0 0.0
    %2391 = vmatpush1.xpose.msra.mxu0 0.0
    %2392 = vmatprep.subr.mxu0 0.0
    %2393 = vmatpush1.xpose.msra.mxu0 0.0
    %2394 = vmatprep.subr.mxu0 0.0
    %2395 = vmatpush1.xpose.msra.mxu0 0.0
    %2396 = vmatprep.subr.mxu0 0.0
    %2397 = vmatpush1.xpose.msra.mxu0 0.0
    %2398 = vmatprep.subr.mxu0 0.0
    %2399 = vmatpush1.xpose.msra.mxu0 0.0
    %2400 = vmatprep.subr.mxu0 0.0
    %2401 = vmatpush1.xpose.msra.mxu0 0.0
    %2402 = vmatprep.subr.mxu0 0.0
    %2403 = vmatpush1.xpose.msra.mxu0 0.0
    %2404 = vmatprep.subr.mxu0 0.0
    %2405 = vmatpush1.xpose.msra.mxu0 0.0
    %2406 = vmatprep.subr.mxu0 0.0
    %2407 = vmatpush1.xpose.msra.mxu0 0.0
    %2408 = vmatprep.subr.mxu0 0.0
    %2409 = vmatpush1.xpose.msra.mxu0 0.0
    %2410 = vmatprep.subr.mxu0 0.0
    %2411 = vmatpush1.xpose.msra.mxu0 0.0
    %2412 = vmatprep.subr.mxu0 0.0
    %2413 = vmatpush1.xpose.msra.mxu0 0.0
    %2414 = vmatprep.subr.mxu0 0.0
    %2415 = vmatpush1.xpose.msra.mxu0 0.0
    %2416 = vmatprep.subr.mxu0 0.0
    %2417 = vmatpush1.xpose.msra.mxu0 0.0
    %2418 = vmatprep.subr.mxu0 0.0
    %2419 = vmatpush1.xpose.msra.mxu0 0.0
    %2420 = vmatprep.subr.mxu0 0.0
    %2421 = vmatpush1.xpose.msra.mxu0 0.0
    %2422 = vmatprep.subr.mxu0 0.0
    %2423 = vmatpush1.xpose.msra.mxu0 0.0
    %2424 = vmatprep.subr.mxu0 0.0
    %2425 = vmatpush1.xpose.msra.mxu0 0.0
    %2426 = vmatprep.subr.mxu0 0.0
    %2427 = vmatpush1.xpose.msra.mxu0 0.0
    %2428 = vmatprep.mubr.f32.mxu0 0.0
    %2429 = vmatmul.mubr.f32.gmra.mrb[0].mxu0 %v2360
    %v2430 = vpop.f32.mrb[0].mxu0
    %v2431 = vadd.f32 %v52, %v2430
    %v2432 = vpop.f32.mrb[0].mxu0
    %2433 = vdwg.mxu0
    %v2434 = vsel %vm528, %v2353, -inf
    %2435 = vmax.xlane.f32.xlu0 %v2434
    %v2436 = vpop.xlane.xlu0 %2435
    %v2437 = vsel %vm528, %v2431, -inf
    %2438 = vmax.xlane.f32.xlu0 %v2437
    %v2439 = vpop.xlane.xlu0 %2438
    %v2440 = vsub.f32 %v2353, %v2436
    %v2441 = vsub.f32 %v2431, %v2439
    %v2442 = vmul.f32 %v2440, 1.442695
    %v2443 = vpow.pop %v2442
    %v2444 = vmul.f32 %v2441, 1.442695
    %v2445 = vpow.pop %v2444
    %v2446 = vsel %vm528, %v2443, 0.0
    %2447 = vadd.xlane.f32.xlu0 %v2446
    %v2448 = vpop.xlane.xlu0 %2447
    %v2449 = vsel %vm528, %v2445, 0.0
    %2450 = vadd.xlane.f32.xlu0 %v2449
    %v2451 = vpop.xlane.xlu0 %2450
    %v2452 = vrcp.pop %v2448
    %v2453 = vrcp.pop %v2451
    %v2454 = vmul.f32 %v2443, %v2452
    %v2455 = vmul.f32 %v2445, %v2453
    %s2456 = scalar_lea.vmem [#allocation6], 8
    %2457 = vst.msk [vmem:[%s2456] sm:$0xff] %vm528, %v2454
    %2458 = vst.msk [vmem:[%s2456 + $0x20] sm:$0xff] %vm528, %v2455
    %2460 = vrot.lane.b32.xlu0 %v367, 112
    %v2461 = vpop.permute.xlu0 %2460
    %v2464 = vsel %vm528, %v2454, 0
    %2466 = vmatprep.subr.mxu0 0.0
    %2467 = vmatpush1.msra.mxu0 %v2461
    %2468 = vmatprep.subr.mxu0 0.0
    %2469 = vmatpush1.msra.mxu0 0.0
    %2470 = vmatprep.subr.mxu0 0.0
    %2471 = vmatpush1.msra.mxu0 0.0
    %2472 = vmatprep.subr.mxu0 0.0
    %2473 = vmatpush1.msra.mxu0 0.0
    %2474 = vmatprep.subr.mxu0 0.0
    %2475 = vmatpush1.msra.mxu0 0.0
    %2476 = vmatprep.subr.mxu0 0.0
    %2477 = vmatpush1.msra.mxu0 0.0
    %2478 = vmatprep.subr.mxu0 0.0
    %2479 = vmatpush1.msra.mxu0 0.0
    %2480 = vmatprep.subr.mxu0 0.0
    %2481 = vmatpush1.msra.mxu0 0.0
    %2482 = vmatprep.subr.mxu0 0.0
    %2483 = vmatpush1.msra.mxu0 0.0
    %2484 = vmatprep.subr.mxu0 0.0
    %2485 = vmatpush1.msra.mxu0 0.0
    %2486 = vmatprep.subr.mxu0 0.0
    %2487 = vmatpush1.msra.mxu0 0.0
    %2488 = vmatprep.subr.mxu0 0.0
    %2489 = vmatpush1.msra.mxu0 0.0
    %2490 = vmatprep.subr.mxu0 0.0
    %2491 = vmatpush1.msra.mxu0 0.0
    %2492 = vmatprep.subr.mxu0 0.0
    %2493 = vmatpush1.msra.mxu0 0.0
    %2494 = vmatprep.subr.mxu0 0.0
    %2495 = vmatpush1.msra.mxu0 0.0
    %2496 = vmatprep.subr.mxu0 0.0
    %2497 = vmatpush1.msra.mxu0 0.0
    %2498 = vmatprep.subr.mxu0 0.0
    %2499 = vmatpush1.msra.mxu0 0.0
    %2500 = vmatprep.subr.mxu0 0.0
    %2501 = vmatpush1.msra.mxu0 0.0
    %2502 = vmatprep.subr.mxu0 0.0
    %2503 = vmatpush1.msra.mxu0 0.0
    %2504 = vmatprep.subr.mxu0 0.0
    %2505 = vmatpush1.msra.mxu0 0.0
    %2506 = vmatprep.subr.mxu0 0.0
    %2507 = vmatpush1.msra.mxu0 0.0
    %2508 = vmatprep.subr.mxu0 0.0
    %2509 = vmatpush1.msra.mxu0 0.0
    %2510 = vmatprep.subr.mxu0 0.0
    %2511 = vmatpush1.msra.mxu0 0.0
    %2512 = vmatprep.subr.mxu0 0.0
    %2513 = vmatpush1.msra.mxu0 0.0
    %2514 = vmatprep.subr.mxu0 0.0
    %2515 = vmatpush1.msra.mxu0 0.0
    %2516 = vmatprep.subr.mxu0 0.0
    %2517 = vmatpush1.msra.mxu0 0.0
    %2518 = vmatprep.subr.mxu0 0.0
    %2519 = vmatpush1.msra.mxu0 0.0
    %2520 = vmatprep.subr.mxu0 0.0
    %2521 = vmatpush1.msra.mxu0 0.0
    %2522 = vmatprep.subr.mxu0 0.0
    %2523 = vmatpush1.msra.mxu0 0.0
    %2524 = vmatprep.subr.mxu0 0.0
    %2525 = vmatpush1.msra.mxu0 0.0
    %2526 = vmatprep.subr.mxu0 0.0
    %2527 = vmatpush1.msra.mxu0 0.0
    %2528 = vmatprep.subr.mxu0 0.0
    %2529 = vmatpush1.msra.mxu0 0.0
    %2530 = vmatprep.mubr.f32.mxu0 0.0
    %2531 = vmatmul.mubr.f32.gmra.mrb[0].mxu0 %v2464
    %v2532 = vpop.f32.mrb[0].mxu0
    %v2533 = vadd.f32 0.0, %v2532
    %v2534 = vpop.f32.mrb[0].mxu0
    %2535 = vdwg.mxu0
    %2537 = vrot.lane.b32.xlu0 %v372, 112
    %v2538 = vpop.permute.xlu0 %2537
    %v2541 = vsel %vm528, %v2455, 0
    %2543 = vmatprep.subr.mxu0 0.0
    %2544 = vmatpush1.msra.mxu0 %v2538
    %2545 = vmatprep.subr.mxu0 0.0
    %2546 = vmatpush1.msra.mxu0 0.0
    %2547 = vmatprep.subr.mxu0 0.0
    %2548 = vmatpush1.msra.mxu0 0.0
    %2549 = vmatprep.subr.mxu0 0.0
    %2550 = vmatpush1.msra.mxu0 0.0
    %2551 = vmatprep.subr.mxu0 0.0
    %2552 = vmatpush1.msra.mxu0 0.0
    %2553 = vmatprep.subr.mxu0 0.0
    %2554 = vmatpush1.msra.mxu0 0.0
    %2555 = vmatprep.subr.mxu0 0.0
    %2556 = vmatpush1.msra.mxu0 0.0
    %2557 = vmatprep.subr.mxu0 0.0
    %2558 = vmatpush1.msra.mxu0 0.0
    %2559 = vmatprep.subr.mxu0 0.0
    %2560 = vmatpush1.msra.mxu0 0.0
    %2561 = vmatprep.subr.mxu0 0.0
    %2562 = vmatpush1.msra.mxu0 0.0
    %2563 = vmatprep.subr.mxu0 0.0
    %2564 = vmatpush1.msra.mxu0 0.0
    %2565 = vmatprep.subr.mxu0 0.0
    %2566 = vmatpush1.msra.mxu0 0.0
    %2567 = vmatprep.subr.mxu0 0.0
    %2568 = vmatpush1.msra.mxu0 0.0
    %2569 = vmatprep.subr.mxu0 0.0
    %2570 = vmatpush1.msra.mxu0 0.0
    %2571 = vmatprep.subr.mxu0 0.0
    %2572 = vmatpush1.msra.mxu0 0.0
    %2573 = vmatprep.subr.mxu0 0.0
    %2574 = vmatpush1.msra.mxu0 0.0
    %2575 = vmatprep.subr.mxu0 0.0
    %2576 = vmatpush1.msra.mxu0 0.0
    %2577 = vmatprep.subr.mxu0 0.0
    %2578 = vmatpush1.msra.mxu0 0.0
    %2579 = vmatprep.subr.mxu0 0.0
    %2580 = vmatpush1.msra.mxu0 0.0
    %2581 = vmatprep.subr.mxu0 0.0
    %2582 = vmatpush1.msra.mxu0 0.0
    %2583 = vmatprep.subr.mxu0 0.0
    %2584 = vmatpush1.msra.mxu0 0.0
    %2585 = vmatprep.subr.mxu0 0.0
    %2586 = vmatpush1.msra.mxu0 0.0
    %2587 = vmatprep.subr.mxu0 0.0
    %2588 = vmatpush1.msra.mxu0 0.0
    %2589 = vmatprep.subr.mxu0 0.0
    %2590 = vmatpush1.msra.mxu0 0.0
    %2591 = vmatprep.subr.mxu0 0.0
    %2592 = vmatpush1.msra.mxu0 0.0
    %2593 = vmatprep.subr.mxu0 0.0
    %2594 = vmatpush1.msra.mxu0 0.0
    %2595 = vmatprep.subr.mxu0 0.0
    %2596 = vmatpush1.msra.mxu0 0.0
    %2597 = vmatprep.subr.mxu0 0.0
    %2598 = vmatpush1.msra.mxu0 0.0
    %2599 = vmatprep.subr.mxu0 0.0
    %2600 = vmatpush1.msra.mxu0 0.0
    %2601 = vmatprep.subr.mxu0 0.0
    %2602 = vmatpush1.msra.mxu0 0.0
    %2603 = vmatprep.subr.mxu0 0.0
    %2604 = vmatpush1.msra.mxu0 0.0
    %2605 = vmatprep.subr.mxu0 0.0
    %2606 = vmatpush1.msra.mxu0 0.0
    %2607 = vmatprep.mubr.f32.mxu0 0.0
    %2608 = vmatmul.mubr.f32.gmra.mrb[0].mxu0 %v2541
    %v2609 = vpop.f32.mrb[0].mxu0
    %v2610 = vadd.f32 0.0, %v2609
    %v2611 = vpop.f32.mrb[0].mxu0
    %2612 = vdwg.mxu0
    %2613 = vrot.lane.b32.xlu0 %v1948, 96
    %v2614 = vpop.permute.xlu0 %2613
    %2615 = vrot.lane.b32.xlu0 %v285, 96
    %v2616 = vpop.permute.xlu0 %2615
    %v2617 = vsel %vm375, %v2614, 0
    %v2619 = vsel %vm375, %v2616, 0
    %2621 = vmatprep.subr.mxu0 0.0
    %2622 = vmatpush1.xpose.msra.mxu0 %v2619
    %2623 = vmatprep.subr.mxu0 0.0
    %2624 = vmatpush1.xpose.msra.mxu0 0.0
    %2625 = vmatprep.subr.mxu0 0.0
    %2626 = vmatpush1.xpose.msra.mxu0 0.0
    %2627 = vmatprep.subr.mxu0 0.0
    %2628 = vmatpush1.xpose.msra.mxu0 0.0
    %2629 = vmatprep.subr.mxu0 0.0
    %2630 = vmatpush1.xpose.msra.mxu0 0.0
    %2631 = vmatprep.subr.mxu0 0.0
    %2632 = vmatpush1.xpose.msra.mxu0 0.0
    %2633 = vmatprep.subr.mxu0 0.0
    %2634 = vmatpush1.xpose.msra.mxu0 0.0
    %2635 = vmatprep.subr.mxu0 0.0
    %2636 = vmatpush1.xpose.msra.mxu0 0.0
    %2637 = vmatprep.subr.mxu0 0.0
    %2638 = vmatpush1.xpose.msra.mxu0 0.0
    %2639 = vmatprep.subr.mxu0 0.0
    %2640 = vmatpush1.xpose.msra.mxu0 0.0
    %2641 = vmatprep.subr.mxu0 0.0
    %2642 = vmatpush1.xpose.msra.mxu0 0.0
    %2643 = vmatprep.subr.mxu0 0.0
    %2644 = vmatpush1.xpose.msra.mxu0 0.0
    %2645 = vmatprep.subr.mxu0 0.0
    %2646 = vmatpush1.xpose.msra.mxu0 0.0
    %2647 = vmatprep.subr.mxu0 0.0
    %2648 = vmatpush1.xpose.msra.mxu0 0.0
    %2649 = vmatprep.subr.mxu0 0.0
    %2650 = vmatpush1.xpose.msra.mxu0 0.0
    %2651 = vmatprep.subr.mxu0 0.0
    %2652 = vmatpush1.xpose.msra.mxu0 0.0
    %2653 = vmatprep.subr.mxu0 0.0
    %2654 = vmatpush1.xpose.msra.mxu0 0.0
    %2655 = vmatprep.subr.mxu0 0.0
    %2656 = vmatpush1.xpose.msra.mxu0 0.0
    %2657 = vmatprep.subr.mxu0 0.0
    %2658 = vmatpush1.xpose.msra.mxu0 0.0
    %2659 = vmatprep.subr.mxu0 0.0
    %2660 = vmatpush1.xpose.msra.mxu0 0.0
    %2661 = vmatprep.subr.mxu0 0.0
    %2662 = vmatpush1.xpose.msra.mxu0 0.0
    %2663 = vmatprep.subr.mxu0 0.0
    %2664 = vmatpush1.xpose.msra.mxu0 0.0
    %2665 = vmatprep.subr.mxu0 0.0
    %2666 = vmatpush1.xpose.msra.mxu0 0.0
    %2667 = vmatprep.subr.mxu0 0.0
    %2668 = vmatpush1.xpose.msra.mxu0 0.0
    %2669 = vmatprep.subr.mxu0 0.0
    %2670 = vmatpush1.xpose.msra.mxu0 0.0
    %2671 = vmatprep.subr.mxu0 0.0
    %2672 = vmatpush1.xpose.msra.mxu0 0.0
    %2673 = vmatprep.subr.mxu0 0.0
    %2674 = vmatpush1.xpose.msra.mxu0 0.0
    %2675 = vmatprep.subr.mxu0 0.0
    %2676 = vmatpush1.xpose.msra.mxu0 0.0
    %2677 = vmatprep.subr.mxu0 0.0
    %2678 = vmatpush1.xpose.msra.mxu0 0.0
    %2679 = vmatprep.subr.mxu0 0.0
    %2680 = vmatpush1.xpose.msra.mxu0 0.0
    %2681 = vmatprep.subr.mxu0 0.0
    %2682 = vmatpush1.xpose.msra.mxu0 0.0
    %2683 = vmatprep.subr.mxu0 0.0
    %2684 = vmatpush1.xpose.msra.mxu0 0.0
    %2685 = vmatprep.mubr.f32.mxu0 0.0
    %2686 = vmatmul.mubr.f32.gmra.mrb[0].mxu0 %v2617
    %v2687 = vpop.f32.mrb[0].mxu0
    %v2688 = vadd.f32 %v51, %v2687
    %v2689 = vpop.f32.mrb[0].mxu0
    %2690 = vdwg.mxu0
    %2691 = vrot.lane.b32.xlu0 %v1953, 96
    %v2692 = vpop.permute.xlu0 %2691
    %2693 = vrot.lane.b32.xlu0 %v290, 96
    %v2694 = vpop.permute.xlu0 %2693
    %v2695 = vsel %vm375, %v2692, 0
    %v2697 = vsel %vm375, %v2694, 0
    %2699 = vmatprep.subr.mxu0 0.0
    %2700 = vmatpush1.xpose.msra.mxu0 %v2697
    %2701 = vmatprep.subr.mxu0 0.0
    %2702 = vmatpush1.xpose.msra.mxu0 0.0
    %2703 = vmatprep.subr.mxu0 0.0
    %2704 = vmatpush1.xpose.msra.mxu0 0.0
    %2705 = vmatprep.subr.mxu0 0.0
    %2706 = vmatpush1.xpose.msra.mxu0 0.0
    %2707 = vmatprep.subr.mxu0 0.0
    %2708 = vmatpush1.xpose.msra.mxu0 0.0
    %2709 = vmatprep.subr.mxu0 0.0
    %2710 = vmatpush1.xpose.msra.mxu0 0.0
    %2711 = vmatprep.subr.mxu0 0.0
    %2712 = vmatpush1.xpose.msra.mxu0 0.0
    %2713 = vmatprep.subr.mxu0 0.0
    %2714 = vmatpush1.xpose.msra.mxu0 0.0
    %2715 = vmatprep.subr.mxu0 0.0
    %2716 = vmatpush1.xpose.msra.mxu0 0.0
    %2717 = vmatprep.subr.mxu0 0.0
    %2718 = vmatpush1.xpose.msra.mxu0 0.0
    %2719 = vmatprep.subr.mxu0 0.0
    %2720 = vmatpush1.xpose.msra.mxu0 0.0
    %2721 = vmatprep.subr.mxu0 0.0
    %2722 = vmatpush1.xpose.msra.mxu0 0.0
    %2723 = vmatprep.subr.mxu0 0.0
    %2724 = vmatpush1.xpose.msra.mxu0 0.0
    %2725 = vmatprep.subr.mxu0 0.0
    %2726 = vmatpush1.xpose.msra.mxu0 0.0
    %2727 = vmatprep.subr.mxu0 0.0
    %2728 = vmatpush1.xpose.msra.mxu0 0.0
    %2729 = vmatprep.subr.mxu0 0.0
    %2730 = vmatpush1.xpose.msra.mxu0 0.0
    %2731 = vmatprep.subr.mxu0 0.0
    %2732 = vmatpush1.xpose.msra.mxu0 0.0
    %2733 = vmatprep.subr.mxu0 0.0
    %2734 = vmatpush1.xpose.msra.mxu0 0.0
    %2735 = vmatprep.subr.mxu0 0.0
    %2736 = vmatpush1.xpose.msra.mxu0 0.0
    %2737 = vmatprep.subr.mxu0 0.0
    %2738 = vmatpush1.xpose.msra.mxu0 0.0
    %2739 = vmatprep.subr.mxu0 0.0
    %2740 = vmatpush1.xpose.msra.mxu0 0.0
    %2741 = vmatprep.subr.mxu0 0.0
    %2742 = vmatpush1.xpose.msra.mxu0 0.0
    %2743 = vmatprep.subr.mxu0 0.0
    %2744 = vmatpush1.xpose.msra.mxu0 0.0
    %2745 = vmatprep.subr.mxu0 0.0
    %2746 = vmatpush1.xpose.msra.mxu0 0.0
    %2747 = vmatprep.subr.mxu0 0.0
    %2748 = vmatpush1.xpose.msra.mxu0 0.0
    %2749 = vmatprep.subr.mxu0 0.0
    %2750 = vmatpush1.xpose.msra.mxu0 0.0
    %2751 = vmatprep.subr.mxu0 0.0
    %2752 = vmatpush1.xpose.msra.mxu0 0.0
    %2753 = vmatprep.subr.mxu0 0.0
    %2754 = vmatpush1.xpose.msra.mxu0 0.0
    %2755 = vmatprep.subr.mxu0 0.0
    %2756 = vmatpush1.xpose.msra.mxu0 0.0
    %2757 = vmatprep.subr.mxu0 0.0
    %2758 = vmatpush1.xpose.msra.mxu0 0.0
    %2759 = vmatprep.subr.mxu0 0.0
    %2760 = vmatpush1.xpose.msra.mxu0 0.0
    %2761 = vmatprep.subr.mxu0 0.0
    %2762 = vmatpush1.xpose.msra.mxu0 0.0
    %2763 = vmatprep.mubr.f32.mxu0 0.0
    %2764 = vmatmul.mubr.f32.gmra.mrb[0].mxu0 %v2695
    %v2765 = vpop.f32.mrb[0].mxu0
    %v2766 = vadd.f32 %v52, %v2765
    %v2767 = vpop.f32.mrb[0].mxu0
    %2768 = vdwg.mxu0
    %v2769 = vsel %vm528, %v2688, -inf
    %2770 = vmax.xlane.f32.xlu0 %v2769
    %v2771 = vpop.xlane.xlu0 %2770
    %v2772 = vsel %vm528, %v2766, -inf
    %2773 = vmax.xlane.f32.xlu0 %v2772
    %v2774 = vpop.xlane.xlu0 %2773
    %v2775 = vsub.f32 %v2688, %v2771
    %v2776 = vsub.f32 %v2766, %v2774
    %v2777 = vmul.f32 %v2775, 1.442695
    %v2778 = vpow.pop %v2777
    %v2779 = vmul.f32 %v2776, 1.442695
    %v2780 = vpow.pop %v2779
    %v2781 = vsel %vm528, %v2778, 0.0
    %2782 = vadd.xlane.f32.xlu0 %v2781
    %v2783 = vpop.xlane.xlu0 %2782
    %v2784 = vsel %vm528, %v2780, 0.0
    %2785 = vadd.xlane.f32.xlu0 %v2784
    %v2786 = vpop.xlane.xlu0 %2785
    %v2787 = vrcp.pop %v2783
    %v2788 = vrcp.pop %v2786
    %v2789 = vmul.f32 %v2778, %v2787
    %v2790 = vmul.f32 %v2780, %v2788
    %s2791 = scalar_lea.vmem [#allocation6], 16
    %2792 = vst.msk [vmem:[%s2791] sm:$0xff] %vm528, %v2789
    %2793 = vst.msk [vmem:[%s2791 + $0x20] sm:$0xff] %vm528, %v2790
    %2794 = vrot.lane.b32.xlu0 %v367, 96
    %v2795 = vpop.permute.xlu0 %2794
    %v2798 = vsel %vm528, %v2789, 0
    %2800 = vmatprep.subr.mxu0 0.0
    %2801 = vmatpush1.msra.mxu0 %v2795
    %2802 = vmatprep.subr.mxu0 0.0
    %2803 = vmatpush1.msra.mxu0 0.0
    %2804 = vmatprep.subr.mxu0 0.0
    %2805 = vmatpush1.msra.mxu0 0.0
    %2806 = vmatprep.subr.mxu0 0.0
    %2807 = vmatpush1.msra.mxu0 0.0
    %2808 = vmatprep.subr.mxu0 0.0
    %2809 = vmatpush1.msra.mxu0 0.0
    %2810 = vmatprep.subr.mxu0 0.0
    %2811 = vmatpush1.msra.mxu0 0.0
    %2812 = vmatprep.subr.mxu0 0.0
    %2813 = vmatpush1.msra.mxu0 0.0
    %2814 = vmatprep.subr.mxu0 0.0
    %2815 = vmatpush1.msra.mxu0 0.0
    %2816 = vmatprep.subr.mxu0 0.0
    %2817 = vmatpush1.msra.mxu0 0.0
    %2818 = vmatprep.subr.mxu0 0.0
    %2819 = vmatpush1.msra.mxu0 0.0
    %2820 = vmatprep.subr.mxu0 0.0
    %2821 = vmatpush1.msra.mxu0 0.0
    %2822 = vmatprep.subr.mxu0 0.0
    %2823 = vmatpush1.msra.mxu0 0.0
    %2824 = vmatprep.subr.mxu0 0.0
    %2825 = vmatpush1.msra.mxu0 0.0
    %2826 = vmatprep.subr.mxu0 0.0
    %2827 = vmatpush1.msra.mxu0 0.0
    %2828 = vmatprep.subr.mxu0 0.0
    %2829 = vmatpush1.msra.mxu0 0.0
    %2830 = vmatprep.subr.mxu0 0.0
    %2831 = vmatpush1.msra.mxu0 0.0
    %2832 = vmatprep.subr.mxu0 0.0
    %2833 = vmatpush1.msra.mxu0 0.0
    %2834 = vmatprep.subr.mxu0 0.0
    %2835 = vmatpush1.msra.mxu0 0.0
    %2836 = vmatprep.subr.mxu0 0.0
    %2837 = vmatpush1.msra.mxu0 0.0
    %2838 = vmatprep.subr.mxu0 0.0
    %2839 = vmatpush1.msra.mxu0 0.0
    %2840 = vmatprep.subr.mxu0 0.0
    %2841 = vmatpush1.msra.mxu0 0.0
    %2842 = vmatprep.subr.mxu0 0.0
    %2843 = vmatpush1.msra.mxu0 0.0
    %2844 = vmatprep.subr.mxu0 0.0
    %2845 = vmatpush1.msra.mxu0 0.0
    %2846 = vmatprep.subr.mxu0 0.0
    %2847 = vmatpush1.msra.mxu0 0.0
    %2848 = vmatprep.subr.mxu0 0.0
    %2849 = vmatpush1.msra.mxu0 0.0
    %2850 = vmatprep.subr.mxu0 0.0
    %2851 = vmatpush1.msra.mxu0 0.0
    %2852 = vmatprep.subr.mxu0 0.0
    %2853 = vmatpush1.msra.mxu0 0.0
    %2854 = vmatprep.subr.mxu0 0.0
    %2855 = vmatpush1.msra.mxu0 0.0
    %2856 = vmatprep.subr.mxu0 0.0
    %2857 = vmatpush1.msra.mxu0 0.0
    %2858 = vmatprep.subr.mxu0 0.0
    %2859 = vmatpush1.msra.mxu0 0.0
    %2860 = vmatprep.subr.mxu0 0.0
    %2861 = vmatpush1.msra.mxu0 0.0
    %2862 = vmatprep.subr.mxu0 0.0
    %2863 = vmatpush1.msra.mxu0 0.0
    %2864 = vmatprep.mubr.f32.mxu0 0.0
    %2865 = vmatmul.mubr.f32.gmra.mrb[0].mxu0 %v2798
    %v2866 = vpop.f32.mrb[0].mxu0
    %v2867 = vadd.f32 0.0, %v2866
    %v2868 = vpop.f32.mrb[0].mxu0
    %2869 = vdwg.mxu0
    %2870 = vrot.lane.b32.xlu0 %v372, 96
    %v2871 = vpop.permute.xlu0 %2870
    %v2874 = vsel %vm528, %v2790, 0
    %2876 = vmatprep.subr.mxu0 0.0
    %2877 = vmatpush1.msra.mxu0 %v2871
    %2878 = vmatprep.subr.mxu0 0.0
    %2879 = vmatpush1.msra.mxu0 0.0
    %2880 = vmatprep.subr.mxu0 0.0
    %2881 = vmatpush1.msra.mxu0 0.0
    %2882 = vmatprep.subr.mxu0 0.0
    %2883 = vmatpush1.msra.mxu0 0.0
    %2884 = vmatprep.subr.mxu0 0.0
    %2885 = vmatpush1.msra.mxu0 0.0
    %2886 = vmatprep.subr.mxu0 0.0
    %2887 = vmatpush1.msra.mxu0 0.0
    %2888 = vmatprep.subr.mxu0 0.0
    %2889 = vmatpush1.msra.mxu0 0.0
    %2890 = vmatprep.subr.mxu0 0.0
    %2891 = vmatpush1.msra.mxu0 0.0
    %2892 = vmatprep.subr.mxu0 0.0
    %2893 = vmatpush1.msra.mxu0 0.0
    %2894 = vmatprep.subr.mxu0 0.0
    %2895 = vmatpush1.msra.mxu0 0.0
    %2896 = vmatprep.subr.mxu0 0.0
    %2897 = vmatpush1.msra.mxu0 0.0
    %2898 = vmatprep.subr.mxu0 0.0
    %2899 = vmatpush1.msra.mxu0 0.0
    %2900 = vmatprep.subr.mxu0 0.0
    %2901 = vmatpush1.msra.mxu0 0.0
    %2902 = vmatprep.subr.mxu0 0.0
    %2903 = vmatpush1.msra.mxu0 0.0
    %2904 = vmatprep.subr.mxu0 0.0
    %2905 = vmatpush1.msra.mxu0 0.0
    %2906 = vmatprep.subr.mxu0 0.0
    %2907 = vmatpush1.msra.mxu0 0.0
    %2908 = vmatprep.subr.mxu0 0.0
    %2909 = vmatpush1.msra.mxu0 0.0
    %2910 = vmatprep.subr.mxu0 0.0
    %2911 = vmatpush1.msra.mxu0 0.0
    %2912 = vmatprep.subr.mxu0 0.0
    %2913 = vmatpush1.msra.mxu0 0.0
    %2914 = vmatprep.subr.mxu0 0.0
    %2915 = vmatpush1.msra.mxu0 0.0
    %2916 = vmatprep.subr.mxu0 0.0
    %2917 = vmatpush1.msra.mxu0 0.0
    %2918 = vmatprep.subr.mxu0 0.0
    %2919 = vmatpush1.msra.mxu0 0.0
    %2920 = vmatprep.subr.mxu0 0.0
    %2921 = vmatpush1.msra.mxu0 0.0
    %2922 = vmatprep.subr.mxu0 0.0
    %2923 = vmatpush1.msra.mxu0 0.0
    %2924 = vmatprep.subr.mxu0 0.0
    %2925 = vmatpush1.msra.mxu0 0.0
    %2926 = vmatprep.subr.mxu0 0.0
    %2927 = vmatpush1.msra.mxu0 0.0
    %2928 = vmatprep.subr.mxu0 0.0
    %2929 = vmatpush1.msra.mxu0 0.0
    %2930 = vmatprep.subr.mxu0 0.0
    %2931 = vmatpush1.msra.mxu0 0.0
    %2932 = vmatprep.subr.mxu0 0.0
    %2933 = vmatpush1.msra.mxu0 0.0
    %2934 = vmatprep.subr.mxu0 0.0
    %2935 = vmatpush1.msra.mxu0 0.0
    %2936 = vmatprep.subr.mxu0 0.0
    %2937 = vmatpush1.msra.mxu0 0.0
    %2938 = vmatprep.subr.mxu0 0.0
    %2939 = vmatpush1.msra.mxu0 0.0
    %2940 = vmatprep.mubr.f32.mxu0 0.0
    %2941 = vmatmul.mubr.f32.gmra.mrb[0].mxu0 %v2874
    %v2942 = vpop.f32.mrb[0].mxu0
    %v2943 = vadd.f32 0.0, %v2942
    %v2944 = vpop.f32.mrb[0].mxu0
    %2945 = vdwg.mxu0
    %2946 = vrot.lane.b32.xlu0 %v1948, 80
    %v2947 = vpop.permute.xlu0 %2946
    %2948 = vrot.lane.b32.xlu0 %v285, 80
    %v2949 = vpop.permute.xlu0 %2948
    %v2950 = vsel %vm375, %v2947, 0
    %v2952 = vsel %vm375, %v2949, 0
    %2954 = vmatprep.subr.mxu0 0.0
    %2955 = vmatpush1.xpose.msra.mxu0 %v2952
    %2956 = vmatprep.subr.mxu0 0.0
    %2957 = vmatpush1.xpose.msra.mxu0 0.0
    %2958 = vmatprep.subr.mxu0 0.0
    %2959 = vmatpush1.xpose.msra.mxu0 0.0
    %2960 = vmatprep.subr.mxu0 0.0
    %2961 = vmatpush1.xpose.msra.mxu0 0.0
    %2962 = vmatprep.subr.mxu0 0.0
    %2963 = vmatpush1.xpose.msra.mxu0 0.0
    %2964 = vmatprep.subr.mxu0 0.0
    %2965 = vmatpush1.xpose.msra.mxu0 0.0
    %2966 = vmatprep.subr.mxu0 0.0
    %2967 = vmatpush1.xpose.msra.mxu0 0.0
    %2968 = vmatprep.subr.mxu0 0.0
    %2969 = vmatpush1.xpose.msra.mxu0 0.0
    %2970 = vmatprep.subr.mxu0 0.0
    %2971 = vmatpush1.xpose.msra.mxu0 0.0
    %2972 = vmatprep.subr.mxu0 0.0
    %2973 = vmatpush1.xpose.msra.mxu0 0.0
    %2974 = vmatprep.subr.mxu0 0.0
    %2975 = vmatpush1.xpose.msra.mxu0 0.0
    %2976 = vmatprep.subr.mxu0 0.0
    %2977 = vmatpush1.xpose.msra.mxu0 0.0
    %2978 = vmatprep.subr.mxu0 0.0
    %2979 = vmatpush1.xpose.msra.mxu0 0.0
    %2980 = vmatprep.subr.mxu0 0.0
    %2981 = vmatpush1.xpose.msra.mxu0 0.0
    %2982 = vmatprep.subr.mxu0 0.0
    %2983 = vmatpush1.xpose.msra.mxu0 0.0
    %2984 = vmatprep.subr.mxu0 0.0
    %2985 = vmatpush1.xpose.msra.mxu0 0.0
    %2986 = vmatprep.subr.mxu0 0.0
    %2987 = vmatpush1.xpose.msra.mxu0 0.0
    %2988 = vmatprep.subr.mxu0 0.0
    %2989 = vmatpush1.xpose.msra.mxu0 0.0
    %2990 = vmatprep.subr.mxu0 0.0
    %2991 = vmatpush1.xpose.msra.mxu0 0.0
    %2992 = vmatprep.subr.mxu0 0.0
    %2993 = vmatpush1.xpose.msra.mxu0 0.0
    %2994 = vmatprep.subr.mxu0 0.0
    %2995 = vmatpush1.xpose.msra.mxu0 0.0
    %2996 = vmatprep.subr.mxu0 0.0
    %2997 = vmatpush1.xpose.msra.mxu0 0.0
    %2998 = vmatprep.subr.mxu0 0.0
    %2999 = vmatpush1.xpose.msra.mxu0 0.0
    %3000 = vmatprep.subr.mxu0 0.0
    %3001 = vmatpush1.xpose.msra.mxu0 0.0
    %3002 = vmatprep.subr.mxu0 0.0
    %3003 = vmatpush1.xpose.msra.mxu0 0.0
    %3004 = vmatprep.subr.mxu0 0.0
    %3005 = vmatpush1.xpose.msra.mxu0 0.0
    %3006 = vmatprep.subr.mxu0 0.0
    %3007 = vmatpush1.xpose.msra.mxu0 0.0
    %3008 = vmatprep.subr.mxu0 0.0
    %3009 = vmatpush1.xpose.msra.mxu0 0.0
    %3010 = vmatprep.subr.mxu0 0.0
    %3011 = vmatpush1.xpose.msra.mxu0 0.0
    %3012 = vmatprep.subr.mxu0 0.0
    %3013 = vmatpush1.xpose.msra.mxu0 0.0
    %3014 = vmatprep.subr.mxu0 0.0
    %3015 = vmatpush1.xpose.msra.mxu0 0.0
    %3016 = vmatprep.subr.mxu0 0.0
    %3017 = vmatpush1.xpose.msra.mxu0 0.0
    %3018 = vmatprep.mubr.f32.mxu0 0.0
    %3019 = vmatmul.mubr.f32.gmra.mrb[0].mxu0 %v2950
    %v3020 = vpop.f32.mrb[0].mxu0
    %v3021 = vadd.f32 %v51, %v3020
    %v3022 = vpop.f32.mrb[0].mxu0
    %3023 = vdwg.mxu0
    %3024 = vrot.lane.b32.xlu0 %v1953, 80
    %v3025 = vpop.permute.xlu0 %3024
    %3026 = vrot.lane.b32.xlu0 %v290, 80
    %v3027 = vpop.permute.xlu0 %3026
    %v3028 = vsel %vm375, %v3025, 0
    %v3030 = vsel %vm375, %v3027, 0
    %3032 = vmatprep.subr.mxu0 0.0
    %3033 = vmatpush1.xpose.msra.mxu0 %v3030
    %3034 = vmatprep.subr.mxu0 0.0
    %3035 = vmatpush1.xpose.msra.mxu0 0.0
    %3036 = vmatprep.subr.mxu0 0.0
    %3037 = vmatpush1.xpose.msra.mxu0 0.0
    %3038 = vmatprep.subr.mxu0 0.0
    %3039 = vmatpush1.xpose.msra.mxu0 0.0
    %3040 = vmatprep.subr.mxu0 0.0
    %3041 = vmatpush1.xpose.msra.mxu0 0.0
    %3042 = vmatprep.subr.mxu0 0.0
    %3043 = vmatpush1.xpose.msra.mxu0 0.0
    %3044 = vmatprep.subr.mxu0 0.0
    %3045 = vmatpush1.xpose.msra.mxu0 0.0
    %3046 = vmatprep.subr.mxu0 0.0
    %3047 = vmatpush1.xpose.msra.mxu0 0.0
    %3048 = vmatprep.subr.mxu0 0.0
    %3049 = vmatpush1.xpose.msra.mxu0 0.0
    %3050 = vmatprep.subr.mxu0 0.0
    %3051 = vmatpush1.xpose.msra.mxu0 0.0
    %3052 = vmatprep.subr.mxu0 0.0
    %3053 = vmatpush1.xpose.msra.mxu0 0.0
    %3054 = vmatprep.subr.mxu0 0.0
    %3055 = vmatpush1.xpose.msra.mxu0 0.0
    %3056 = vmatprep.subr.mxu0 0.0
    %3057 = vmatpush1.xpose.msra.mxu0 0.0
    %3058 = vmatprep.subr.mxu0 0.0
    %3059 = vmatpush1.xpose.msra.mxu0 0.0
    %3060 = vmatprep.subr.mxu0 0.0
    %3061 = vmatpush1.xpose.msra.mxu0 0.0
    %3062 = vmatprep.subr.mxu0 0.0
    %3063 = vmatpush1.xpose.msra.mxu0 0.0
    %3064 = vmatprep.subr.mxu0 0.0
    %3065 = vmatpush1.xpose.msra.mxu0 0.0
    %3066 = vmatprep.subr.mxu0 0.0
    %3067 = vmatpush1.xpose.msra.mxu0 0.0
    %3068 = vmatprep.subr.mxu0 0.0
    %3069 = vmatpush1.xpose.msra.mxu0 0.0
    %3070 = vmatprep.subr.mxu0 0.0
    %3071 = vmatpush1.xpose.msra.mxu0 0.0
    %3072 = vmatprep.subr.mxu0 0.0
    %3073 = vmatpush1.xpose.msra.mxu0 0.0
    %3074 = vmatprep.subr.mxu0 0.0
    %3075 = vmatpush1.xpose.msra.mxu0 0.0
    %3076 = vmatprep.subr.mxu0 0.0
    %3077 = vmatpush1.xpose.msra.mxu0 0.0
    %3078 = vmatprep.subr.mxu0 0.0
    %3079 = vmatpush1.xpose.msra.mxu0 0.0
    %3080 = vmatprep.subr.mxu0 0.0
    %3081 = vmatpush1.xpose.msra.mxu0 0.0
    %3082 = vmatprep.subr.mxu0 0.0
    %3083 = vmatpush1.xpose.msra.mxu0 0.0
    %3084 = vmatprep.subr.mxu0 0.0
    %3085 = vmatpush1.xpose.msra.mxu0 0.0
    %3086 = vmatprep.subr.mxu0 0.0
    %3087 = vmatpush1.xpose.msra.mxu0 0.0
    %3088 = vmatprep.subr.mxu0 0.0
    %3089 = vmatpush1.xpose.msra.mxu0 0.0
    %3090 = vmatprep.subr.mxu0 0.0
    %3091 = vmatpush1.xpose.msra.mxu0 0.0
    %3092 = vmatprep.subr.mxu0 0.0
    %3093 = vmatpush1.xpose.msra.mxu0 0.0
    %3094 = vmatprep.subr.mxu0 0.0
    %3095 = vmatpush1.xpose.msra.mxu0 0.0
    %3096 = vmatprep.mubr.f32.mxu0 0.0
    %3097 = vmatmul.mubr.f32.gmra.mrb[0].mxu0 %v3028
    %v3098 = vpop.f32.mrb[0].mxu0
    %v3099 = vadd.f32 %v52, %v3098
    %v3100 = vpop.f32.mrb[0].mxu0
    %3101 = vdwg.mxu0
    %v3102 = vsel %vm528, %v3021, -inf
    %3103 = vmax.xlane.f32.xlu0 %v3102
    %v3104 = vpop.xlane.xlu0 %3103
    %v3105 = vsel %vm528, %v3099, -inf
    %3106 = vmax.xlane.f32.xlu0 %v3105
    %v3107 = vpop.xlane.xlu0 %3106
    %v3108 = vsub.f32 %v3021, %v3104
    %v3109 = vsub.f32 %v3099, %v3107
    %v3110 = vmul.f32 %v3108, 1.442695
    %v3111 = vpow.pop %v3110
    %v3112 = vmul.f32 %v3109, 1.442695
    %v3113 = vpow.pop %v3112
    %v3114 = vsel %vm528, %v3111, 0.0
    %3115 = vadd.xlane.f32.xlu0 %v3114
    %v3116 = vpop.xlane.xlu0 %3115
    %v3117 = vsel %vm528, %v3113, 0.0
    %3118 = vadd.xlane.f32.xlu0 %v3117
    %v3119 = vpop.xlane.xlu0 %3118
    %v3120 = vrcp.pop %v3116
    %v3121 = vrcp.pop %v3119
    %v3122 = vmul.f32 %v3111, %v3120
    %v3123 = vmul.f32 %v3113, %v3121
    %s3124 = scalar_lea.vmem [#allocation6], 24
    %3125 = vst.msk [vmem:[%s3124] sm:$0xff] %vm528, %v3122
    %3126 = vst.msk [vmem:[%s3124 + $0x20] sm:$0xff] %vm528, %v3123
    %3127 = vrot.lane.b32.xlu0 %v367, 80
    %v3128 = vpop.permute.xlu0 %3127
    %v3131 = vsel %vm528, %v3122, 0
    %3133 = vmatprep.subr.mxu0 0.0
    %3134 = vmatpush1.msra.mxu0 %v3128
    %3135 = vmatprep.subr.mxu0 0.0
    %3136 = vmatpush1.msra.mxu0 0.0
    %3137 = vmatprep.subr.mxu0 0.0
    %3138 = vmatpush1.msra.mxu0 0.0
    %3139 = vmatprep.subr.mxu0 0.0
    %3140 = vmatpush1.msra.mxu0 0.0
    %3141 = vmatprep.subr.mxu0 0.0
    %3142 = vmatpush1.msra.mxu0 0.0
    %3143 = vmatprep.subr.mxu0 0.0
    %3144 = vmatpush1.msra.mxu0 0.0
    %3145 = vmatprep.subr.mxu0 0.0
    %3146 = vmatpush1.msra.mxu0 0.0
    %3147 = vmatprep.subr.mxu0 0.0
    %3148 = vmatpush1.msra.mxu0 0.0
    %3149 = vmatprep.subr.mxu0 0.0
    %3150 = vmatpush1.msra.mxu0 0.0
    %3151 = vmatprep.subr.mxu0 0.0
    %3152 = vmatpush1.msra.mxu0 0.0
    %3153 = vmatprep.subr.mxu0 0.0
    %3154 = vmatpush1.msra.mxu0 0.0
    %3155 = vmatprep.subr.mxu0 0.0
    %3156 = vmatpush1.msra.mxu0 0.0
    %3157 = vmatprep.subr.mxu0 0.0
    %3158 = vmatpush1.msra.mxu0 0.0
    %3159 = vmatprep.subr.mxu0 0.0
    %3160 = vmatpush1.msra.mxu0 0.0
    %3161 = vmatprep.subr.mxu0 0.0
    %3162 = vmatpush1.msra.mxu0 0.0
    %3163 = vmatprep.subr.mxu0 0.0
    %3164 = vmatpush1.msra.mxu0 0.0
    %3165 = vmatprep.subr.mxu0 0.0
    %3166 = vmatpush1.msra.mxu0 0.0
    %3167 = vmatprep.subr.mxu0 0.0
    %3168 = vmatpush1.msra.mxu0 0.0
    %3169 = vmatprep.subr.mxu0 0.0
    %3170 = vmatpush1.msra.mxu0 0.0
    %3171 = vmatprep.subr.mxu0 0.0
    %3172 = vmatpush1.msra.mxu0 0.0
    %3173 = vmatprep.subr.mxu0 0.0
    %3174 = vmatpush1.msra.mxu0 0.0
    %3175 = vmatprep.subr.mxu0 0.0
    %3176 = vmatpush1.msra.mxu0 0.0
    %3177 = vmatprep.subr.mxu0 0.0
    %3178 = vmatpush1.msra.mxu0 0.0
    %3179 = vmatprep.subr.mxu0 0.0
    %3180 = vmatpush1.msra.mxu0 0.0
    %3181 = vmatprep.subr.mxu0 0.0
    %3182 = vmatpush1.msra.mxu0 0.0
    %3183 = vmatprep.subr.mxu0 0.0
    %3184 = vmatpush1.msra.mxu0 0.0
    %3185 = vmatprep.subr.mxu0 0.0
    %3186 = vmatpush1.msra.mxu0 0.0
    %3187 = vmatprep.subr.mxu0 0.0
    %3188 = vmatpush1.msra.mxu0 0.0
    %3189 = vmatprep.subr.mxu0 0.0
    %3190 = vmatpush1.msra.mxu0 0.0
    %3191 = vmatprep.subr.mxu0 0.0
    %3192 = vmatpush1.msra.mxu0 0.0
    %3193 = vmatprep.subr.mxu0 0.0
    %3194 = vmatpush1.msra.mxu0 0.0
    %3195 = vmatprep.subr.mxu0 0.0
    %3196 = vmatpush1.msra.mxu0 0.0
    %3197 = vmatprep.mubr.f32.mxu0 0.0
    %3198 = vmatmul.mubr.f32.gmra.mrb[0].mxu0 %v3131
    %v3199 = vpop.f32.mrb[0].mxu0
    %v3200 = vadd.f32 0.0, %v3199
    %v3201 = vpop.f32.mrb[0].mxu0
    %3202 = vdwg.mxu0
    %3203 = vrot.lane.b32.xlu0 %v372, 80
    %v3204 = vpop.permute.xlu0 %3203
    %v3207 = vsel %vm528, %v3123, 0
    %3209 = vmatprep.subr.mxu0 0.0
    %3210 = vmatpush1.msra.mxu0 %v3204
    %3211 = vmatprep.subr.mxu0 0.0
    %3212 = vmatpush1.msra.mxu0 0.0
    %3213 = vmatprep.subr.mxu0 0.0
    %3214 = vmatpush1.msra.mxu0 0.0
    %3215 = vmatprep.subr.mxu0 0.0
    %3216 = vmatpush1.msra.mxu0 0.0
    %3217 = vmatprep.subr.mxu0 0.0
    %3218 = vmatpush1.msra.mxu0 0.0
    %3219 = vmatprep.subr.mxu0 0.0
    %3220 = vmatpush1.msra.mxu0 0.0
    %3221 = vmatprep.subr.mxu0 0.0
    %3222 = vmatpush1.msra.mxu0 0.0
    %3223 = vmatprep.subr.mxu0 0.0
    %3224 = vmatpush1.msra.mxu0 0.0
    %3225 = vmatprep.subr.mxu0 0.0
    %3226 = vmatpush1.msra.mxu0 0.0
    %3227 = vmatprep.subr.mxu0 0.0
    %3228 = vmatpush1.msra.mxu0 0.0
    %3229 = vmatprep.subr.mxu0 0.0
    %3230 = vmatpush1.msra.mxu0 0.0
    %3231 = vmatprep.subr.mxu0 0.0
    %3232 = vmatpush1.msra.mxu0 0.0
    %3233 = vmatprep.subr.mxu0 0.0
    %3234 = vmatpush1.msra.mxu0 0.0
    %3235 = vmatprep.subr.mxu0 0.0
    %3236 = vmatpush1.msra.mxu0 0.0
    %3237 = vmatprep.subr.mxu0 0.0
    %3238 = vmatpush1.msra.mxu0 0.0
    %3239 = vmatprep.subr.mxu0 0.0
    %3240 = vmatpush1.msra.mxu0 0.0
    %3241 = vmatprep.subr.mxu0 0.0
    %3242 = vmatpush1.msra.mxu0 0.0
    %3243 = vmatprep.subr.mxu0 0.0
    %3244 = vmatpush1.msra.mxu0 0.0
    %3245 = vmatprep.subr.mxu0 0.0
    %3246 = vmatpush1.msra.mxu0 0.0
    %3247 = vmatprep.subr.mxu0 0.0
    %3248 = vmatpush1.msra.mxu0 0.0
    %3249 = vmatprep.subr.mxu0 0.0
    %3250 = vmatpush1.msra.mxu0 0.0
    %3251 = vmatprep.subr.mxu0 0.0
    %3252 = vmatpush1.msra.mxu0 0.0
    %3253 = vmatprep.subr.mxu0 0.0
    %3254 = vmatpush1.msra.mxu0 0.0
    %3255 = vmatprep.subr.mxu0 0.0
    %3256 = vmatpush1.msra.mxu0 0.0
    %3257 = vmatprep.subr.mxu0 0.0
    %3258 = vmatpush1.msra.mxu0 0.0
    %3259 = vmatprep.subr.mxu0 0.0
    %3260 = vmatpush1.msra.mxu0 0.0
    %3261 = vmatprep.subr.mxu0 0.0
    %3262 = vmatpush1.msra.mxu0 0.0
    %3263 = vmatprep.subr.mxu0 0.0
    %3264 = vmatpush1.msra.mxu0 0.0
    %3265 = vmatprep.subr.mxu0 0.0
    %3266 = vmatpush1.msra.mxu0 0.0
    %3267 = vmatprep.subr.mxu0 0.0
    %3268 = vmatpush1.msra.mxu0 0.0
    %3269 = vmatprep.subr.mxu0 0.0
    %3270 = vmatpush1.msra.mxu0 0.0
    %3271 = vmatprep.subr.mxu0 0.0
    %3272 = vmatpush1.msra.mxu0 0.0
    %3273 = vmatprep.mubr.f32.mxu0 0.0
    %3274 = vmatmul.mubr.f32.gmra.mrb[0].mxu0 %v3207
    %v3275 = vpop.f32.mrb[0].mxu0
    %v3276 = vadd.f32 0.0, %v3275
    %v3277 = vpop.f32.mrb[0].mxu0
    %3278 = vdwg.mxu0
    %3281 = vrot.lane.b32.xlu0 %v2533, 16
    %v3282 = vpop.permute.xlu0 %3281
    %3283 = vrot.lane.b32.xlu0 %v2610, 16
    %v3284 = vpop.permute.xlu0 %3283
    %3289 = vrot.lane.b32.xlu0 %v2867, 32
    %v3290 = vpop.permute.xlu0 %3289
    %3291 = vrot.lane.b32.xlu0 %v2943, 32
    %v3292 = vpop.permute.xlu0 %3291
    %3297 = vrot.lane.b32.xlu0 %v3200, 48
    %v3298 = vpop.permute.xlu0 %3297
    %3299 = vrot.lane.b32.xlu0 %v3276, 48
    %v3300 = vpop.permute.xlu0 %3299
    %v3303 = vsel %vm375, %v2202, %v3282
    %v3304 = vsel %vm375, %v2275, %v3284
    %v3305 = vsel %vm109, %v3303, %v3290
    %v3306 = vsel %vm109, %v3304, %v3292
    %v3307 = vsel %vm1728, %v3305, %v3298
    %v3308 = vsel %vm1728, %v3306, %v3300
    %v3309 = vld [vmem:[%s6 + $0x40] sm:$0xff]
    %v3310 = vld [vmem:[%s6 + $0x48] sm:$0xff]
    %v3311 = vld [vmem:[%s6 + $0x50] sm:$0xff]
    %v3312 = vld [vmem:[%s6 + $0x58] sm:$0xff]
    %v3313 = vld [vmem:[%s6 + $0x60] sm:$0xff]
    %v3314 = vld [vmem:[%s6 + $0x68] sm:$0xff]
    %v3315 = vld [vmem:[%s6 + $0x70] sm:$0xff]
    %v3316 = vld [vmem:[%s6 + $0x78] sm:$0xff]
    %v3317 = vlaneseq
    %v3318 = vshrl.u32 %v3317, 7
    %v3319 = vsub.s32 0, %v3318
    %v3320 = vrot.slane %v54, %v3319
    %v3322 = vsel %vm1743, %v3307, 0
    %v3325 = vsel %vm1743, %v3308, 0
    %3327 = vmatprep.subr.mxu0 0.0
    %3328 = vmatpush1.msra.mxu0 %v3309
    %3329 = vmatprep.subr.mxu0 0.0
    %3330 = vmatpush1.msra.mxu0 %v3310
    %3331 = vmatprep.subr.mxu0 0.0
    %3332 = vmatpush1.msra.mxu0 %v3311
    %3333 = vmatprep.subr.mxu0 0.0
    %3334 = vmatpush1.msra.mxu0 %v3312
    %3335 = vmatprep.subr.mxu0 0.0
    %3336 = vmatpush1.msra.mxu0 %v3313
    %3337 = vmatprep.subr.mxu0 0.0
    %3338 = vmatpush1.msra.mxu0 %v3314
    %3339 = vmatprep.subr.mxu0 0.0
    %3340 = vmatpush1.msra.mxu0 %v3315
    %3341 = vmatprep.subr.mxu0 0.0
    %3342 = vmatpush1.msra.mxu0 %v3316
    %3343 = vmatprep.subr.mxu0 0.0
    %3344 = vmatpush1.msra.mxu0 0.0
    %3345 = vmatprep.subr.mxu0 0.0
    %3346 = vmatpush1.msra.mxu0 0.0
    %3347 = vmatprep.subr.mxu0 0.0
    %3348 = vmatpush1.msra.mxu0 0.0
    %3349 = vmatprep.subr.mxu0 0.0
    %3350 = vmatpush1.msra.mxu0 0.0
    %3351 = vmatprep.subr.mxu0 0.0
    %3352 = vmatpush1.msra.mxu0 0.0
    %3353 = vmatprep.subr.mxu0 0.0
    %3354 = vmatpush1.msra.mxu0 0.0
    %3355 = vmatprep.subr.mxu0 0.0
    %3356 = vmatpush1.msra.mxu0 0.0
    %3357 = vmatprep.subr.mxu0 0.0
    %3358 = vmatpush1.msra.mxu0 0.0
    %3359 = vmatprep.subr.mxu0 0.0
    %3360 = vmatpush1.msra.mxu0 0.0
    %3361 = vmatprep.subr.mxu0 0.0
    %3362 = vmatpush1.msra.mxu0 0.0
    %3363 = vmatprep.subr.mxu0 0.0
    %3364 = vmatpush1.msra.mxu0 0.0
    %3365 = vmatprep.subr.mxu0 0.0
    %3366 = vmatpush1.msra.mxu0 0.0
    %3367 = vmatprep.subr.mxu0 0.0
    %3368 = vmatpush1.msra.mxu0 0.0
    %3369 = vmatprep.subr.mxu0 0.0
    %3370 = vmatpush1.msra.mxu0 0.0
    %3371 = vmatprep.subr.mxu0 0.0
    %3372 = vmatpush1.msra.mxu0 0.0
    %3373 = vmatprep.subr.mxu0 0.0
    %3374 = vmatpush1.msra.mxu0 0.0
    %3375 = vmatprep.subr.mxu0 0.0
    %3376 = vmatpush1.msra.mxu0 0.0
    %3377 = vmatprep.subr.mxu0 0.0
    %3378 = vmatpush1.msra.mxu0 0.0
    %3379 = vmatprep.subr.mxu0 0.0
    %3380 = vmatpush1.msra.mxu0 0.0
    %3381 = vmatprep.subr.mxu0 0.0
    %3382 = vmatpush1.msra.mxu0 0.0
    %3383 = vmatprep.subr.mxu0 0.0
    %3384 = vmatpush1.msra.mxu0 0.0
    %3385 = vmatprep.subr.mxu0 0.0
    %3386 = vmatpush1.msra.mxu0 0.0
    %3387 = vmatprep.subr.mxu0 0.0
    %3388 = vmatpush1.msra.mxu0 0.0
    %3389 = vmatprep.subr.mxu0 0.0
    %3390 = vmatpush1.msra.mxu0 0.0
    %3391 = vmatprep.mubr.f32.mxu0 0.0
    %3392 = vmatmul.mubr.f32.gmra.mrb[0].mxu0 %v3322
    %v3393 = vpop.f32.mrb[0].mxu0
    %v3394 = vadd.f32 %v3320, %v3393
    %v3395 = vpop.f32.mrb[0].mxu0
    %3396 = vmatprep.mubr.f32.mxu0 0.0
    %3397 = vmatmul.mubr.f32.gmra.mrb[0].mxu0 %v3325
    %v3398 = vpop.f32.mrb[0].mxu0
    %v3399 = vadd.f32 %v3320, %v3398
    %v3400 = vpop.f32.mrb[0].mxu0
    %3401 = vdwg.mxu0
    %v3402 = vadd.f32 %v3394, %v1864
    %v3403 = vadd.f32 %v3399, %v1865
    %v3404 = vsel %vm109, %v3402, 0.0
    %3405 = vadd.xlane.f32.xlu0 %v3404
    %v3406 = vpop.xlane.xlu0 %3405
    %v3407 = vsel %vm109, %v3403, 0.0
    %3408 = vadd.xlane.f32.xlu0 %v3407
    %v3409 = vpop.xlane.xlu0 %3408
    %v3410 = vmul.f32 %v3406, %v1833
    %v3411 = vmul.f32 %v3409, %v1833
    %v3412 = vsub.f32 %v3402, %v3410
    %v3413 = vsub.f32 %v3403, %v3411
    %v3414 = vmul.f32 %v3412, %v3412
    %v3415 = vmul.f32 %v3413, %v3413
    %v3416 = vsel %vm109, %v3414, 0.0
    %3417 = vadd.xlane.f32.xlu0 %v3416
    %v3418 = vpop.xlane.xlu0 %3417
    %v3419 = vsel %vm109, %v3415, 0.0
    %3420 = vadd.xlane.f32.xlu0 %v3419
    %v3421 = vpop.xlane.xlu0 %3420
    %v3422 = vmul.f32 %v3418, %v1833
    %v3423 = vmul.f32 %v3421, %v1833
    %v3424 = vadd.f32 %v3422, 1e-05
    %v3425 = vadd.f32 %v3423, 1e-05
    %v3426 = vrsqrt.pop %v3424
    %v3427 = vrsqrt.pop %v3425
    %v3428 = vmul.f32 %v3412, %v3426
    %v3429 = vmul.f32 %v3413, %v3427
    %v3430 = vlaneseq
    %v3431 = vshrl.u32 %v3430, 7
    %v3432 = vsub.s32 0, %v3431
    %v3433 = vrot.slane %v58, %v3432
    %v3434 = vmul.f32 %v3428, %v3433
    %v3435 = vmul.f32 %v3429, %v3433
    %v3436 = vlaneseq
    %v3437 = vshrl.u32 %v3436, 7
    %v3438 = vsub.s32 0, %v3437
    %v3439 = vrot.slane %v59, %v3438
    %v3440 = vadd.f32 %v3434, %v3439
    %v3441 = vadd.f32 %v3435, %v3439
    %v3442 = vld [vmem:[%s5 + $0x8] sm:$0xff]
    %v3443 = vld [vmem:[%s5 + $0x18] sm:$0xff]
    %v3444 = vld [vmem:[%s5 + $0x28] sm:$0xff]
    %v3445 = vld [vmem:[%s5 + $0x38] sm:$0xff]
    %v3446 = vld [vmem:[%s7 + $0x3] sm:$0x1]
    %v3447 = vlaneseq
    %v3448 = vshrl.u32 %v3447, 7
    %v3449 = vsub.s32 0, %v3448
    %v3450 = vrot.slane %v3446, %v3449
    %v3452 = vsel %vm109, %v3440, 0
    %v3455 = vsel %vm109, %v3441, 0
    %3457 = vmatprep.subr.mxu0 0.0
    %3458 = vmatpush1.msra.mxu0 %v3442
    %3459 = vmatprep.subr.mxu0 0.0
    %3460 = vmatpush1.msra.mxu0 %v3443
    %3461 = vmatprep.subr.mxu0 0.0
    %3462 = vmatpush1.msra.mxu0 %v3444
    %3463 = vmatprep.subr.mxu0 0.0
    %3464 = vmatpush1.msra.mxu0 %v3445
    %3465 = vmatprep.subr.mxu0 0.0
    %3466 = vmatpush1.msra.mxu0 0.0
    %3467 = vmatprep.subr.mxu0 0.0
    %3468 = vmatpush1.msra.mxu0 0.0
    %3469 = vmatprep.subr.mxu0 0.0
    %3470 = vmatpush1.msra.mxu0 0.0
    %3471 = vmatprep.subr.mxu0 0.0
    %3472 = vmatpush1.msra.mxu0 0.0
    %3473 = vmatprep.subr.mxu0 0.0
    %3474 = vmatpush1.msra.mxu0 0.0
    %3475 = vmatprep.subr.mxu0 0.0
    %3476 = vmatpush1.msra.mxu0 0.0
    %3477 = vmatprep.subr.mxu0 0.0
    %3478 = vmatpush1.msra.mxu0 0.0
    %3479 = vmatprep.subr.mxu0 0.0
    %3480 = vmatpush1.msra.mxu0 0.0
    %3481 = vmatprep.subr.mxu0 0.0
    %3482 = vmatpush1.msra.mxu0 0.0
    %3483 = vmatprep.subr.mxu0 0.0
    %3484 = vmatpush1.msra.mxu0 0.0
    %3485 = vmatprep.subr.mxu0 0.0
    %3486 = vmatpush1.msra.mxu0 0.0
    %3487 = vmatprep.subr.mxu0 0.0
    %3488 = vmatpush1.msra.mxu0 0.0
    %3489 = vmatprep.subr.mxu0 0.0
    %3490 = vmatpush1.msra.mxu0 0.0
    %3491 = vmatprep.subr.mxu0 0.0
    %3492 = vmatpush1.msra.mxu0 0.0
    %3493 = vmatprep.subr.mxu0 0.0
    %3494 = vmatpush1.msra.mxu0 0.0
    %3495 = vmatprep.subr.mxu0 0.0
    %3496 = vmatpush1.msra.mxu0 0.0
    %3497 = vmatprep.subr.mxu0 0.0
    %3498 = vmatpush1.msra.mxu0 0.0
    %3499 = vmatprep.subr.mxu0 0.0
    %3500 = vmatpush1.msra.mxu0 0.0
    %3501 = vmatprep.subr.mxu0 0.0
    %3502 = vmatpush1.msra.mxu0 0.0
    %3503 = vmatprep.subr.mxu0 0.0
    %3504 = vmatpush1.msra.mxu0 0.0
    %3505 = vmatprep.subr.mxu0 0.0
    %3506 = vmatpush1.msra.mxu0 0.0
    %3507 = vmatprep.subr.mxu0 0.0
    %3508 = vmatpush1.msra.mxu0 0.0
    %3509 = vmatprep.subr.mxu0 0.0
    %3510 = vmatpush1.msra.mxu0 0.0
    %3511 = vmatprep.subr.mxu0 0.0
    %3512 = vmatpush1.msra.mxu0 0.0
    %3513 = vmatprep.subr.mxu0 0.0
    %3514 = vmatpush1.msra.mxu0 0.0
    %3515 = vmatprep.subr.mxu0 0.0
    %3516 = vmatpush1.msra.mxu0 0.0
    %3517 = vmatprep.subr.mxu0 0.0
    %3518 = vmatpush1.msra.mxu0 0.0
    %3519 = vmatprep.subr.mxu0 0.0
    %3520 = vmatpush1.msra.mxu0 0.0
    %3521 = vmatprep.mubr.f32.mxu0 0.0
    %3522 = vmatmul.mubr.f32.gmra.mrb[0].mxu0 %v3452
    %v3523 = vpop.f32.mrb[0].mxu0
    %v3524 = vadd.f32 %v3450, %v3523
    %v3525 = vpop.f32.mrb[0].mxu0
    %3526 = vmatprep.mubr.f32.mxu0 0.0
    %3527 = vmatmul.mubr.f32.gmra.mrb[0].mxu0 %v3455
    %v3528 = vpop.f32.mrb[0].mxu0
    %v3529 = vadd.f32 %v3450, %v3528
    %v3530 = vpop.f32.mrb[0].mxu0
    %3531 = vdwg.mxu0
    %v3532 = vmax.f32 %v3524, 0.0
    %v3533 = vmax.f32 %v3529, 0.0
    %v3534 = vld [vmem:[%s6 + $0x80] sm:$0xff]
    %v3535 = vld [vmem:[%s6 + $0x88] sm:$0xff]
    %v3536 = vld [vmem:[%s6 + $0x90] sm:$0xff]
    %v3537 = vld [vmem:[%s6 + $0x98] sm:$0xff]
    %v3538 = vld [vmem:[%s6 + $0xa0] sm:$0xff]
    %v3539 = vld [vmem:[%s6 + $0xa8] sm:$0xff]
    %v3540 = vld [vmem:[%s6 + $0xb0] sm:$0xff]
    %v3541 = vld [vmem:[%s6 + $0xb8] sm:$0xff]
    %v3542 = vld [vmem:[%s6 + $0xc0] sm:$0xff]
    %v3543 = vld [vmem:[%s6 + $0xc8] sm:$0xff]
    %v3544 = vld [vmem:[%s6 + $0xd0] sm:$0xff]
    %v3545 = vld [vmem:[%s6 + $0xd8] sm:$0xff]
    %v3546 = vld [vmem:[%s6 + $0xe0] sm:$0xff]
    %v3547 = vld [vmem:[%s6 + $0xe8] sm:$0xff]
    %v3548 = vld [vmem:[%s6 + $0xf0] sm:$0xff]
    %v3549 = vld [vmem:[%s6 + $0xf8] sm:$0xff]
    %v3550 = vlaneseq
    %v3551 = vshrl.u32 %v3550, 7
    %v3552 = vsub.s32 0, %v3551
    %v3553 = vrot.slane %v55, %v3552
    %3554 = vmatprep.subr.mxu0 0.0
    %3555 = vmatpush1.msra.mxu0 %v3534
    %3556 = vmatprep.subr.mxu0 0.0
    %3557 = vmatpush1.msra.mxu0 %v3535
    %3558 = vmatprep.subr.mxu0 0.0
    %3559 = vmatpush1.msra.mxu0 %v3536
    %3560 = vmatprep.subr.mxu0 0.0
    %3561 = vmatpush1.msra.mxu0 %v3537
    %3562 = vmatprep.subr.mxu0 0.0
    %3563 = vmatpush1.msra.mxu0 %v3538
    %3564 = vmatprep.subr.mxu0 0.0
    %3565 = vmatpush1.msra.mxu0 %v3539
    %3566 = vmatprep.subr.mxu0 0.0
    %3567 = vmatpush1.msra.mxu0 %v3540
    %3568 = vmatprep.subr.mxu0 0.0
    %3569 = vmatpush1.msra.mxu0 %v3541
    %3570 = vmatprep.subr.mxu0 0.0
    %3571 = vmatpush1.msra.mxu0 %v3542
    %3572 = vmatprep.subr.mxu0 0.0
    %3573 = vmatpush1.msra.mxu0 %v3543
    %3574 = vmatprep.subr.mxu0 0.0
    %3575 = vmatpush1.msra.mxu0 %v3544
    %3576 = vmatprep.subr.mxu0 0.0
    %3577 = vmatpush1.msra.mxu0 %v3545
    %3578 = vmatprep.subr.mxu0 0.0
    %3579 = vmatpush1.msra.mxu0 %v3546
    %3580 = vmatprep.subr.mxu0 0.0
    %3581 = vmatpush1.msra.mxu0 %v3547
    %3582 = vmatprep.subr.mxu0 0.0
    %3583 = vmatpush1.msra.mxu0 %v3548
    %3584 = vmatprep.subr.mxu0 0.0
    %3585 = vmatpush1.msra.mxu0 %v3549
    %3586 = vmatprep.subr.mxu0 0.0
    %3587 = vmatpush1.msra.mxu0 0.0
    %3588 = vmatprep.subr.mxu0 0.0
    %3589 = vmatpush1.msra.mxu0 0.0
    %3590 = vmatprep.subr.mxu0 0.0
    %3591 = vmatpush1.msra.mxu0 0.0
    %3592 = vmatprep.subr.mxu0 0.0
    %3593 = vmatpush1.msra.mxu0 0.0
    %3594 = vmatprep.subr.mxu0 0.0
    %3595 = vmatpush1.msra.mxu0 0.0
    %3596 = vmatprep.subr.mxu0 0.0
    %3597 = vmatpush1.msra.mxu0 0.0
    %3598 = vmatprep.subr.mxu0 0.0
    %3599 = vmatpush1.msra.mxu0 0.0
    %3600 = vmatprep.subr.mxu0 0.0
    %3601 = vmatpush1.msra.mxu0 0.0
    %3602 = vmatprep.subr.mxu0 0.0
    %3603 = vmatpush1.msra.mxu0 0.0
    %3604 = vmatprep.subr.mxu0 0.0
    %3605 = vmatpush1.msra.mxu0 0.0
    %3606 = vmatprep.subr.mxu0 0.0
    %3607 = vmatpush1.msra.mxu0 0.0
    %3608 = vmatprep.subr.mxu0 0.0
    %3609 = vmatpush1.msra.mxu0 0.0
    %3610 = vmatprep.subr.mxu0 0.0
    %3611 = vmatpush1.msra.mxu0 0.0
    %3612 = vmatprep.subr.mxu0 0.0
    %3613 = vmatpush1.msra.mxu0 0.0
    %3614 = vmatprep.subr.mxu0 0.0
    %3615 = vmatpush1.msra.mxu0 0.0
    %3616 = vmatprep.subr.mxu0 0.0
    %3617 = vmatpush1.msra.mxu0 0.0
    %3618 = vmatprep.mubr.f32.mxu0 0.0
    %3619 = vmatmul.mubr.f32.gmra.mrb[0].mxu0 %v3532
    %v3620 = vpop.f32.mrb[0].mxu0
    %v3621 = vadd.f32 %v3553, %v3620
    %v3622 = vpop.f32.mrb[0].mxu0
    %3623 = vmatprep.mubr.f32.mxu0 0.0
    %3624 = vmatmul.mubr.f32.gmra.mrb[0].mxu0 %v3533
    %v3625 = vpop.f32.mrb[0].mxu0
    %v3626 = vadd.f32 %v3553, %v3625
    %v3627 = vpop.f32.mrb[0].mxu0
    %3628 = vdwg.mxu0
    %v3629 = vadd.f32 %v3621, %v3440
    %v3630 = vadd.f32 %v3626, %v3441
    %v3631 = vsel %vm109, %v3629, 0.0
    %3632 = vadd.xlane.f32.xlu0 %v3631
    %v3633 = vpop.xlane.xlu0 %3632
    %v3634 = vsel %vm109, %v3630, 0.0
    %3635 = vadd.xlane.f32.xlu0 %v3634
    %v3636 = vpop.xlane.xlu0 %3635
    %v3637 = vmul.f32 %v3633, %v1833
    %v3638 = vmul.f32 %v3636, %v1833
    %v3639 = vsub.f32 %v3629, %v3637
    %v3640 = vsub.f32 %v3630, %v3638
    %v3641 = vmul.f32 %v3639, %v3639
    %v3642 = vmul.f32 %v3640, %v3640
    %v3643 = vsel %vm109, %v3641, 0.0
    %3644 = vadd.xlane.f32.xlu0 %v3643
    %v3645 = vpop.xlane.xlu0 %3644
    %v3646 = vsel %vm109, %v3642, 0.0
    %3647 = vadd.xlane.f32.xlu0 %v3646
    %v3648 = vpop.xlane.xlu0 %3647
    %v3649 = vmul.f32 %v3645, %v1833
    %v3650 = vmul.f32 %v3648, %v1833
    %v3651 = vadd.f32 %v3649, 1e-05
    %v3652 = vadd.f32 %v3650, 1e-05
    %v3653 = vrsqrt.pop %v3651
    %v3654 = vrsqrt.pop %v3652
    %v3655 = vmul.f32 %v3639, %v3653
    %v3656 = vmul.f32 %v3640, %v3654
    %v3657 = vlaneseq
    %v3658 = vshrl.u32 %v3657, 7
    %v3659 = vsub.s32 0, %v3658
    %v3660 = vrot.slane %v60, %v3659
    %v3661 = vmul.f32 %v3655, %v3660
    %v3662 = vmul.f32 %v3656, %v3660
    %v3663 = vlaneseq
    %v3664 = vshrl.u32 %v3663, 7
    %v3665 = vsub.s32 0, %v3664
    %v3666 = vrot.slane %v61, %v3665
    %v3667 = vadd.f32 %v3661, %v3666
    %v3668 = vadd.f32 %v3662, %v3666
    %3669 = vst.msk [vmem:[#allocation2] sm:$0xff] %vm109, %v3667
    %3670 = vst.msk [vmem:[#allocation2 + $0x8] sm:$0xff] %vm109, %v3668
    // Predicated region
    $region38: #{decoder_layer.1} parent=1 // pred_check
      _
    $region39: #{decoder_layer.1} parent=1 // pred_check_branch
      %3672 = sbr.rel (0) target = $region41
    $region40: #{decoder_layer.1} parent=1 // pred_region
      %s3674 = ssub.s32 256, 256
      %3675 = vsyncadd [#allocation3], %s3674
      %s3676 = sshll.u32 [#allocation2], 4
      %s3677 = int_to_ptr.vmem [resolvable:$true] %s3676
      %3682 = dma.vmem_to_hbm [thread:$0]  %s3677, 256, %s9, [#allocation3], 128, 128, 8
    $region41: #{decoder_layer.1} parent=1 // pred_fallthru
      _
    // Predicated region
    $region42: #{decoder_layer.1} parent=1 // pred_check
      _
    $region43: #{decoder_layer.1} parent=1 // pred_check_branch
      %3684 = sbr.rel (0) target = $region45
    $region44: #{decoder_layer.1} parent=1 // pred_region
      %s3686 = ssub.s32 1024, 1024
      %3687 = vsyncadd [#allocation5], %s3686
      %s3688 = sshll.u32 [#allocation4], 4
      %s3689 = int_to_ptr.vmem [resolvable:$true] %s3688
      %3694 = dma.vmem_to_hbm [thread:$0]  %s3689, 1024, %s10, [#allocation5], 128, 128, 8
    $region45: #{decoder_layer.1} parent=1 // pred_fallthru
      _
    // Predicated region
    $region46: #{decoder_layer.1} parent=1 // pred_check
      _
    $region47: #{decoder_layer.1} parent=1 // pred_check_branch
      %3696 = sbr.rel (0) target = $region49
    $region48: #{decoder_layer.1} parent=1 // pred_region
      %s3698 = ssub.s32 1024, 1024
      %3699 = vsyncadd [#allocation5], %s3698
      %s3700 = sshll.u32 [#allocation6], 4
      %s3701 = int_to_ptr.vmem [resolvable:$true] %s3700
      %3706 = dma.vmem_to_hbm [thread:$0]  %s3701, 1024, %s11, [#allocation5], 128, 128, 8
    $region49: #{decoder_layer.1} parent=1 // pred_fallthru
      _
    // Predicated region
    $region50: #{decoder_layer.1} parent=1 // pred_check
      _
    $region51: #{decoder_layer.1} parent=1 // pred_check_branch
      %3708 = sbr.rel (0) target = $region53
    $region52: #{decoder_layer.1} parent=1 // pred_region
      %3709 = dma.done [#allocation3], 256
    $region53: #{decoder_layer.1} parent=1 // pred_fallthru
      _
    // Predicated region
    $region54: #{decoder_layer.1} parent=1 // pred_check
      _
    $region55: #{decoder_layer.1} parent=1 // pred_check_branch
      %3711 = sbr.rel (0) target = $region57
    $region56: #{decoder_layer.1} parent=1 // pred_region
      %3712 = dma.done [#allocation5], 1024
    $region57: #{decoder_layer.1} parent=1 // pred_fallthru
      _
    // Predicated region
    $region58: #{decoder_layer.1} parent=1 // pred_check
      _
    $region59: #{decoder_layer.1} parent=1 // pred_check_branch
      %3714 = sbr.rel (0) target = $region61
    $region60: #{decoder_layer.1} parent=1 // pred_region
      %3715 = dma.done [#allocation5], 1024
    $region61: #{decoder_layer.1} parent=1 // pred_fallthru
      _
    %3716 = vsyncpa [#allocation3], 1
    %3717 = vsyncpa [#allocation5], 1

</llo_original>
